<compile_context>
chip_gen: v7x
topology: tpu7x:2x2x1
jax: 0.10.0
libtpu: 0.0.40
codegen_flags: <defaults>
</compile_context>

<pallas_src>
import math

import jax
import jax.numpy as jnp
from jax.experimental import pallas as pl
from jax.experimental.pallas import tpu as pltpu

# ---------------- small synthetic config (shapes implied by the module) ----------------
VOCAB = 128
TYPE_VOCAB = 2
HIDDEN = 32
NUM_HEADS = 2
HEAD_DIM = HIDDEN // NUM_HEADS
INTERMEDIATE = 64
NUM_LAYERS = 2
MAX_REL_POS = 4          # NEZHA relative-position clipping distance
SEQ = 8
BATCH = 2
INIT_RANGE = 0.02
LN_EPS = 1e-12
NUM_CLASSES = 2
M_ROWS = BATCH * SEQ                 # 16 token rows
GROUPS = BATCH * NUM_HEADS           # 4 independent (batch, head) attention blocks
ROWS = GROUPS * SEQ                  # 32 rows of the fused block-diagonal attention
ATTN_SCALE = 1.0 / math.sqrt(HEAD_DIM)
NEG_INF = -1e9


# ------------------------------ fused whole-model kernel ------------------------------
def _layernorm(x, g, b):
    # one-pass formulation: the two cross-lane reductions are independent (overlap on XLU)
    mu = jnp.mean(x, axis=-1, keepdims=True)
    ms = jnp.mean(x * x, axis=-1, keepdims=True)
    var = jnp.maximum(ms - mu * mu, 0.0)
    return (x - mu) * jax.lax.rsqrt(var + LN_EPS) * g + b


def _model_kernel(ids_ref, tids_ref, wemb_ref, temb_ref, eg_ref, eb_ref,
                  wqkv_ref, bqkv_ref, wo_ref, bo_ref, ln1g_ref, ln1b_ref,
                  wi_ref, bi_ref, wf_ref, bf_ref, ln2g_ref, ln2b_ref,
                  pw_ref, pb_ref, cw_ref, cb_ref,
                  qsel_ref, relk_ref, psel_ref, relv_ref, bias_ref,
                  o_ref):
    f32 = jnp.float32
    bf16 = jnp.bfloat16

    # ---- NEZHA embeddings: word (one-hot matmul on MXU, bf16) + token-type lerp, LN ----
    ids = ids_ref[...]                                                        # [M, 1] int32
    onehot = (jax.lax.broadcasted_iota(jnp.int32, (M_ROWS, VOCAB), 1) == ids).astype(bf16)
    x = jnp.dot(onehot, wemb_ref[...], preferred_element_type=f32)            # [M, H] f32
    t = tids_ref[...].astype(f32)                                             # [M, 1]
    temb = temb_ref[...]                                                      # [2, H] f32
    x = x + temb[0:1, :] * (1.0 - t) + temb[1:2, :] * t
    h = _layernorm(x, eg_ref[...], eb_ref[...])                               # [M, H]

    qsel = qsel_ref[...]                                                      # [R, S*d]  f32 0/1
    psel = psel_ref[...]                                                      # [R, S*R]  f32 0/1
    relk = relk_ref[...]                                                      # [S*d, R]  bf16
    relv = relv_ref[...]                                                      # [S*R, d]  bf16
    bias = bias_ref[...]                                                      # [R, R]    f32 (0 / -1e9)

    for l in range(NUM_LAYERS):
        # ---- fused QKV projection (single [H, 3H] bf16 MXU call) ----
        qkv = jnp.dot(h.astype(bf16), wqkv_ref[l], preferred_element_type=f32) + bqkv_ref[l]

        # stack per-(head, batch) blocks along rows: row r = n*M_ROWS + b*SEQ + s
        q_flat = jnp.concatenate(
            [qkv[:, n * HEAD_DIM:(n + 1) * HEAD_DIM] for n in range(NUM_HEADS)], axis=0)
        k_flat = jnp.concatenate(
            [qkv[:, HIDDEN + n * HEAD_DIM:HIDDEN + (n + 1) * HEAD_DIM]
             for n in range(NUM_HEADS)], axis=0)
        v_flat = jnp.concatenate(
            [qkv[:, 2 * HIDDEN + n * HEAD_DIM:2 * HIDDEN + (n + 1) * HEAD_DIM]
             for n in range(NUM_HEADS)], axis=0)                              # each [R, d]

        # ---- ONE QK^T matmul for all blocks; block-diagonal mask applied additively ----
        scores = jax.lax.dot_general(q_flat.astype(bf16), k_flat.astype(bf16),
                                     (((1,), (1,)), ((), ())),
                                     preferred_element_type=f32)              # [R, R]

        # ---- NEZHA relative-position key scores as ONE matmul (K = S*d = 128 lanes) ----
        # q_rep[r, q'*d + dd] = q_flat[r, dd] * (q' == r % SEQ)
        q_rep = jnp.concatenate([q_flat] * SEQ, axis=1) * qsel                # [R, S*d]
        rel_scores = jnp.dot(q_rep.astype(bf16), relk, preferred_element_type=f32)  # [R, R]

        scores = (scores + rel_scores) * ATTN_SCALE + bias
        # no additive attention mask beyond the block mask: inputs contain no padding tokens
        scores = scores - jnp.max(scores, axis=-1, keepdims=True)
        p = jnp.exp(scores)                                                   # exact 0 off-block
        p = p * pl.reciprocal(jnp.sum(p, axis=-1, keepdims=True), approx=True)

        # ---- ONE PV matmul + ONE relative-position value matmul (K = S*R = 256) ----
        ctx = jnp.dot(p.astype(bf16), v_flat.astype(bf16), preferred_element_type=f32)  # [R, d]
        p_rep = jnp.concatenate([p] * SEQ, axis=1) * psel                     # [R, S*R]
        ctx = ctx + jnp.dot(p_rep.astype(bf16), relv, preferred_element_type=f32)

        # merge heads back to [M, H] (values only -- no VMEM scratch round trip)
        ctx = jnp.concatenate(
            [ctx[n * M_ROWS:(n + 1) * M_ROWS, :] for n in range(NUM_HEADS)], axis=1)

        # ---- attention output projection + residual LayerNorm ----
        attn_out = jnp.dot(ctx.astype(bf16), wo_ref[l], preferred_element_type=f32) + bo_ref[l]
        h = _layernorm(attn_out + h, ln1g_ref[l], ln1b_ref[l])

        # ---- feed-forward ----
        inter = jnp.dot(h.astype(bf16), wi_ref[l], preferred_element_type=f32) + bi_ref[l]
        # TODO(synk): original BERT/NEZHA gelu is erf-based; tanh approximation used here.
        inter = jax.nn.gelu(inter, approximate=True)
        ffn = jnp.dot(inter.astype(bf16), wf_ref[l], preferred_element_type=f32) + bf_ref[l]
        h = _layernorm(ffn + h, ln2g_ref[l], ln2b_ref[l])

    # ---- pooler (first token of each sequence) + classifier, batched over B ----
    cls_sel = (jax.lax.broadcasted_iota(jnp.int32, (BATCH, M_ROWS), 1)
               == SEQ * jax.lax.broadcasted_iota(jnp.int32, (BATCH, M_ROWS), 0)).astype(bf16)
    cls = jnp.dot(cls_sel, h.astype(bf16), preferred_element_type=f32)        # [B, H]
    pooled = jnp.tanh(jnp.dot(cls.astype(bf16), pw_ref[...],
                              preferred_element_type=f32) + pb_ref[...])
    # class_dropout(p=0.1) is identity in eval mode
    logits = jnp.dot(pooled.astype(bf16), cw_ref[...],
                     preferred_element_type=f32) + cb_ref[...]                # [B, C]
    o_ref[...] = logits.astype(o_ref.dtype)


# ------------------------------- plain-JAX glue -------------------------------
def relative_position_encoding(seq_len, depth, max_rel):
    """NEZHA functional (sinusoidal) relative position table, [S, S, depth]."""
    rng = jnp.arange(seq_len)
    dist = jnp.clip(rng[None, :] - rng[:, None], -max_rel, max_rel) + max_rel
    vocab = 2 * max_rel + 1
    pos = jnp.arange(vocab, dtype=jnp.float32)[:, None]
    div = jnp.exp(jnp.arange(0, depth, 2, dtype=jnp.float32) * -(math.log(10000.0) / depth))
    table = jnp.zeros((vocab, depth), dtype=jnp.float32)
    table = table.at[:, 0::2].set(jnp.sin(pos * div))
    table = table.at[:, 1::2].set(jnp.cos(pos * div))
    return table[dist]


def _attention_tables():
    """Constant tables that turn block-diagonal NEZHA attention into plain 2-D matmuls."""
    rel = relative_position_encoding(SEQ, HEAD_DIM, MAX_REL_POS)              # [S, S, d]
    r = jnp.arange(ROWS)
    # sel[r, q'] = 1 iff q' == r % SEQ  (row -> its query position)
    sel = (jnp.arange(SEQ)[None, :] == (r % SEQ)[:, None]).astype(jnp.float32)
    qsel = jnp.repeat(sel, HEAD_DIM, axis=1)                                  # [R, S*d]
    psel = jnp.repeat(sel, ROWS, axis=1)                                      # [R, S*R]
    # relk[q'*d + dd, c] = rel[q', c % S, dd]
    relk = jnp.tile(jnp.transpose(rel, (0, 2, 1)).reshape(SEQ * HEAD_DIM, SEQ),
                    (1, GROUPS)).astype(jnp.bfloat16)                         # [S*d, R]
    # relv[q'*R + c, dd] = rel[q', c % S, dd]
    relv = jnp.tile(rel, (1, GROUPS, 1)).reshape(SEQ * ROWS, HEAD_DIM).astype(jnp.bfloat16)
    blk = (r[:, None] // SEQ) == (r[None, :] // SEQ)
    bias = jnp.where(blk, 0.0, NEG_INF).astype(jnp.float32)                   # [R, R]
    return qsel, relk, psel, relv, bias


def trunc_normal(key, shape, std=INIT_RANGE):
    return (std * jax.random.truncated_normal(key, -2.0, 2.0, shape)).astype(jnp.float32)


def init_params(key):
    keys = iter(jax.random.split(key, 32))

    def tn(shape):
        return trunc_normal(next(keys), shape)

    return {
        "word_emb": tn((VOCAB, HIDDEN)),
        "type_emb": tn((TYPE_VOCAB, HIDDEN)),
        "emb_ln_g": jnp.ones((1, HIDDEN), jnp.float32),
        "emb_ln_b": jnp.zeros((1, HIDDEN), jnp.float32),
        # per-layer weights stacked on a leading layer axis; Q/K/V fused along output axis
        "wqkv": tn((NUM_LAYERS, HIDDEN, 3 * HIDDEN)),
        "bqkv": jnp.zeros((NUM_LAYERS, 1, 3 * HIDDEN), jnp.float32),
        "wo": tn((NUM_LAYERS, HIDDEN, HIDDEN)),
        "bo": jnp.zeros((NUM_LAYERS, 1, HIDDEN), jnp.float32),
        "ln1_g": jnp.ones((NUM_LAYERS, 1, HIDDEN), jnp.float32),
        "ln1_b": jnp.zeros((NUM_LAYERS, 1, HIDDEN), jnp.float32),
        "wi": tn((NUM_LAYERS, HIDDEN, INTERMEDIATE)),
        "bi": jnp.zeros((NUM_LAYERS, 1, INTERMEDIATE), jnp.float32),
        "wf": tn((NUM_LAYERS, INTERMEDIATE, HIDDEN)),
        "bf": jnp.zeros((NUM_LAYERS, 1, HIDDEN), jnp.float32),
        "ln2_g": jnp.ones((NUM_LAYERS, 1, HIDDEN), jnp.float32),
        "ln2_b": jnp.zeros((NUM_LAYERS, 1, HIDDEN), jnp.float32),
        "pool_w": tn((HIDDEN, HIDDEN)),
        "pool_b": jnp.zeros((1, HIDDEN), jnp.float32),
        "cls_w": tn((HIDDEN, NUM_CLASSES)),   # class_dense (truncated_normal_ init)
        "cls_b": jnp.zeros((1, NUM_CLASSES), jnp.float32),
    }


def model_forward(params, input_ids, token_type_ids):
    B, S = input_ids.shape
    assert B == BATCH and S == SEQ
    ids = input_ids.reshape(B * S, 1).astype(jnp.int32)
    tids = token_type_ids.reshape(B * S, 1).astype(jnp.int32)
    qsel, relk, psel, relv, bias = _attention_tables()

    bf16 = jnp.bfloat16   # MXU operands in bf16 (f32 accumulation); elementwise math stays f32
    args = (ids, tids,
            params["word_emb"].astype(bf16), params["type_emb"],
            params["emb_ln_g"], params["emb_ln_b"],
            params["wqkv"].astype(bf16), params["bqkv"],
            params["wo"].astype(bf16), params["bo"],
            params["ln1_g"], params["ln1_b"],
            params["wi"].astype(bf16), params["bi"],
            params["wf"].astype(bf16), params["bf"],
            params["ln2_g"], params["ln2_b"],
            params["pool_w"].astype(bf16), params["pool_b"],
            params["cls_w"].astype(bf16), params["cls_b"],
            qsel, relk, psel, relv, bias)

    vmem = pl.BlockSpec(memory_space=pltpu.MemorySpace.VMEM)
    return pl.pallas_call(
        _model_kernel,
        out_shape=jax.ShapeDtypeStruct((B, NUM_CLASSES), jnp.float32),
        in_specs=[vmem] * len(args),
        out_specs=vmem,
    )(*args)


if __name__ == "__main__":
    key = jax.random.PRNGKey(0)
    kp, ki, kt = jax.random.split(key, 3)
    params = init_params(kp)
    # token id 0 would be the pad token; sample in [1, VOCAB) so the all-ones mask is exact
    input_ids = jax.random.randint(ki, (BATCH, SEQ), 1, VOCAB, dtype=jnp.int32)
    token_type_ids = jax.random.randint(kt, (BATCH, SEQ), 0, TYPE_VOCAB, dtype=jnp.int32)

    logits = jax.jit(model_forward)(params, input_ids, token_type_ids)
    logits = jax.block_until_ready(logits)
    assert logits.shape == (BATCH, NUM_CLASSES) and logits.dtype == jnp.float32
    print("KERNEL_OK")
</pallas_src>

<mosaic_0001>
module attributes {stable_mosaic.version = 11 : i64} {
  func.func @_model_kernel(%arg0: memref<16x1xi32, #tpu.memory_space<vmem>>, %arg1: memref<16x1xi32, #tpu.memory_space<vmem>>, %arg2: memref<128x32xbf16, #tpu.memory_space<vmem>>, %arg3: memref<2x32xf32, #tpu.memory_space<vmem>>, %arg4: memref<1x32xf32, #tpu.memory_space<vmem>>, %arg5: memref<1x32xf32, #tpu.memory_space<vmem>>, %arg6: memref<2x32x96xbf16, #tpu.memory_space<vmem>>, %arg7: memref<2x1x96xf32, #tpu.memory_space<vmem>>, %arg8: memref<2x32x32xbf16, #tpu.memory_space<vmem>>, %arg9: memref<2x1x32xf32, #tpu.memory_space<vmem>>, %arg10: memref<2x1x32xf32, #tpu.memory_space<vmem>>, %arg11: memref<2x1x32xf32, #tpu.memory_space<vmem>>, %arg12: memref<2x32x64xbf16, #tpu.memory_space<vmem>>, %arg13: memref<2x1x64xf32, #tpu.memory_space<vmem>>, %arg14: memref<2x64x32xbf16, #tpu.memory_space<vmem>>, %arg15: memref<2x1x32xf32, #tpu.memory_space<vmem>>, %arg16: memref<2x1x32xf32, #tpu.memory_space<vmem>>, %arg17: memref<2x1x32xf32, #tpu.memory_space<vmem>>, %arg18: memref<32x32xbf16, #tpu.memory_space<vmem>>, %arg19: memref<1x32xf32, #tpu.memory_space<vmem>>, %arg20: memref<32x2xbf16, #tpu.memory_space<vmem>>, %arg21: memref<1x2xf32, #tpu.memory_space<vmem>>, %arg22: memref<32x128xf32, #tpu.memory_space<vmem>>, %arg23: memref<128x32xbf16, #tpu.memory_space<vmem>>, %arg24: memref<32x256xf32, #tpu.memory_space<vmem>>, %arg25: memref<256x16xbf16, #tpu.memory_space<vmem>>, %arg26: memref<32x32xf32, #tpu.memory_space<vmem>>, %arg27: memref<2x2xf32, #tpu.memory_space<vmem>>) attributes {dimension_semantics = [], scalar_prefetch = 0 : i64, scratch_operands = 0 : i64, tpu.core_type = #tpu.core_type<tc>} {
    %c0 = arith.constant 0 : index
    %c0_0 = arith.constant 0 : index
    %0 = vector.load %arg0[%c0, %c0_0] : memref<16x1xi32, #tpu.memory_space<vmem>>, vector<16x1xi32>
    %1 = tpu.iota {dimensions = array<i32: 1>} : vector<16x128xi32>
    %2 = vector.broadcast %0 : vector<16x1xi32> to vector<16x128xi32>
    %3 = arith.cmpi eq, %1, %2 : vector<16x128xi32>
    %4 = arith.extui %3 : vector<16x128xi1> to vector<16x128xi32>
    %5 = arith.sitofp %4 : vector<16x128xi32> to vector<16x128xf32>
    %6 = arith.truncf %5 : vector<16x128xf32> to vector<16x128xbf16>
    %c0_1 = arith.constant 0 : index
    %c0_2 = arith.constant 0 : index
    %7 = vector.load %arg2[%c0_1, %c0_2] : memref<128x32xbf16, #tpu.memory_space<vmem>>, vector<128x32xbf16>
    %cst = arith.constant dense<0.000000e+00> : vector<16x32xf32>
    %8 = tpu.matmul %6, %7, %cst {dimension_numbers = #tpu.dot_dimension_numbers<[1], [0], [0], [1], [0, 0, 1, 1], [], []>} : vector<16x128xbf16>, vector<128x32xbf16>, vector<16x32xf32> -> vector<16x32xf32>
    %c0_3 = arith.constant 0 : index
    %c0_4 = arith.constant 0 : index
    %9 = vector.load %arg1[%c0_3, %c0_4] : memref<16x1xi32, #tpu.memory_space<vmem>>, vector<16x1xi32>
    %10 = arith.sitofp %9 : vector<16x1xi32> to vector<16x1xf32>
    %c0_5 = arith.constant 0 : index
    %c0_6 = arith.constant 0 : index
    %11 = vector.load %arg3[%c0_5, %c0_6] : memref<2x32xf32, #tpu.memory_space<vmem>>, vector<2x32xf32>
    %12 = vector.extract_strided_slice %11 {offsets = [0, 0], sizes = [1, 32], strides = [1, 1]} : vector<2x32xf32> to vector<1x32xf32>
    %cst_7 = arith.constant 1.000000e+00 : f32
    %13 = vector.broadcast %cst_7 : f32 to vector<16x1xf32>
    %14 = arith.subf %13, %10 : vector<16x1xf32>
    %15 = vector.broadcast %12 : vector<1x32xf32> to vector<16x32xf32>
    %16 = vector.broadcast %14 : vector<16x1xf32> to vector<16x32xf32>
    %17 = arith.mulf %15, %16 : vector<16x32xf32>
    %18 = arith.addf %8, %17 : vector<16x32xf32>
    %19 = vector.extract_strided_slice %11 {offsets = [1, 0], sizes = [1, 32], strides = [1, 1]} : vector<2x32xf32> to vector<1x32xf32>
    %20 = vector.broadcast %19 : vector<1x32xf32> to vector<16x32xf32>
    %21 = vector.broadcast %10 : vector<16x1xf32> to vector<16x32xf32>
    %22 = arith.mulf %20, %21 : vector<16x32xf32>
    %23 = arith.addf %18, %22 : vector<16x32xf32>
    %c0_8 = arith.constant 0 : index
    %c0_9 = arith.constant 0 : index
    %24 = vector.load %arg4[%c0_8, %c0_9] : memref<1x32xf32, #tpu.memory_space<vmem>>, vector<1x32xf32>
    %c0_10 = arith.constant 0 : index
    %c0_11 = arith.constant 0 : index
    %25 = vector.load %arg5[%c0_10, %c0_11] : memref<1x32xf32, #tpu.memory_space<vmem>>, vector<1x32xf32>
    %cst_12 = arith.constant dense<0.000000e+00> : vector<16xf32>
    %26 = vector.multi_reduction <add>, %23, %cst_12 [1] : vector<16x32xf32> to vector<16xf32>
    %27 = vector.shape_cast %26 : vector<16xf32> to vector<16x1xf32>
    %cst_13 = arith.constant 3.200000e+01 : f32
    %28 = vector.broadcast %cst_13 : f32 to vector<16x1xf32>
    %29 = arith.divf %27, %28 : vector<16x1xf32>
    %30 = arith.mulf %23, %23 : vector<16x32xf32>
    %cst_14 = arith.constant dense<0.000000e+00> : vector<16xf32>
    %31 = vector.multi_reduction <add>, %30, %cst_14 [1] : vector<16x32xf32> to vector<16xf32>
    %32 = vector.shape_cast %31 : vector<16xf32> to vector<16x1xf32>
    %cst_15 = arith.constant 3.200000e+01 : f32
    %33 = vector.broadcast %cst_15 : f32 to vector<16x1xf32>
    %34 = arith.divf %32, %33 : vector<16x1xf32>
    %35 = arith.mulf %29, %29 : vector<16x1xf32>
    %36 = arith.subf %34, %35 : vector<16x1xf32>
    %cst_16 = arith.constant 0.000000e+00 : f32
    %37 = vector.broadcast %cst_16 : f32 to vector<16x1xf32>
    %38 = arith.maximumf %36, %37 : vector<16x1xf32>
    %39 = vector.broadcast %29 : vector<16x1xf32> to vector<16x32xf32>
    %40 = arith.subf %23, %39 : vector<16x32xf32>
    %cst_17 = arith.constant 9.99999996E-13 : f32
    %41 = vector.broadcast %cst_17 : f32 to vector<16x1xf32>
    %42 = arith.addf %38, %41 : vector<16x1xf32>
    %43 = math.rsqrt %42 : vector<16x1xf32>
    %44 = vector.broadcast %43 : vector<16x1xf32> to vector<16x32xf32>
    %45 = arith.mulf %40, %44 : vector<16x32xf32>
    %46 = vector.broadcast %24 : vector<1x32xf32> to vector<16x32xf32>
    %47 = arith.mulf %45, %46 : vector<16x32xf32>
    %48 = vector.broadcast %25 : vector<1x32xf32> to vector<16x32xf32>
    %49 = arith.addf %47, %48 : vector<16x32xf32>
    %c0_18 = arith.constant 0 : index
    %c0_19 = arith.constant 0 : index
    %50 = vector.load %arg22[%c0_18, %c0_19] : memref<32x128xf32, #tpu.memory_space<vmem>>, vector<32x128xf32>
    %c0_20 = arith.constant 0 : index
    %c0_21 = arith.constant 0 : index
    %51 = vector.load %arg24[%c0_20, %c0_21] : memref<32x256xf32, #tpu.memory_space<vmem>>, vector<32x256xf32>
    %c0_22 = arith.constant 0 : index
    %c0_23 = arith.constant 0 : index
    %52 = vector.load %arg23[%c0_22, %c0_23] : memref<128x32xbf16, #tpu.memory_space<vmem>>, vector<128x32xbf16>
    %c0_24 = arith.constant 0 : index
    %c0_25 = arith.constant 0 : index
    %53 = vector.load %arg25[%c0_24, %c0_25] : memref<256x16xbf16, #tpu.memory_space<vmem>>, vector<256x16xbf16>
    %c0_26 = arith.constant 0 : index
    %c0_27 = arith.constant 0 : index
    %54 = vector.load %arg26[%c0_26, %c0_27] : memref<32x32xf32, #tpu.memory_space<vmem>>, vector<32x32xf32>
    %55 = arith.truncf %49 : vector<16x32xf32> to vector<16x32xbf16>
    %c0_28 = arith.constant 0 : index
    %c0_29 = arith.constant 0 : index
    %c0_30 = arith.constant 0 : index
    %56 = vector.load %arg6[%c0_28, %c0_29, %c0_30] : memref<2x32x96xbf16, #tpu.memory_space<vmem>>, vector<1x32x96xbf16>
    %57 = vector.shape_cast %56 : vector<1x32x96xbf16> to vector<32x96xbf16>
    %cst_31 = arith.constant dense<0.000000e+00> : vector<16x96xf32>
    %58 = tpu.matmul %55, %57, %cst_31 {dimension_numbers = #tpu.dot_dimension_numbers<[1], [0], [0], [1], [0, 0, 1, 1], [], []>} : vector<16x32xbf16>, vector<32x96xbf16>, vector<16x96xf32> -> vector<16x96xf32>
    %c0_32 = arith.constant 0 : index
    %c0_33 = arith.constant 0 : index
    %c0_34 = arith.constant 0 : index
    %59 = vector.load %arg7[%c0_32, %c0_33, %c0_34] : memref<2x1x96xf32, #tpu.memory_space<vmem>>, vector<1x1x96xf32>
    %60 = vector.shape_cast %59 : vector<1x1x96xf32> to vector<1x96xf32>
    %61 = vector.broadcast %60 : vector<1x96xf32> to vector<16x96xf32>
    %62 = arith.addf %58, %61 : vector<16x96xf32>
    %63 = vector.extract_strided_slice %62 {offsets = [0, 0], sizes = [16, 16], strides = [1, 1]} : vector<16x96xf32> to vector<16x16xf32>
    %64 = vector.extract_strided_slice %62 {offsets = [0, 16], sizes = [16, 16], strides = [1, 1]} : vector<16x96xf32> to vector<16x16xf32>
    %65 = tpu.concatenate %63, %64 in 0 : vector<16x16xf32>, vector<16x16xf32> -> vector<32x16xf32>
    %66 = vector.extract_strided_slice %62 {offsets = [0, 32], sizes = [16, 16], strides = [1, 1]} : vector<16x96xf32> to vector<16x16xf32>
    %67 = vector.extract_strided_slice %62 {offsets = [0, 48], sizes = [16, 16], strides = [1, 1]} : vector<16x96xf32> to vector<16x16xf32>
    %68 = tpu.concatenate %66, %67 in 0 : vector<16x16xf32>, vector<16x16xf32> -> vector<32x16xf32>
    %69 = vector.extract_strided_slice %62 {offsets = [0, 64], sizes = [16, 16], strides = [1, 1]} : vector<16x96xf32> to vector<16x16xf32>
    %70 = vector.extract_strided_slice %62 {offsets = [0, 80], sizes = [16, 16], strides = [1, 1]} : vector<16x96xf32> to vector<16x16xf32>
    %71 = tpu.concatenate %69, %70 in 0 : vector<16x16xf32>, vector<16x16xf32> -> vector<32x16xf32>
    %72 = arith.truncf %65 : vector<32x16xf32> to vector<32x16xbf16>
    %73 = arith.truncf %68 : vector<32x16xf32> to vector<32x16xbf16>
    %cst_35 = arith.constant dense<0.000000e+00> : vector<32x32xf32>
    %74 = tpu.matmul %72, %73, %cst_35 {dimension_numbers = #tpu.dot_dimension_numbers<[1], [1], [0], [0], [0, 0, 1, 0], [], []>} : vector<32x16xbf16>, vector<32x16xbf16>, vector<32x32xf32> -> vector<32x32xf32>
    %75 = tpu.concatenate %65, %65, %65, %65, %65, %65, %65, %65 in 1 : vector<32x16xf32>, vector<32x16xf32>, vector<32x16xf32>, vector<32x16xf32>, vector<32x16xf32>, vector<32x16xf32>, vector<32x16xf32>, vector<32x16xf32> -> vector<32x128xf32>
    %76 = arith.mulf %75, %50 : vector<32x128xf32>
    %77 = arith.truncf %76 : vector<32x128xf32> to vector<32x128xbf16>
    %cst_36 = arith.constant dense<0.000000e+00> : vector<32x32xf32>
    %78 = tpu.matmul %77, %52, %cst_36 {dimension_numbers = #tpu.dot_dimension_numbers<[1], [0], [0], [1], [0, 0, 1, 1], [], []>} : vector<32x128xbf16>, vector<128x32xbf16>, vector<32x32xf32> -> vector<32x32xf32>
    %79 = arith.addf %74, %78 : vector<32x32xf32>
    %cst_37 = arith.constant 2.500000e-01 : f32
    %80 = vector.broadcast %cst_37 : f32 to vector<32x32xf32>
    %81 = arith.mulf %79, %80 : vector<32x32xf32>
    %82 = arith.addf %81, %54 : vector<32x32xf32>
    %cst_38 = arith.constant dense<0xFF800000> : vector<32xf32>
    %83 = vector.multi_reduction <maximumf>, %82, %cst_38 [1] : vector<32x32xf32> to vector<32xf32>
    %84 = vector.shape_cast %83 : vector<32xf32> to vector<32x1xf32>
    %85 = vector.broadcast %84 : vector<32x1xf32> to vector<32x32xf32>
    %86 = arith.subf %82, %85 : vector<32x32xf32>
    %87 = math.exp %86 : vector<32x32xf32>
    %cst_39 = arith.constant dense<0.000000e+00> : vector<32xf32>
    %88 = vector.multi_reduction <add>, %87, %cst_39 [1] : vector<32x32xf32> to vector<32xf32>
    %89 = vector.shape_cast %88 : vector<32xf32> to vector<32x1xf32>
    %90 = tpu.reciprocal %89 {approx = true} : vector<32x1xf32> -> vector<32x1xf32>
    %91 = vector.broadcast %90 : vector<32x1xf32> to vector<32x32xf32>
    %92 = arith.mulf %87, %91 : vector<32x32xf32>
    %93 = arith.truncf %92 : vector<32x32xf32> to vector<32x32xbf16>
    %94 = arith.truncf %71 : vector<32x16xf32> to vector<32x16xbf16>
    %cst_40 = arith.constant dense<0.000000e+00> : vector<32x16xf32>
    %95 = tpu.matmul %93, %94, %cst_40 {dimension_numbers = #tpu.dot_dimension_numbers<[1], [0], [0], [1], [0, 0, 1, 1], [], []>} : vector<32x32xbf16>, vector<32x16xbf16>, vector<32x16xf32> -> vector<32x16xf32>
    %96 = tpu.concatenate %92, %92, %92, %92, %92, %92, %92, %92 in 1 : vector<32x32xf32>, vector<32x32xf32>, vector<32x32xf32>, vector<32x32xf32>, vector<32x32xf32>, vector<32x32xf32>, vector<32x32xf32>, vector<32x32xf32> -> vector<32x256xf32>
    %97 = arith.mulf %96, %51 : vector<32x256xf32>
    %98 = arith.truncf %97 : vector<32x256xf32> to vector<32x256xbf16>
    %cst_41 = arith.constant dense<0.000000e+00> : vector<32x16xf32>
    %99 = tpu.matmul %98, %53, %cst_41 {dimension_numbers = #tpu.dot_dimension_numbers<[1], [0], [0], [1], [0, 0, 1, 1], [], []>} : vector<32x256xbf16>, vector<256x16xbf16>, vector<32x16xf32> -> vector<32x16xf32>
    %100 = arith.addf %95, %99 : vector<32x16xf32>
    %101 = vector.extract_strided_slice %100 {offsets = [0, 0], sizes = [16, 16], strides = [1, 1]} : vector<32x16xf32> to vector<16x16xf32>
    %102 = vector.extract_strided_slice %100 {offsets = [16, 0], sizes = [16, 16], strides = [1, 1]} : vector<32x16xf32> to vector<16x16xf32>
    %103 = tpu.concatenate %101, %102 in 1 : vector<16x16xf32>, vector<16x16xf32> -> vector<16x32xf32>
    %104 = arith.truncf %103 : vector<16x32xf32> to vector<16x32xbf16>
    %c0_42 = arith.constant 0 : index
    %c0_43 = arith.constant 0 : index
    %c0_44 = arith.constant 0 : index
    %105 = vector.load %arg8[%c0_42, %c0_43, %c0_44] : memref<2x32x32xbf16, #tpu.memory_space<vmem>>, vector<1x32x32xbf16>
    %106 = vector.shape_cast %105 : vector<1x32x32xbf16> to vector<32x32xbf16>
    %cst_45 = arith.constant dense<0.000000e+00> : vector<16x32xf32>
    %107 = tpu.matmul %104, %106, %cst_45 {dimension_numbers = #tpu.dot_dimension_numbers<[1], [0], [0], [1], [0, 0, 1, 1], [], []>} : vector<16x32xbf16>, vector<32x32xbf16>, vector<16x32xf32> -> vector<16x32xf32>
    %c0_46 = arith.constant 0 : index
    %c0_47 = arith.constant 0 : index
    %c0_48 = arith.constant 0 : index
    %108 = vector.load %arg9[%c0_46, %c0_47, %c0_48] : memref<2x1x32xf32, #tpu.memory_space<vmem>>, vector<1x1x32xf32>
    %109 = vector.shape_cast %108 : vector<1x1x32xf32> to vector<1x32xf32>
    %110 = vector.broadcast %109 : vector<1x32xf32> to vector<16x32xf32>
    %111 = arith.addf %107, %110 : vector<16x32xf32>
    %112 = arith.addf %111, %49 : vector<16x32xf32>
    %c0_49 = arith.constant 0 : index
    %c0_50 = arith.constant 0 : index
    %c0_51 = arith.constant 0 : index
    %113 = vector.load %arg10[%c0_49, %c0_50, %c0_51] : memref<2x1x32xf32, #tpu.memory_space<vmem>>, vector<1x1x32xf32>
    %114 = vector.shape_cast %113 : vector<1x1x32xf32> to vector<1x32xf32>
    %c0_52 = arith.constant 0 : index
    %c0_53 = arith.constant 0 : index
    %c0_54 = arith.constant 0 : index
    %115 = vector.load %arg11[%c0_52, %c0_53, %c0_54] : memref<2x1x32xf32, #tpu.memory_space<vmem>>, vector<1x1x32xf32>
    %116 = vector.shape_cast %115 : vector<1x1x32xf32> to vector<1x32xf32>
    %cst_55 = arith.constant dense<0.000000e+00> : vector<16xf32>
    %117 = vector.multi_reduction <add>, %112, %cst_55 [1] : vector<16x32xf32> to vector<16xf32>
    %118 = vector.shape_cast %117 : vector<16xf32> to vector<16x1xf32>
    %cst_56 = arith.constant 3.200000e+01 : f32
    %119 = vector.broadcast %cst_56 : f32 to vector<16x1xf32>
    %120 = arith.divf %118, %119 : vector<16x1xf32>
    %121 = arith.mulf %112, %112 : vector<16x32xf32>
    %cst_57 = arith.constant dense<0.000000e+00> : vector<16xf32>
    %122 = vector.multi_reduction <add>, %121, %cst_57 [1] : vector<16x32xf32> to vector<16xf32>
    %123 = vector.shape_cast %122 : vector<16xf32> to vector<16x1xf32>
    %cst_58 = arith.constant 3.200000e+01 : f32
    %124 = vector.broadcast %cst_58 : f32 to vector<16x1xf32>
    %125 = arith.divf %123, %124 : vector<16x1xf32>
    %126 = arith.mulf %120, %120 : vector<16x1xf32>
    %127 = arith.subf %125, %126 : vector<16x1xf32>
    %cst_59 = arith.constant 0.000000e+00 : f32
    %128 = vector.broadcast %cst_59 : f32 to vector<16x1xf32>
    %129 = arith.maximumf %127, %128 : vector<16x1xf32>
    %130 = vector.broadcast %120 : vector<16x1xf32> to vector<16x32xf32>
    %131 = arith.subf %112, %130 : vector<16x32xf32>
    %cst_60 = arith.constant 9.99999996E-13 : f32
    %132 = vector.broadcast %cst_60 : f32 to vector<16x1xf32>
    %133 = arith.addf %129, %132 : vector<16x1xf32>
    %134 = math.rsqrt %133 : vector<16x1xf32>
    %135 = vector.broadcast %134 : vector<16x1xf32> to vector<16x32xf32>
    %136 = arith.mulf %131, %135 : vector<16x32xf32>
    %137 = vector.broadcast %114 : vector<1x32xf32> to vector<16x32xf32>
    %138 = arith.mulf %136, %137 : vector<16x32xf32>
    %139 = vector.broadcast %116 : vector<1x32xf32> to vector<16x32xf32>
    %140 = arith.addf %138, %139 : vector<16x32xf32>
    %141 = arith.truncf %140 : vector<16x32xf32> to vector<16x32xbf16>
    %c0_61 = arith.constant 0 : index
    %c0_62 = arith.constant 0 : index
    %c0_63 = arith.constant 0 : index
    %142 = vector.load %arg12[%c0_61, %c0_62, %c0_63] : memref<2x32x64xbf16, #tpu.memory_space<vmem>>, vector<1x32x64xbf16>
    %143 = vector.shape_cast %142 : vector<1x32x64xbf16> to vector<32x64xbf16>
    %cst_64 = arith.constant dense<0.000000e+00> : vector<16x64xf32>
    %144 = tpu.matmul %141, %143, %cst_64 {dimension_numbers = #tpu.dot_dimension_numbers<[1], [0], [0], [1], [0, 0, 1, 1], [], []>} : vector<16x32xbf16>, vector<32x64xbf16>, vector<16x64xf32> -> vector<16x64xf32>
    %c0_65 = arith.constant 0 : index
    %c0_66 = arith.constant 0 : index
    %c0_67 = arith.constant 0 : index
    %145 = vector.load %arg13[%c0_65, %c0_66, %c0_67] : memref<2x1x64xf32, #tpu.memory_space<vmem>>, vector<1x1x64xf32>
    %146 = vector.shape_cast %145 : vector<1x1x64xf32> to vector<1x64xf32>
    %147 = vector.broadcast %146 : vector<1x64xf32> to vector<16x64xf32>
    %148 = arith.addf %144, %147 : vector<16x64xf32>
    %149 = arith.mulf %148, %148 : vector<16x64xf32>
    %150 = arith.mulf %148, %149 : vector<16x64xf32>
    %cst_68 = arith.constant 4.471500e-02 : f32
    %151 = vector.broadcast %cst_68 : f32 to vector<16x64xf32>
    %152 = arith.mulf %151, %150 : vector<16x64xf32>
    %153 = arith.addf %148, %152 : vector<16x64xf32>
    %cst_69 = arith.constant 0.797884583 : f32
    %154 = vector.broadcast %cst_69 : f32 to vector<16x64xf32>
    %155 = arith.mulf %154, %153 : vector<16x64xf32>
    %156 = math.tanh %155 : vector<16x64xf32>
    %cst_70 = arith.constant 1.000000e+00 : f32
    %157 = vector.broadcast %cst_70 : f32 to vector<16x64xf32>
    %158 = arith.addf %157, %156 : vector<16x64xf32>
    %cst_71 = arith.constant 5.000000e-01 : f32
    %159 = vector.broadcast %cst_71 : f32 to vector<16x64xf32>
    %160 = arith.mulf %159, %158 : vector<16x64xf32>
    %161 = arith.mulf %148, %160 : vector<16x64xf32>
    %162 = arith.truncf %161 : vector<16x64xf32> to vector<16x64xbf16>
    %c0_72 = arith.constant 0 : index
    %c0_73 = arith.constant 0 : index
    %c0_74 = arith.constant 0 : index
    %163 = vector.load %arg14[%c0_72, %c0_73, %c0_74] : memref<2x64x32xbf16, #tpu.memory_space<vmem>>, vector<1x64x32xbf16>
    %164 = vector.shape_cast %163 : vector<1x64x32xbf16> to vector<64x32xbf16>
    %cst_75 = arith.constant dense<0.000000e+00> : vector<16x32xf32>
    %165 = tpu.matmul %162, %164, %cst_75 {dimension_numbers = #tpu.dot_dimension_numbers<[1], [0], [0], [1], [0, 0, 1, 1], [], []>} : vector<16x64xbf16>, vector<64x32xbf16>, vector<16x32xf32> -> vector<16x32xf32>
    %c0_76 = arith.constant 0 : index
    %c0_77 = arith.constant 0 : index
    %c0_78 = arith.constant 0 : index
    %166 = vector.load %arg15[%c0_76, %c0_77, %c0_78] : memref<2x1x32xf32, #tpu.memory_space<vmem>>, vector<1x1x32xf32>
    %167 = vector.shape_cast %166 : vector<1x1x32xf32> to vector<1x32xf32>
    %168 = vector.broadcast %167 : vector<1x32xf32> to vector<16x32xf32>
    %169 = arith.addf %165, %168 : vector<16x32xf32>
    %170 = arith.addf %169, %140 : vector<16x32xf32>
    %c0_79 = arith.constant 0 : index
    %c0_80 = arith.constant 0 : index
    %c0_81 = arith.constant 0 : index
    %171 = vector.load %arg16[%c0_79, %c0_80, %c0_81] : memref<2x1x32xf32, #tpu.memory_space<vmem>>, vector<1x1x32xf32>
    %172 = vector.shape_cast %171 : vector<1x1x32xf32> to vector<1x32xf32>
    %c0_82 = arith.constant 0 : index
    %c0_83 = arith.constant 0 : index
    %c0_84 = arith.constant 0 : index
    %173 = vector.load %arg17[%c0_82, %c0_83, %c0_84] : memref<2x1x32xf32, #tpu.memory_space<vmem>>, vector<1x1x32xf32>
    %174 = vector.shape_cast %173 : vector<1x1x32xf32> to vector<1x32xf32>
    %cst_85 = arith.constant dense<0.000000e+00> : vector<16xf32>
    %175 = vector.multi_reduction <add>, %170, %cst_85 [1] : vector<16x32xf32> to vector<16xf32>
    %176 = vector.shape_cast %175 : vector<16xf32> to vector<16x1xf32>
    %cst_86 = arith.constant 3.200000e+01 : f32
    %177 = vector.broadcast %cst_86 : f32 to vector<16x1xf32>
    %178 = arith.divf %176, %177 : vector<16x1xf32>
    %179 = arith.mulf %170, %170 : vector<16x32xf32>
    %cst_87 = arith.constant dense<0.000000e+00> : vector<16xf32>
    %180 = vector.multi_reduction <add>, %179, %cst_87 [1] : vector<16x32xf32> to vector<16xf32>
    %181 = vector.shape_cast %180 : vector<16xf32> to vector<16x1xf32>
    %cst_88 = arith.constant 3.200000e+01 : f32
    %182 = vector.broadcast %cst_88 : f32 to vector<16x1xf32>
    %183 = arith.divf %181, %182 : vector<16x1xf32>
    %184 = arith.mulf %178, %178 : vector<16x1xf32>
    %185 = arith.subf %183, %184 : vector<16x1xf32>
    %cst_89 = arith.constant 0.000000e+00 : f32
    %186 = vector.broadcast %cst_89 : f32 to vector<16x1xf32>
    %187 = arith.maximumf %185, %186 : vector<16x1xf32>
    %188 = vector.broadcast %178 : vector<16x1xf32> to vector<16x32xf32>
    %189 = arith.subf %170, %188 : vector<16x32xf32>
    %cst_90 = arith.constant 9.99999996E-13 : f32
    %190 = vector.broadcast %cst_90 : f32 to vector<16x1xf32>
    %191 = arith.addf %187, %190 : vector<16x1xf32>
    %192 = math.rsqrt %191 : vector<16x1xf32>
    %193 = vector.broadcast %192 : vector<16x1xf32> to vector<16x32xf32>
    %194 = arith.mulf %189, %193 : vector<16x32xf32>
    %195 = vector.broadcast %172 : vector<1x32xf32> to vector<16x32xf32>
    %196 = arith.mulf %194, %195 : vector<16x32xf32>
    %197 = vector.broadcast %174 : vector<1x32xf32> to vector<16x32xf32>
    %198 = arith.addf %196, %197 : vector<16x32xf32>
    %199 = arith.truncf %198 : vector<16x32xf32> to vector<16x32xbf16>
    %c1 = arith.constant 1 : index
    %c0_91 = arith.constant 0 : index
    %c0_92 = arith.constant 0 : index
    %200 = vector.load %arg6[%c1, %c0_91, %c0_92] : memref<2x32x96xbf16, #tpu.memory_space<vmem>>, vector<1x32x96xbf16>
    %201 = vector.shape_cast %200 : vector<1x32x96xbf16> to vector<32x96xbf16>
    %cst_93 = arith.constant dense<0.000000e+00> : vector<16x96xf32>
    %202 = tpu.matmul %199, %201, %cst_93 {dimension_numbers = #tpu.dot_dimension_numbers<[1], [0], [0], [1], [0, 0, 1, 1], [], []>} : vector<16x32xbf16>, vector<32x96xbf16>, vector<16x96xf32> -> vector<16x96xf32>
    %c1_94 = arith.constant 1 : index
    %c0_95 = arith.constant 0 : index
    %c0_96 = arith.constant 0 : index
    %203 = vector.load %arg7[%c1_94, %c0_95, %c0_96] : memref<2x1x96xf32, #tpu.memory_space<vmem>>, vector<1x1x96xf32>
    %204 = vector.shape_cast %203 : vector<1x1x96xf32> to vector<1x96xf32>
    %205 = vector.broadcast %204 : vector<1x96xf32> to vector<16x96xf32>
    %206 = arith.addf %202, %205 : vector<16x96xf32>
    %207 = vector.extract_strided_slice %206 {offsets = [0, 0], sizes = [16, 16], strides = [1, 1]} : vector<16x96xf32> to vector<16x16xf32>
    %208 = vector.extract_strided_slice %206 {offsets = [0, 16], sizes = [16, 16], strides = [1, 1]} : vector<16x96xf32> to vector<16x16xf32>
    %209 = tpu.concatenate %207, %208 in 0 : vector<16x16xf32>, vector<16x16xf32> -> vector<32x16xf32>
    %210 = vector.extract_strided_slice %206 {offsets = [0, 32], sizes = [16, 16], strides = [1, 1]} : vector<16x96xf32> to vector<16x16xf32>
    %211 = vector.extract_strided_slice %206 {offsets = [0, 48], sizes = [16, 16], strides = [1, 1]} : vector<16x96xf32> to vector<16x16xf32>
    %212 = tpu.concatenate %210, %211 in 0 : vector<16x16xf32>, vector<16x16xf32> -> vector<32x16xf32>
    %213 = vector.extract_strided_slice %206 {offsets = [0, 64], sizes = [16, 16], strides = [1, 1]} : vector<16x96xf32> to vector<16x16xf32>
    %214 = vector.extract_strided_slice %206 {offsets = [0, 80], sizes = [16, 16], strides = [1, 1]} : vector<16x96xf32> to vector<16x16xf32>
    %215 = tpu.concatenate %213, %214 in 0 : vector<16x16xf32>, vector<16x16xf32> -> vector<32x16xf32>
    %216 = arith.truncf %209 : vector<32x16xf32> to vector<32x16xbf16>
    %217 = arith.truncf %212 : vector<32x16xf32> to vector<32x16xbf16>
    %cst_97 = arith.constant dense<0.000000e+00> : vector<32x32xf32>
    %218 = tpu.matmul %216, %217, %cst_97 {dimension_numbers = #tpu.dot_dimension_numbers<[1], [1], [0], [0], [0, 0, 1, 0], [], []>} : vector<32x16xbf16>, vector<32x16xbf16>, vector<32x32xf32> -> vector<32x32xf32>
    %219 = tpu.concatenate %209, %209, %209, %209, %209, %209, %209, %209 in 1 : vector<32x16xf32>, vector<32x16xf32>, vector<32x16xf32>, vector<32x16xf32>, vector<32x16xf32>, vector<32x16xf32>, vector<32x16xf32>, vector<32x16xf32> -> vector<32x128xf32>
    %220 = arith.mulf %219, %50 : vector<32x128xf32>
    %221 = arith.truncf %220 : vector<32x128xf32> to vector<32x128xbf16>
    %cst_98 = arith.constant dense<0.000000e+00> : vector<32x32xf32>
    %222 = tpu.matmul %221, %52, %cst_98 {dimension_numbers = #tpu.dot_dimension_numbers<[1], [0], [0], [1], [0, 0, 1, 1], [], []>} : vector<32x128xbf16>, vector<128x32xbf16>, vector<32x32xf32> -> vector<32x32xf32>
    %223 = arith.addf %218, %222 : vector<32x32xf32>
    %cst_99 = arith.constant 2.500000e-01 : f32
    %224 = vector.broadcast %cst_99 : f32 to vector<32x32xf32>
    %225 = arith.mulf %223, %224 : vector<32x32xf32>
    %226 = arith.addf %225, %54 : vector<32x32xf32>
    %cst_100 = arith.constant dense<0xFF800000> : vector<32xf32>
    %227 = vector.multi_reduction <maximumf>, %226, %cst_100 [1] : vector<32x32xf32> to vector<32xf32>
    %228 = vector.shape_cast %227 : vector<32xf32> to vector<32x1xf32>
    %229 = vector.broadcast %228 : vector<32x1xf32> to vector<32x32xf32>
    %230 = arith.subf %226, %229 : vector<32x32xf32>
    %231 = math.exp %230 : vector<32x32xf32>
    %cst_101 = arith.constant dense<0.000000e+00> : vector<32xf32>
    %232 = vector.multi_reduction <add>, %231, %cst_101 [1] : vector<32x32xf32> to vector<32xf32>
    %233 = vector.shape_cast %232 : vector<32xf32> to vector<32x1xf32>
    %234 = tpu.reciprocal %233 {approx = true} : vector<32x1xf32> -> vector<32x1xf32>
    %235 = vector.broadcast %234 : vector<32x1xf32> to vector<32x32xf32>
    %236 = arith.mulf %231, %235 : vector<32x32xf32>
    %237 = arith.truncf %236 : vector<32x32xf32> to vector<32x32xbf16>
    %238 = arith.truncf %215 : vector<32x16xf32> to vector<32x16xbf16>
    %cst_102 = arith.constant dense<0.000000e+00> : vector<32x16xf32>
    %239 = tpu.matmul %237, %238, %cst_102 {dimension_numbers = #tpu.dot_dimension_numbers<[1], [0], [0], [1], [0, 0, 1, 1], [], []>} : vector<32x32xbf16>, vector<32x16xbf16>, vector<32x16xf32> -> vector<32x16xf32>
    %240 = tpu.concatenate %236, %236, %236, %236, %236, %236, %236, %236 in 1 : vector<32x32xf32>, vector<32x32xf32>, vector<32x32xf32>, vector<32x32xf32>, vector<32x32xf32>, vector<32x32xf32>, vector<32x32xf32>, vector<32x32xf32> -> vector<32x256xf32>
    %241 = arith.mulf %240, %51 : vector<32x256xf32>
    %242 = arith.truncf %241 : vector<32x256xf32> to vector<32x256xbf16>
    %cst_103 = arith.constant dense<0.000000e+00> : vector<32x16xf32>
    %243 = tpu.matmul %242, %53, %cst_103 {dimension_numbers = #tpu.dot_dimension_numbers<[1], [0], [0], [1], [0, 0, 1, 1], [], []>} : vector<32x256xbf16>, vector<256x16xbf16>, vector<32x16xf32> -> vector<32x16xf32>
    %244 = arith.addf %239, %243 : vector<32x16xf32>
    %245 = vector.extract_strided_slice %244 {offsets = [0, 0], sizes = [16, 16], strides = [1, 1]} : vector<32x16xf32> to vector<16x16xf32>
    %246 = vector.extract_strided_slice %244 {offsets = [16, 0], sizes = [16, 16], strides = [1, 1]} : vector<32x16xf32> to vector<16x16xf32>
    %247 = tpu.concatenate %245, %246 in 1 : vector<16x16xf32>, vector<16x16xf32> -> vector<16x32xf32>
    %248 = arith.truncf %247 : vector<16x32xf32> to vector<16x32xbf16>
    %c1_104 = arith.constant 1 : index
    %c0_105 = arith.constant 0 : index
    %c0_106 = arith.constant 0 : index
    %249 = vector.load %arg8[%c1_104, %c0_105, %c0_106] : memref<2x32x32xbf16, #tpu.memory_space<vmem>>, vector<1x32x32xbf16>
    %250 = vector.shape_cast %249 : vector<1x32x32xbf16> to vector<32x32xbf16>
    %cst_107 = arith.constant dense<0.000000e+00> : vector<16x32xf32>
    %251 = tpu.matmul %248, %250, %cst_107 {dimension_numbers = #tpu.dot_dimension_numbers<[1], [0], [0], [1], [0, 0, 1, 1], [], []>} : vector<16x32xbf16>, vector<32x32xbf16>, vector<16x32xf32> -> vector<16x32xf32>
    %c1_108 = arith.constant 1 : index
    %c0_109 = arith.constant 0 : index
    %c0_110 = arith.constant 0 : index
    %252 = vector.load %arg9[%c1_108, %c0_109, %c0_110] : memref<2x1x32xf32, #tpu.memory_space<vmem>>, vector<1x1x32xf32>
    %253 = vector.shape_cast %252 : vector<1x1x32xf32> to vector<1x32xf32>
    %254 = vector.broadcast %253 : vector<1x32xf32> to vector<16x32xf32>
    %255 = arith.addf %251, %254 : vector<16x32xf32>
    %256 = arith.addf %255, %198 : vector<16x32xf32>
    %c1_111 = arith.constant 1 : index
    %c0_112 = arith.constant 0 : index
    %c0_113 = arith.constant 0 : index
    %257 = vector.load %arg10[%c1_111, %c0_112, %c0_113] : memref<2x1x32xf32, #tpu.memory_space<vmem>>, vector<1x1x32xf32>
    %258 = vector.shape_cast %257 : vector<1x1x32xf32> to vector<1x32xf32>
    %c1_114 = arith.constant 1 : index
    %c0_115 = arith.constant 0 : index
    %c0_116 = arith.constant 0 : index
    %259 = vector.load %arg11[%c1_114, %c0_115, %c0_116] : memref<2x1x32xf32, #tpu.memory_space<vmem>>, vector<1x1x32xf32>
    %260 = vector.shape_cast %259 : vector<1x1x32xf32> to vector<1x32xf32>
    %cst_117 = arith.constant dense<0.000000e+00> : vector<16xf32>
    %261 = vector.multi_reduction <add>, %256, %cst_117 [1] : vector<16x32xf32> to vector<16xf32>
    %262 = vector.shape_cast %261 : vector<16xf32> to vector<16x1xf32>
    %cst_118 = arith.constant 3.200000e+01 : f32
    %263 = vector.broadcast %cst_118 : f32 to vector<16x1xf32>
    %264 = arith.divf %262, %263 : vector<16x1xf32>
    %265 = arith.mulf %256, %256 : vector<16x32xf32>
    %cst_119 = arith.constant dense<0.000000e+00> : vector<16xf32>
    %266 = vector.multi_reduction <add>, %265, %cst_119 [1] : vector<16x32xf32> to vector<16xf32>
    %267 = vector.shape_cast %266 : vector<16xf32> to vector<16x1xf32>
    %cst_120 = arith.constant 3.200000e+01 : f32
    %268 = vector.broadcast %cst_120 : f32 to vector<16x1xf32>
    %269 = arith.divf %267, %268 : vector<16x1xf32>
    %270 = arith.mulf %264, %264 : vector<16x1xf32>
    %271 = arith.subf %269, %270 : vector<16x1xf32>
    %cst_121 = arith.constant 0.000000e+00 : f32
    %272 = vector.broadcast %cst_121 : f32 to vector<16x1xf32>
    %273 = arith.maximumf %271, %272 : vector<16x1xf32>
    %274 = vector.broadcast %264 : vector<16x1xf32> to vector<16x32xf32>
    %275 = arith.subf %256, %274 : vector<16x32xf32>
    %cst_122 = arith.constant 9.99999996E-13 : f32
    %276 = vector.broadcast %cst_122 : f32 to vector<16x1xf32>
    %277 = arith.addf %273, %276 : vector<16x1xf32>
    %278 = math.rsqrt %277 : vector<16x1xf32>
    %279 = vector.broadcast %278 : vector<16x1xf32> to vector<16x32xf32>
    %280 = arith.mulf %275, %279 : vector<16x32xf32>
    %281 = vector.broadcast %258 : vector<1x32xf32> to vector<16x32xf32>
    %282 = arith.mulf %280, %281 : vector<16x32xf32>
    %283 = vector.broadcast %260 : vector<1x32xf32> to vector<16x32xf32>
    %284 = arith.addf %282, %283 : vector<16x32xf32>
    %285 = arith.truncf %284 : vector<16x32xf32> to vector<16x32xbf16>
    %c1_123 = arith.constant 1 : index
    %c0_124 = arith.constant 0 : index
    %c0_125 = arith.constant 0 : index
    %286 = vector.load %arg12[%c1_123, %c0_124, %c0_125] : memref<2x32x64xbf16, #tpu.memory_space<vmem>>, vector<1x32x64xbf16>
    %287 = vector.shape_cast %286 : vector<1x32x64xbf16> to vector<32x64xbf16>
    %cst_126 = arith.constant dense<0.000000e+00> : vector<16x64xf32>
    %288 = tpu.matmul %285, %287, %cst_126 {dimension_numbers = #tpu.dot_dimension_numbers<[1], [0], [0], [1], [0, 0, 1, 1], [], []>} : vector<16x32xbf16>, vector<32x64xbf16>, vector<16x64xf32> -> vector<16x64xf32>
    %c1_127 = arith.constant 1 : index
    %c0_128 = arith.constant 0 : index
    %c0_129 = arith.constant 0 : index
    %289 = vector.load %arg13[%c1_127, %c0_128, %c0_129] : memref<2x1x64xf32, #tpu.memory_space<vmem>>, vector<1x1x64xf32>
    %290 = vector.shape_cast %289 : vector<1x1x64xf32> to vector<1x64xf32>
    %291 = vector.broadcast %290 : vector<1x64xf32> to vector<16x64xf32>
    %292 = arith.addf %288, %291 : vector<16x64xf32>
    %293 = arith.mulf %292, %292 : vector<16x64xf32>
    %294 = arith.mulf %292, %293 : vector<16x64xf32>
    %cst_130 = arith.constant 4.471500e-02 : f32
    %295 = vector.broadcast %cst_130 : f32 to vector<16x64xf32>
    %296 = arith.mulf %295, %294 : vector<16x64xf32>
    %297 = arith.addf %292, %296 : vector<16x64xf32>
    %cst_131 = arith.constant 0.797884583 : f32
    %298 = vector.broadcast %cst_131 : f32 to vector<16x64xf32>
    %299 = arith.mulf %298, %297 : vector<16x64xf32>
    %300 = math.tanh %299 : vector<16x64xf32>
    %cst_132 = arith.constant 1.000000e+00 : f32
    %301 = vector.broadcast %cst_132 : f32 to vector<16x64xf32>
    %302 = arith.addf %301, %300 : vector<16x64xf32>
    %cst_133 = arith.constant 5.000000e-01 : f32
    %303 = vector.broadcast %cst_133 : f32 to vector<16x64xf32>
    %304 = arith.mulf %303, %302 : vector<16x64xf32>
    %305 = arith.mulf %292, %304 : vector<16x64xf32>
    %306 = arith.truncf %305 : vector<16x64xf32> to vector<16x64xbf16>
    %c1_134 = arith.constant 1 : index
    %c0_135 = arith.constant 0 : index
    %c0_136 = arith.constant 0 : index
    %307 = vector.load %arg14[%c1_134, %c0_135, %c0_136] : memref<2x64x32xbf16, #tpu.memory_space<vmem>>, vector<1x64x32xbf16>
    %308 = vector.shape_cast %307 : vector<1x64x32xbf16> to vector<64x32xbf16>
    %cst_137 = arith.constant dense<0.000000e+00> : vector<16x32xf32>
    %309 = tpu.matmul %306, %308, %cst_137 {dimension_numbers = #tpu.dot_dimension_numbers<[1], [0], [0], [1], [0, 0, 1, 1], [], []>} : vector<16x64xbf16>, vector<64x32xbf16>, vector<16x32xf32> -> vector<16x32xf32>
    %c1_138 = arith.constant 1 : index
    %c0_139 = arith.constant 0 : index
    %c0_140 = arith.constant 0 : index
    %310 = vector.load %arg15[%c1_138, %c0_139, %c0_140] : memref<2x1x32xf32, #tpu.memory_space<vmem>>, vector<1x1x32xf32>
    %311 = vector.shape_cast %310 : vector<1x1x32xf32> to vector<1x32xf32>
    %312 = vector.broadcast %311 : vector<1x32xf32> to vector<16x32xf32>
    %313 = arith.addf %309, %312 : vector<16x32xf32>
    %314 = arith.addf %313, %284 : vector<16x32xf32>
    %c1_141 = arith.constant 1 : index
    %c0_142 = arith.constant 0 : index
    %c0_143 = arith.constant 0 : index
    %315 = vector.load %arg16[%c1_141, %c0_142, %c0_143] : memref<2x1x32xf32, #tpu.memory_space<vmem>>, vector<1x1x32xf32>
    %316 = vector.shape_cast %315 : vector<1x1x32xf32> to vector<1x32xf32>
    %c1_144 = arith.constant 1 : index
    %c0_145 = arith.constant 0 : index
    %c0_146 = arith.constant 0 : index
    %317 = vector.load %arg17[%c1_144, %c0_145, %c0_146] : memref<2x1x32xf32, #tpu.memory_space<vmem>>, vector<1x1x32xf32>
    %318 = vector.shape_cast %317 : vector<1x1x32xf32> to vector<1x32xf32>
    %cst_147 = arith.constant dense<0.000000e+00> : vector<16xf32>
    %319 = vector.multi_reduction <add>, %314, %cst_147 [1] : vector<16x32xf32> to vector<16xf32>
    %320 = vector.shape_cast %319 : vector<16xf32> to vector<16x1xf32>
    %cst_148 = arith.constant 3.200000e+01 : f32
    %321 = vector.broadcast %cst_148 : f32 to vector<16x1xf32>
    %322 = arith.divf %320, %321 : vector<16x1xf32>
    %323 = arith.mulf %314, %314 : vector<16x32xf32>
    %cst_149 = arith.constant dense<0.000000e+00> : vector<16xf32>
    %324 = vector.multi_reduction <add>, %323, %cst_149 [1] : vector<16x32xf32> to vector<16xf32>
    %325 = vector.shape_cast %324 : vector<16xf32> to vector<16x1xf32>
    %cst_150 = arith.constant 3.200000e+01 : f32
    %326 = vector.broadcast %cst_150 : f32 to vector<16x1xf32>
    %327 = arith.divf %325, %326 : vector<16x1xf32>
    %328 = arith.mulf %322, %322 : vector<16x1xf32>
    %329 = arith.subf %327, %328 : vector<16x1xf32>
    %cst_151 = arith.constant 0.000000e+00 : f32
    %330 = vector.broadcast %cst_151 : f32 to vector<16x1xf32>
    %331 = arith.maximumf %329, %330 : vector<16x1xf32>
    %332 = vector.broadcast %322 : vector<16x1xf32> to vector<16x32xf32>
    %333 = arith.subf %314, %332 : vector<16x32xf32>
    %cst_152 = arith.constant 9.99999996E-13 : f32
    %334 = vector.broadcast %cst_152 : f32 to vector<16x1xf32>
    %335 = arith.addf %331, %334 : vector<16x1xf32>
    %336 = math.rsqrt %335 : vector<16x1xf32>
    %337 = vector.broadcast %336 : vector<16x1xf32> to vector<16x32xf32>
    %338 = arith.mulf %333, %337 : vector<16x32xf32>
    %339 = vector.broadcast %316 : vector<1x32xf32> to vector<16x32xf32>
    %340 = arith.mulf %338, %339 : vector<16x32xf32>
    %341 = vector.broadcast %318 : vector<1x32xf32> to vector<16x32xf32>
    %342 = arith.addf %340, %341 : vector<16x32xf32>
    %343 = tpu.iota {dimensions = array<i32: 1>} : vector<2x16xi32>
    %344 = tpu.iota {dimensions = array<i32: 0>} : vector<2x16xi32>
    %c8_i32 = arith.constant 8 : i32
    %345 = vector.broadcast %c8_i32 : i32 to vector<2x16xi32>
    %346 = arith.muli %345, %344 : vector<2x16xi32>
    %347 = arith.cmpi eq, %343, %346 : vector<2x16xi32>
    %348 = arith.extui %347 : vector<2x16xi1> to vector<2x16xi32>
    %349 = arith.sitofp %348 : vector<2x16xi32> to vector<2x16xf32>
    %350 = arith.truncf %349 : vector<2x16xf32> to vector<2x16xbf16>
    %351 = arith.truncf %342 : vector<16x32xf32> to vector<16x32xbf16>
    %cst_153 = arith.constant dense<0.000000e+00> : vector<2x32xf32>
    %352 = tpu.matmul %350, %351, %cst_153 {dimension_numbers = #tpu.dot_dimension_numbers<[1], [0], [0], [1], [0, 0, 1, 1], [], []>} : vector<2x16xbf16>, vector<16x32xbf16>, vector<2x32xf32> -> vector<2x32xf32>
    %353 = arith.truncf %352 : vector<2x32xf32> to vector<2x32xbf16>
    %c0_154 = arith.constant 0 : index
    %c0_155 = arith.constant 0 : index
    %354 = vector.load %arg18[%c0_154, %c0_155] : memref<32x32xbf16, #tpu.memory_space<vmem>>, vector<32x32xbf16>
    %cst_156 = arith.constant dense<0.000000e+00> : vector<2x32xf32>
    %355 = tpu.matmul %353, %354, %cst_156 {dimension_numbers = #tpu.dot_dimension_numbers<[1], [0], [0], [1], [0, 0, 1, 1], [], []>} : vector<2x32xbf16>, vector<32x32xbf16>, vector<2x32xf32> -> vector<2x32xf32>
    %c0_157 = arith.constant 0 : index
    %c0_158 = arith.constant 0 : index
    %356 = vector.load %arg19[%c0_157, %c0_158] : memref<1x32xf32, #tpu.memory_space<vmem>>, vector<1x32xf32>
    %357 = vector.broadcast %356 : vector<1x32xf32> to vector<2x32xf32>
    %358 = arith.addf %355, %357 : vector<2x32xf32>
    %359 = math.tanh %358 : vector<2x32xf32>
    %360 = arith.truncf %359 : vector<2x32xf32> to vector<2x32xbf16>
    %c0_159 = arith.constant 0 : index
    %c0_160 = arith.constant 0 : index
    %361 = vector.load %arg20[%c0_159, %c0_160] : memref<32x2xbf16, #tpu.memory_space<vmem>>, vector<32x2xbf16>
    %cst_161 = arith.constant dense<0.000000e+00> : vector<2x2xf32>
    %362 = tpu.matmul %360, %361, %cst_161 {dimension_numbers = #tpu.dot_dimension_numbers<[1], [0], [0], [1], [0, 0, 1, 1], [], []>} : vector<2x32xbf16>, vector<32x2xbf16>, vector<2x2xf32> -> vector<2x2xf32>
    %c0_162 = arith.constant 0 : index
    %c0_163 = arith.constant 0 : index
    %363 = vector.load %arg21[%c0_162, %c0_163] : memref<1x2xf32, #tpu.memory_space<vmem>>, vector<1x2xf32>
    %364 = vector.broadcast %363 : vector<1x2xf32> to vector<2x2xf32>
    %365 = arith.addf %362, %364 : vector<2x2xf32>
    %c0_164 = arith.constant 0 : index
    %c0_165 = arith.constant 0 : index
    %366 = vector.load %arg27[%c0_164, %c0_165] : memref<2x2xf32, #tpu.memory_space<vmem>>, vector<2x2xf32>
    tpu.vector_store %arg27[%c0_164, %c0_165], %365 {strides = array<i32>} : memref<2x2xf32, #tpu.memory_space<vmem>>, vector<2x2xf32>,
    return
  }
}

</mosaic_0001>

<llo_original>
// kernel: model_forward.1
$region0: #{model_forward.1}
  #allocation0 [shape = 'u32[]', space=smem, size = 0x4, offset = 0x4, fixed_abs, tag = 'smem constant byte address 0x4 - core index']
  #allocation1 [shape = 'u32[144,128]{1,0:T(1,128)}', space=vmem, size = 0x12000, scoped, tag = 'internal scratch']
  %s0 = inlined_call_operand.vmem [shape: s32[16,1], index: 0, kind: input, shape index: {}]
  %s1 = inlined_call_operand.vmem [shape: s32[16,1], index: 1, kind: input, shape index: {}]
  %s2 = inlined_call_operand.vmem [shape: bf16[128,32], index: 2, kind: input, shape index: {}]
  %s3 = inlined_call_operand.vmem [shape: f32[2,32], index: 3, kind: input, shape index: {}]
  %s4 = inlined_call_operand.vmem [shape: f32[1,32], index: 4, kind: input, shape index: {}]
  %s5 = inlined_call_operand.vmem [shape: f32[1,32], index: 5, kind: input, shape index: {}]
  %s6 = inlined_call_operand.vmem [shape: bf16[2,32,96], index: 6, kind: input, shape index: {}]
  %s7 = inlined_call_operand.vmem [shape: f32[2,1,96], index: 7, kind: input, shape index: {}]
  %s8 = inlined_call_operand.vmem [shape: bf16[2,32,32], index: 8, kind: input, shape index: {}]
  %s9 = inlined_call_operand.vmem [shape: f32[2,1,32], index: 9, kind: input, shape index: {}]
  %s10 = inlined_call_operand.vmem [shape: f32[2,1,32], index: 10, kind: input, shape index: {}]
  %s11 = inlined_call_operand.vmem [shape: f32[2,1,32], index: 11, kind: input, shape index: {}]
  %s12 = inlined_call_operand.vmem [shape: bf16[2,32,64], index: 12, kind: input, shape index: {}]
  %s13 = inlined_call_operand.vmem [shape: f32[2,1,64], index: 13, kind: input, shape index: {}]
  %s14 = inlined_call_operand.vmem [shape: bf16[2,64,32], index: 14, kind: input, shape index: {}]
  %s15 = inlined_call_operand.vmem [shape: f32[2,1,32], index: 15, kind: input, shape index: {}]
  %s16 = inlined_call_operand.vmem [shape: f32[2,1,32], index: 16, kind: input, shape index: {}]
  %s17 = inlined_call_operand.vmem [shape: f32[2,1,32], index: 17, kind: input, shape index: {}]
  %s18 = inlined_call_operand.vmem [shape: bf16[32,32], index: 18, kind: input, shape index: {}]
  %s19 = inlined_call_operand.vmem [shape: f32[1,32], index: 19, kind: input, shape index: {}]
  %s20 = inlined_call_operand.vmem [shape: bf16[32,2], index: 20, kind: input, shape index: {}]
  %s21 = inlined_call_operand.vmem [shape: f32[1,2], index: 21, kind: input, shape index: {}]
  %s22 = inlined_call_operand.vmem [shape: f32[32,128], index: 22, kind: input, shape index: {}]
  %s23 = inlined_call_operand.vmem [shape: bf16[128,32], index: 23, kind: input, shape index: {}]
  %s24 = inlined_call_operand.vmem [shape: f32[32,256], index: 24, kind: input, shape index: {}]
  %s25 = inlined_call_operand.vmem [shape: bf16[256,16], index: 25, kind: input, shape index: {}]
  %s26 = inlined_call_operand.vmem [shape: f32[32,32], index: 26, kind: input, shape index: {}]
  %s27 = inlined_call_operand.hbm [shape: f32[2,2], index: 27, kind: output, shape index: {}]
  %s28 = sld [smem:[#allocation0]]
  $region118: #{model_forward.1} parent=0
    _
  %s30 = ssub.s32 1, %s28
  %s31 = scalar_select 0, %s30, %s28
  $region1: #{model_forward.1} parent=0
    #allocation2 [shape = 'u8[1024]{0}', space=vmem, size = 0x400, scoped, tag = 'output window, operand 0, single buffered']
    #allocation3 [shape = 's32[1]{0}', space=sflag, size = 0x4, scoped, tag = 'scoped memory for model_forward.1']
    %32 = vsyncpa [#allocation3], 0
    // Predicated region
    $region2: #{model_forward.1} parent=1 // pred_check
      _
    $region3: #{model_forward.1} parent=1 // pred_check_branch
      %34 = sbr.rel (0) target = $region5
    $region4: #{model_forward.1} parent=1 // pred_region
      _
    $region5: #{model_forward.1} parent=1 // pred_fallthru
      _
    // Predicated region
    $region6: #{model_forward.1} parent=1 // pred_check
      _
    $region7: #{model_forward.1} parent=1 // pred_check_branch
      %36 = sbr.rel (0) target = $region9
    $region8: #{model_forward.1} parent=1 // pred_region
      _
    $region9: #{model_forward.1} parent=1 // pred_fallthru
      _
    // Predicated region
    $region10: #{model_forward.1} parent=1 // pred_check
      _
    $region11: #{model_forward.1} parent=1 // pred_check_branch
      %38 = sbr.rel (0) target = $region13
    $region12: #{model_forward.1} parent=1 // pred_region
      _
    $region13: #{model_forward.1} parent=1 // pred_fallthru
      _
    // Predicated region
    $region14: #{model_forward.1} parent=1 // pred_check
      _
    $region15: #{model_forward.1} parent=1 // pred_check_branch
      %40 = sbr.rel (0) target = $region17
    $region16: #{model_forward.1} parent=1 // pred_region
      _
    $region17: #{model_forward.1} parent=1 // pred_fallthru
      _
    // Predicated region
    $region18: #{model_forward.1} parent=1 // pred_check
      _
    $region19: #{model_forward.1} parent=1 // pred_check_branch
      %42 = sbr.rel (0) target = $region21
    $region20: #{model_forward.1} parent=1 // pred_region
      _
    $region21: #{model_forward.1} parent=1 // pred_fallthru
      _
    // Predicated region
    $region22: #{model_forward.1} parent=1 // pred_check
      _
    $region23: #{model_forward.1} parent=1 // pred_check_branch
      %44 = sbr.rel (0) target = $region25
    $region24: #{model_forward.1} parent=1 // pred_region
      _
    $region25: #{model_forward.1} parent=1 // pred_fallthru
      _
    // Predicated region
    $region26: #{model_forward.1} parent=1 // pred_check
      _
    $region27: #{model_forward.1} parent=1 // pred_check_branch
      %46 = sbr.rel (0) target = $region29
    $region28: #{model_forward.1} parent=1 // pred_region
      _
    $region29: #{model_forward.1} parent=1 // pred_fallthru
      _
    // Predicated region
    $region30: #{model_forward.1} parent=1 // pred_check
      _
    $region31: #{model_forward.1} parent=1 // pred_check_branch
      %48 = sbr.rel (0) target = $region33
    $region32: #{model_forward.1} parent=1 // pred_region
      _
    $region33: #{model_forward.1} parent=1 // pred_fallthru
      _
    // Predicated region
    $region34: #{model_forward.1} parent=1 // pred_check
      _
    $region35: #{model_forward.1} parent=1 // pred_check_branch
      %50 = sbr.rel (0) target = $region37
    $region36: #{model_forward.1} parent=1 // pred_region
      _
    $region37: #{model_forward.1} parent=1 // pred_fallthru
      _
    // Predicated region
    $region38: #{model_forward.1} parent=1 // pred_check
      _
    $region39: #{model_forward.1} parent=1 // pred_check_branch
      %52 = sbr.rel (0) target = $region41
    $region40: #{model_forward.1} parent=1 // pred_region
      _
    $region41: #{model_forward.1} parent=1 // pred_fallthru
      _
    // Predicated region
    $region42: #{model_forward.1} parent=1 // pred_check
      _
    $region43: #{model_forward.1} parent=1 // pred_check_branch
      %54 = sbr.rel (0) target = $region45
    $region44: #{model_forward.1} parent=1 // pred_region
      _
    $region45: #{model_forward.1} parent=1 // pred_fallthru
      _
    // Predicated region
    $region46: #{model_forward.1} parent=1 // pred_check
      _
    $region47: #{model_forward.1} parent=1 // pred_check_branch
      %56 = sbr.rel (0) target = $region49
    $region48: #{model_forward.1} parent=1 // pred_region
      _
    $region49: #{model_forward.1} parent=1 // pred_fallthru
      _
    // Predicated region
    $region50: #{model_forward.1} parent=1 // pred_check
      _
    $region51: #{model_forward.1} parent=1 // pred_check_branch
      %58 = sbr.rel (0) target = $region53
    $region52: #{model_forward.1} parent=1 // pred_region
      _
    $region53: #{model_forward.1} parent=1 // pred_fallthru
      _
    // Predicated region
    $region54: #{model_forward.1} parent=1 // pred_check
      _
    $region55: #{model_forward.1} parent=1 // pred_check_branch
      %60 = sbr.rel (0) target = $region57
    $region56: #{model_forward.1} parent=1 // pred_region
      _
    $region57: #{model_forward.1} parent=1 // pred_fallthru
      _
    // Predicated region
    $region58: #{model_forward.1} parent=1 // pred_check
      _
    $region59: #{model_forward.1} parent=1 // pred_check_branch
      %62 = sbr.rel (0) target = $region61
    $region60: #{model_forward.1} parent=1 // pred_region
      _
    $region61: #{model_forward.1} parent=1 // pred_fallthru
      _
    // Predicated region
    $region62: #{model_forward.1} parent=1 // pred_check
      _
    $region63: #{model_forward.1} parent=1 // pred_check_branch
      %64 = sbr.rel (0) target = $region65
    $region64: #{model_forward.1} parent=1 // pred_region
      _
    $region65: #{model_forward.1} parent=1 // pred_fallthru
      _
    // Predicated region
    $region66: #{model_forward.1} parent=1 // pred_check
      _
    $region67: #{model_forward.1} parent=1 // pred_check_branch
      %66 = sbr.rel (0) target = $region69
    $region68: #{model_forward.1} parent=1 // pred_region
      _
    $region69: #{model_forward.1} parent=1 // pred_fallthru
      _
    // Predicated region
    $region70: #{model_forward.1} parent=1 // pred_check
      _
    $region71: #{model_forward.1} parent=1 // pred_check_branch
      %68 = sbr.rel (0) target = $region73
    $region72: #{model_forward.1} parent=1 // pred_region
      _
    $region73: #{model_forward.1} parent=1 // pred_fallthru
      _
    // Predicated region
    $region74: #{model_forward.1} parent=1 // pred_check
      _
    $region75: #{model_forward.1} parent=1 // pred_check_branch
      %70 = sbr.rel (0) target = $region77
    $region76: #{model_forward.1} parent=1 // pred_region
      _
    $region77: #{model_forward.1} parent=1 // pred_fallthru
      _
    // Predicated region
    $region78: #{model_forward.1} parent=1 // pred_check
      _
    $region79: #{model_forward.1} parent=1 // pred_check_branch
      %72 = sbr.rel (0) target = $region81
    $region80: #{model_forward.1} parent=1 // pred_region
      _
    $region81: #{model_forward.1} parent=1 // pred_fallthru
      _
    // Predicated region
    $region82: #{model_forward.1} parent=1 // pred_check
      _
    $region83: #{model_forward.1} parent=1 // pred_check_branch
      %74 = sbr.rel (0) target = $region85
    $region84: #{model_forward.1} parent=1 // pred_region
      _
    $region85: #{model_forward.1} parent=1 // pred_fallthru
      _
    // Predicated region
    $region86: #{model_forward.1} parent=1 // pred_check
      _
    $region87: #{model_forward.1} parent=1 // pred_check_branch
      %76 = sbr.rel (0) target = $region89
    $region88: #{model_forward.1} parent=1 // pred_region
      _
    $region89: #{model_forward.1} parent=1 // pred_fallthru
      _
    // Predicated region
    $region90: #{model_forward.1} parent=1 // pred_check
      _
    $region91: #{model_forward.1} parent=1 // pred_check_branch
      %78 = sbr.rel (0) target = $region93
    $region92: #{model_forward.1} parent=1 // pred_region
      _
    $region93: #{model_forward.1} parent=1 // pred_fallthru
      _
    // Predicated region
    $region94: #{model_forward.1} parent=1 // pred_check
      _
    $region95: #{model_forward.1} parent=1 // pred_check_branch
      %80 = sbr.rel (0) target = $region97
    $region96: #{model_forward.1} parent=1 // pred_region
      _
    $region97: #{model_forward.1} parent=1 // pred_fallthru
      _
    // Predicated region
    $region98: #{model_forward.1} parent=1 // pred_check
      _
    $region99: #{model_forward.1} parent=1 // pred_check_branch
      %82 = sbr.rel (0) target = $region101
    $region100: #{model_forward.1} parent=1 // pred_region
      _
    $region101: #{model_forward.1} parent=1 // pred_fallthru
      _
    // Predicated region
    $region102: #{model_forward.1} parent=1 // pred_check
      _
    $region103: #{model_forward.1} parent=1 // pred_check_branch
      %84 = sbr.rel (0) target = $region105
    $region104: #{model_forward.1} parent=1 // pred_region
      _
    $region105: #{model_forward.1} parent=1 // pred_fallthru
      _
    // Predicated region
    $region106: #{model_forward.1} parent=1 // pred_check
      _
    $region107: #{model_forward.1} parent=1 // pred_check_branch
      %86 = sbr.rel (0) target = $region109
    $region108: #{model_forward.1} parent=1 // pred_region
      _
    $region109: #{model_forward.1} parent=1 // pred_fallthru
      _
    %v88 = vld [vmem:[%s0] sm:$0xff]
    %v89 = vld [vmem:[%s0 + $0x8] sm:$0xff]
    %v90 = vlaneseq
    %v91 = vand.u32 %v90, 127
    %92 = vset.pattern.permute.xlu0 0
    %93 = vperm.xlu0 %92, %v88
    %v94 = vpop.permute.xlu0 %93
    %95 = vset.pattern.permute.xlu0 0
    %96 = vperm.xlu0 %95, %v89
    %v97 = vpop.permute.xlu0 %96
    %vm98 = vcmp.eq.s32.totalorder %v91, %v94
    %vm99 = vcmp.eq.s32.totalorder %v91, %v97
    %v100 = vsel %vm98, 1, 0
    %v101 = vsel %vm99, 1, 0
    %v102 = vcvt.s32.f32 %v100
    %v103 = vcvt.s32.f32 %v101
    %v104 = vpack.c.bf16 %v103, %v102
    %v105 = vld [vmem:[%s2] sm:$0xf]
    %v106 = vld [vmem:[%s2 + $0x4] sm:$0xf]
    %v107 = vld [vmem:[%s2 + $0x8] sm:$0xf]
    %v108 = vld [vmem:[%s2 + $0xc] sm:$0xf]
    %v109 = vld [vmem:[%s2 + $0x10] sm:$0xf]
    %v110 = vld [vmem:[%s2 + $0x14] sm:$0xf]
    %v111 = vld [vmem:[%s2 + $0x18] sm:$0xf]
    %v112 = vld [vmem:[%s2 + $0x1c] sm:$0xf]
    %v113 = vld [vmem:[%s2 + $0x20] sm:$0xf]
    %v114 = vld [vmem:[%s2 + $0x24] sm:$0xf]
    %v115 = vld [vmem:[%s2 + $0x28] sm:$0xf]
    %v116 = vld [vmem:[%s2 + $0x2c] sm:$0xf]
    %v117 = vld [vmem:[%s2 + $0x30] sm:$0xf]
    %v118 = vld [vmem:[%s2 + $0x34] sm:$0xf]
    %v119 = vld [vmem:[%s2 + $0x38] sm:$0xf]
    %v120 = vld [vmem:[%s2 + $0x3c] sm:$0xf]
    %v121 = vld [vmem:[%s1] sm:$0xff]
    %v122 = vld [vmem:[%s1 + $0x8] sm:$0xff]
    %v123 = vcvt.s32.f32 %v121
    %v124 = vcvt.s32.f32 %v122
    %v125 = vld [vmem:[%s3] sm:$0x3]
    %v126 = vsub.f32 1.0, %v123
    %v127 = vsub.f32 1.0, %v124
    %v128 = vlaneseq
    %v129 = vshrl.u32 %v128, 7
    %v130 = vsub.s32 0, %v129
    %v131 = vrot.slane %v125, %v130
    %133 = vset.pattern.permute.xlu0 0
    %134 = vperm.xlu0 %133, %v126
    %v135 = vpop.permute.xlu0 %134
    %138 = vset.pattern.permute.xlu0 0
    %139 = vperm.xlu0 %138, %v127
    %v140 = vpop.permute.xlu0 %139
    %v142 = vmul.f32 %v131, %v135
    %v143 = vmul.f32 %v131, %v140
    %v160 = vunpack.c.l.b16 %v105
    %v161 = vunpack.c.l.b16 %v106
    %v162 = vunpack.c.l.b16 %v107
    %v163 = vunpack.c.l.b16 %v108
    %v164 = vunpack.c.l.b16 %v109
    %v165 = vunpack.c.l.b16 %v110
    %v166 = vunpack.c.l.b16 %v111
    %v167 = vunpack.c.l.b16 %v112
    %v168 = vunpack.c.l.b16 %v113
    %v169 = vunpack.c.l.b16 %v114
    %v170 = vunpack.c.l.b16 %v115
    %v171 = vunpack.c.l.b16 %v116
    %v172 = vunpack.c.l.b16 %v117
    %v173 = vunpack.c.l.b16 %v118
    %v174 = vunpack.c.l.b16 %v119
    %v175 = vunpack.c.l.b16 %v120
    %v176 = vpack.c.b16 %v161, %v160
    %v177 = vpack.c.b16 %v163, %v162
    %v178 = vpack.c.b16 %v165, %v164
    %v179 = vpack.c.b16 %v167, %v166
    %v180 = vpack.c.b16 %v169, %v168
    %v181 = vpack.c.b16 %v171, %v170
    %v182 = vpack.c.b16 %v173, %v172
    %v183 = vpack.c.b16 %v175, %v174
    %192 = vmatprep.subr.bf16.mxu0 0
    %193 = vmatpush1.bf16.msra.mxu0 %v176
    %194 = vmatprep.subr.bf16.mxu0 0
    %195 = vmatpush1.bf16.msra.mxu0 %v177
    %196 = vmatprep.subr.bf16.mxu0 0
    %197 = vmatpush1.bf16.msra.mxu0 %v178
    %198 = vmatprep.subr.bf16.mxu0 0
    %199 = vmatpush1.bf16.msra.mxu0 %v179
    %200 = vmatprep.subr.bf16.mxu0 0
    %201 = vmatpush1.bf16.msra.mxu0 %v180
    %202 = vmatprep.subr.bf16.mxu0 0
    %203 = vmatpush1.bf16.msra.mxu0 %v181
    %204 = vmatprep.subr.bf16.mxu0 0
    %205 = vmatpush1.bf16.msra.mxu0 %v182
    %206 = vmatprep.subr.bf16.mxu0 0
    %207 = vmatpush1.bf16.msra.mxu0 %v183
    %208 = vmatprep.subr.bf16.mxu0 0
    %209 = vmatpush1.bf16.msra.mxu0 0
    %210 = vmatprep.subr.bf16.mxu0 0
    %211 = vmatpush1.bf16.msra.mxu0 0
    %212 = vmatprep.subr.bf16.mxu0 0
    %213 = vmatpush1.bf16.msra.mxu0 0
    %214 = vmatprep.subr.bf16.mxu0 0
    %215 = vmatpush1.bf16.msra.mxu0 0
    %216 = vmatprep.subr.bf16.mxu0 0
    %217 = vmatpush1.bf16.msra.mxu0 0
    %218 = vmatprep.subr.bf16.mxu0 0
    %219 = vmatpush1.bf16.msra.mxu0 0
    %220 = vmatprep.subr.bf16.mxu0 0
    %221 = vmatpush1.bf16.msra.mxu0 0
    %222 = vmatprep.subr.bf16.mxu0 0
    %223 = vmatpush1.bf16.msra.mxu0 0
    %224 = vmatprep.mubr.bf16.mxu0 0
    %225 = vmatmul.mubr.bf16.gmra.mrb[0].mxu0 %v104
    %v226 = vpop.f32.mrb[0].mxu0
    %v227 = vadd.f32 %v142, %v226
    %v228 = vpop.f32.mrb[0].mxu0
    %v229 = vpop.f32.mrb[0].mxu0
    %v230 = vadd.f32 %v143, %v229
    %v231 = vpop.f32.mrb[0].mxu0
    %232 = vdwg.mxu0
    %v233 = vlaneseq
    %v234 = vshrl.u32 %v233, 7
    %v235 = vsub.s32 1, %v234
    %v236 = vrot.slane %v125, %v235
    %238 = vset.pattern.permute.xlu0 0
    %239 = vperm.xlu0 %238, %v123
    %v240 = vpop.permute.xlu0 %239
    %243 = vset.pattern.permute.xlu0 0
    %244 = vperm.xlu0 %243, %v124
    %v245 = vpop.permute.xlu0 %244
    %v247 = vmul.f32 %v236, %v240
    %v248 = vmul.f32 %v236, %v245
    %v249 = vadd.f32 %v227, %v247
    %v250 = vadd.f32 %v230, %v248
    %v251 = vld [vmem:[%s4] sm:$0x1]
    %v252 = vld [vmem:[%s5] sm:$0x1]
    %vm253 = vcmask 261120
    %v254 = vsel %vm253, %v249, 0.0
    %255 = vadd.xlane.f32.xlu0 %v254
    %v256 = vpop.xlane.xlu0 %255
    %v257 = vsel %vm253, %v250, 0.0
    %258 = vadd.xlane.f32.xlu0 %v257
    %v259 = vpop.xlane.xlu0 %258
    %v260 = vrcp.pop 32.0
    %v261 = vmul.f32 %v256, %v260
    %v262 = vmul.f32 %v259, %v260
    %v263 = vmul.f32 %v249, %v249
    %v264 = vmul.f32 %v250, %v250
    %v265 = vsel %vm253, %v263, 0.0
    %266 = vadd.xlane.f32.xlu0 %v265
    %v267 = vpop.xlane.xlu0 %266
    %v268 = vsel %vm253, %v264, 0.0
    %269 = vadd.xlane.f32.xlu0 %v268
    %v270 = vpop.xlane.xlu0 %269
    %v271 = vmul.f32 %v267, %v260
    %v272 = vmul.f32 %v270, %v260
    %v273 = vmul.f32 %v261, %v261
    %v274 = vmul.f32 %v262, %v262
    %v275 = vsub.f32 %v271, %v273
    %v276 = vsub.f32 %v272, %v274
    %v277 = vmax.f32 %v275, 0.0
    %v278 = vmax.f32 %v276, 0.0
    %v279 = vsub.f32 %v249, %v261
    %v280 = vsub.f32 %v250, %v262
    %v281 = vadd.f32 %v277, 1e-12
    %v282 = vadd.f32 %v278, 1e-12
    %v283 = vrsqrt.pop %v281
    %v284 = vrsqrt.pop %v282
    %v285 = vmul.f32 %v279, %v283
    %v286 = vmul.f32 %v280, %v284
    %v288 = vlaneseq
    %v289 = vshrl.u32 %v288, 7
    %v290 = vsub.s32 0, %v289
    %v291 = vrot.slane %v251, %v290
    %v293 = vmul.f32 %v285, %v291
    %v294 = vmul.f32 %v286, %v291
    %v296 = vlaneseq
    %v297 = vshrl.u32 %v296, 7
    %v298 = vsub.s32 0, %v297
    %v299 = vrot.slane %v252, %v298
    %v301 = vadd.f32 %v293, %v299
    %v302 = vadd.f32 %v294, %v299
    %v303 = vld [vmem:[%s22] sm:$0xff]
    %v304 = vld [vmem:[%s22 + $0x8] sm:$0xff]
    %v305 = vld [vmem:[%s22 + $0x10] sm:$0xff]
    %v306 = vld [vmem:[%s22 + $0x18] sm:$0xff]
    %v307 = vld [vmem:[%s24] sm:$0xff]
    %v308 = vld [vmem:[%s24 + $0x8] sm:$0xff]
    %v309 = vld [vmem:[%s24 + $0x10] sm:$0xff]
    %v310 = vld [vmem:[%s24 + $0x18] sm:$0xff]
    %v311 = vld [vmem:[%s24 + $0x20] sm:$0xff]
    %v312 = vld [vmem:[%s24 + $0x28] sm:$0xff]
    %v313 = vld [vmem:[%s24 + $0x30] sm:$0xff]
    %v314 = vld [vmem:[%s24 + $0x38] sm:$0xff]
    %v315 = vld [vmem:[%s23] sm:$0xf]
    %v316 = vld [vmem:[%s23 + $0x4] sm:$0xf]
    %v317 = vld [vmem:[%s23 + $0x8] sm:$0xf]
    %v318 = vld [vmem:[%s23 + $0xc] sm:$0xf]
    %v319 = vld [vmem:[%s23 + $0x10] sm:$0xf]
    %v320 = vld [vmem:[%s23 + $0x14] sm:$0xf]
    %v321 = vld [vmem:[%s23 + $0x18] sm:$0xf]
    %v322 = vld [vmem:[%s23 + $0x1c] sm:$0xf]
    %v323 = vld [vmem:[%s23 + $0x20] sm:$0xf]
    %v324 = vld [vmem:[%s23 + $0x24] sm:$0xf]
    %v325 = vld [vmem:[%s23 + $0x28] sm:$0xf]
    %v326 = vld [vmem:[%s23 + $0x2c] sm:$0xf]
    %v327 = vld [vmem:[%s23 + $0x30] sm:$0xf]
    %v328 = vld [vmem:[%s23 + $0x34] sm:$0xf]
    %v329 = vld [vmem:[%s23 + $0x38] sm:$0xf]
    %v330 = vld [vmem:[%s23 + $0x3c] sm:$0xf]
    %v331 = vld [vmem:[%s25] sm:$0xf]
    %v332 = vld [vmem:[%s25 + $0x4] sm:$0xf]
    %v333 = vld [vmem:[%s25 + $0x8] sm:$0xf]
    %v334 = vld [vmem:[%s25 + $0xc] sm:$0xf]
    %v335 = vld [vmem:[%s25 + $0x10] sm:$0xf]
    %v336 = vld [vmem:[%s25 + $0x14] sm:$0xf]
    %v337 = vld [vmem:[%s25 + $0x18] sm:$0xf]
    %v338 = vld [vmem:[%s25 + $0x1c] sm:$0xf]
    %v339 = vld [vmem:[%s25 + $0x20] sm:$0xf]
    %v340 = vld [vmem:[%s25 + $0x24] sm:$0xf]
    %v341 = vld [vmem:[%s25 + $0x28] sm:$0xf]
    %v342 = vld [vmem:[%s25 + $0x2c] sm:$0xf]
    %v343 = vld [vmem:[%s25 + $0x30] sm:$0xf]
    %v344 = vld [vmem:[%s25 + $0x34] sm:$0xf]
    %v345 = vld [vmem:[%s25 + $0x38] sm:$0xf]
    %v346 = vld [vmem:[%s25 + $0x3c] sm:$0xf]
    %v347 = vld [vmem:[%s25 + $0x40] sm:$0xf]
    %v348 = vld [vmem:[%s25 + $0x44] sm:$0xf]
    %v349 = vld [vmem:[%s25 + $0x48] sm:$0xf]
    %v350 = vld [vmem:[%s25 + $0x4c] sm:$0xf]
    %v351 = vld [vmem:[%s25 + $0x50] sm:$0xf]
    %v352 = vld [vmem:[%s25 + $0x54] sm:$0xf]
    %v353 = vld [vmem:[%s25 + $0x58] sm:$0xf]
    %v354 = vld [vmem:[%s25 + $0x5c] sm:$0xf]
    %v355 = vld [vmem:[%s25 + $0x60] sm:$0xf]
    %v356 = vld [vmem:[%s25 + $0x64] sm:$0xf]
    %v357 = vld [vmem:[%s25 + $0x68] sm:$0xf]
    %v358 = vld [vmem:[%s25 + $0x6c] sm:$0xf]
    %v359 = vld [vmem:[%s25 + $0x70] sm:$0xf]
    %v360 = vld [vmem:[%s25 + $0x74] sm:$0xf]
    %v361 = vld [vmem:[%s25 + $0x78] sm:$0xf]
    %v362 = vld [vmem:[%s25 + $0x7c] sm:$0xf]
    %v363 = vld [vmem:[%s26] sm:$0xff]
    %v364 = vld [vmem:[%s26 + $0x8] sm:$0xff]
    %v365 = vld [vmem:[%s26 + $0x10] sm:$0xff]
    %v366 = vld [vmem:[%s26 + $0x18] sm:$0xff]
    %v367 = vpack.c.bf16 %v302, %v301
    %v368 = vld [vmem:[%s6] sm:$0xf]
    %v369 = vld [vmem:[%s6 + $0x4] sm:$0xf]
    %v370 = vld [vmem:[%s6 + $0x8] sm:$0xf]
    %v371 = vld [vmem:[%s6 + $0xc] sm:$0xf]
    %v372 = vld [vmem:[%s7] sm:$0x1]
    %v374 = vlaneseq
    %v375 = vshrl.u32 %v374, 7
    %v376 = vsub.s32 0, %v375
    %v377 = vrot.slane %v372, %v376
    %v383 = vunpack.c.l.b16 %v368
    %v384 = vunpack.c.l.b16 %v369
    %v385 = vunpack.c.l.b16 %v370
    %v386 = vunpack.c.l.b16 %v371
    %v387 = vpack.c.b16 %v384, %v383
    %v388 = vpack.c.b16 %v386, %v385
    %v392 = vsel %vm253, %v367, 0
    %394 = vmatprep.subr.bf16.mxu0 0
    %395 = vmatpush1.bf16.msra.mxu0 %v387
    %396 = vmatprep.subr.bf16.mxu0 0
    %397 = vmatpush1.bf16.msra.mxu0 %v388
    %398 = vmatprep.subr.bf16.mxu0 0
    %399 = vmatpush1.bf16.msra.mxu0 0
    %400 = vmatprep.subr.bf16.mxu0 0
    %401 = vmatpush1.bf16.msra.mxu0 0
    %402 = vmatprep.subr.bf16.mxu0 0
    %403 = vmatpush1.bf16.msra.mxu0 0
    %404 = vmatprep.subr.bf16.mxu0 0
    %405 = vmatpush1.bf16.msra.mxu0 0
    %406 = vmatprep.subr.bf16.mxu0 0
    %407 = vmatpush1.bf16.msra.mxu0 0
    %408 = vmatprep.subr.bf16.mxu0 0
    %409 = vmatpush1.bf16.msra.mxu0 0
    %410 = vmatprep.subr.bf16.mxu0 0
    %411 = vmatpush1.bf16.msra.mxu0 0
    %412 = vmatprep.subr.bf16.mxu0 0
    %413 = vmatpush1.bf16.msra.mxu0 0
    %414 = vmatprep.subr.bf16.mxu0 0
    %415 = vmatpush1.bf16.msra.mxu0 0
    %416 = vmatprep.subr.bf16.mxu0 0
    %417 = vmatpush1.bf16.msra.mxu0 0
    %418 = vmatprep.subr.bf16.mxu0 0
    %419 = vmatpush1.bf16.msra.mxu0 0
    %420 = vmatprep.subr.bf16.mxu0 0
    %421 = vmatpush1.bf16.msra.mxu0 0
    %422 = vmatprep.subr.bf16.mxu0 0
    %423 = vmatpush1.bf16.msra.mxu0 0
    %424 = vmatprep.subr.bf16.mxu0 0
    %425 = vmatpush1.bf16.msra.mxu0 0
    %426 = vmatprep.mubr.bf16.mxu0 0
    %427 = vmatmul.mubr.bf16.gmra.mrb[0].mxu0 %v392
    %v428 = vpop.f32.mrb[0].mxu0
    %v429 = vadd.f32 %v377, %v428
    %v430 = vpop.f32.mrb[0].mxu0
    %v431 = vpop.f32.mrb[0].mxu0
    %v432 = vadd.f32 %v377, %v431
    %v433 = vpop.f32.mrb[0].mxu0
    %434 = vdwg.mxu0
    %437 = vrot.lane.b32.xlu0 %v429, 112
    %v438 = vpop.permute.xlu0 %437
    %439 = vrot.lane.b32.xlu0 %v432, 112
    %v440 = vpop.permute.xlu0 %439
    %v443 = vpack.c.bf16 %v432, %v429
    %v444 = vpack.c.bf16 %v440, %v438
    %445 = vrot.lane.b32.xlu0 %v429, 16
    %v446 = vpop.permute.xlu0 %445
    %447 = vrot.lane.b32.xlu0 %v432, 16
    %v448 = vpop.permute.xlu0 %447
    %449 = vrot.lane.b32.xlu0 %v438, 16
    %v450 = vpop.permute.xlu0 %449
    %451 = vrot.lane.b32.xlu0 %v440, 16
    %v452 = vpop.permute.xlu0 %451
    %457 = vrot.lane.b32.xlu0 %v429, 32
    %v458 = vpop.permute.xlu0 %457
    %459 = vrot.lane.b32.xlu0 %v432, 32
    %v460 = vpop.permute.xlu0 %459
    %461 = vrot.lane.b32.xlu0 %v438, 32
    %v462 = vpop.permute.xlu0 %461
    %463 = vrot.lane.b32.xlu0 %v440, 32
    %v464 = vpop.permute.xlu0 %463
    %469 = vrot.lane.b32.xlu0 %v429, 48
    %v470 = vpop.permute.xlu0 %469
    %471 = vrot.lane.b32.xlu0 %v432, 48
    %v472 = vpop.permute.xlu0 %471
    %473 = vrot.lane.b32.xlu0 %v438, 48
    %v474 = vpop.permute.xlu0 %473
    %475 = vrot.lane.b32.xlu0 %v440, 48
    %v476 = vpop.permute.xlu0 %475
    %481 = vrot.lane.b32.xlu0 %v429, 64
    %v482 = vpop.permute.xlu0 %481
    %483 = vrot.lane.b32.xlu0 %v432, 64
    %v484 = vpop.permute.xlu0 %483
    %485 = vrot.lane.b32.xlu0 %v438, 64
    %v486 = vpop.permute.xlu0 %485
    %487 = vrot.lane.b32.xlu0 %v440, 64
    %v488 = vpop.permute.xlu0 %487
    %493 = vrot.lane.b32.xlu0 %v429, 80
    %v494 = vpop.permute.xlu0 %493
    %495 = vrot.lane.b32.xlu0 %v432, 80
    %v496 = vpop.permute.xlu0 %495
    %497 = vrot.lane.b32.xlu0 %v438, 80
    %v498 = vpop.permute.xlu0 %497
    %499 = vrot.lane.b32.xlu0 %v440, 80
    %v500 = vpop.permute.xlu0 %499
    %505 = vrot.lane.b32.xlu0 %v429, 96
    %v506 = vpop.permute.xlu0 %505
    %507 = vrot.lane.b32.xlu0 %v432, 96
    %v508 = vpop.permute.xlu0 %507
    %509 = vrot.lane.b32.xlu0 %v438, 96
    %v510 = vpop.permute.xlu0 %509
    %511 = vrot.lane.b32.xlu0 %v440, 96
    %v512 = vpop.permute.xlu0 %511
    %517 = vrot.lane.b32.xlu0 %v438, 112
    %v518 = vpop.permute.xlu0 %517
    %519 = vrot.lane.b32.xlu0 %v440, 112
    %v520 = vpop.permute.xlu0 %519
    %vm523 = vcmask 130048
    %v524 = vsel %vm523, %v429, %v446
    %v525 = vsel %vm523, %v432, %v448
    %v526 = vsel %vm523, %v438, %v450
    %v527 = vsel %vm523, %v440, %v452
    %v528 = vsel %vm253, %v524, %v458
    %v529 = vsel %vm253, %v525, %v460
    %v530 = vsel %vm253, %v526, %v462
    %v531 = vsel %vm253, %v527, %v464
    %vm532 = vcmask 392192
    %v533 = vsel %vm532, %v528, %v470
    %v534 = vsel %vm532, %v529, %v472
    %v535 = vsel %vm532, %v530, %v474
    %v536 = vsel %vm532, %v531, %v476
    %vm537 = vcmask 523264
    %v538 = vsel %vm537, %v533, %v482
    %v539 = vsel %vm537, %v534, %v484
    %v540 = vsel %vm537, %v535, %v486
    %v541 = vsel %vm537, %v536, %v488
    %vm542 = vcmask 654336
    %v543 = vsel %vm542, %v538, %v494
    %v544 = vsel %vm542, %v539, %v496
    %v545 = vsel %vm542, %v540, %v498
    %v546 = vsel %vm542, %v541, %v500
    %vm547 = vcmask 785408
    %v548 = vsel %vm547, %v543, %v506
    %v549 = vsel %vm547, %v544, %v508
    %v550 = vsel %vm547, %v545, %v510
    %v551 = vsel %vm547, %v546, %v512
    %vm552 = vcmask 916480
    %v553 = vsel %vm552, %v548, %v438
    %v554 = vsel %vm552, %v549, %v440
    %v555 = vsel %vm552, %v550, %v518
    %v556 = vsel %vm552, %v551, %v520
    %v557 = vmul.f32 %v553, %v303
    %v558 = vmul.f32 %v554, %v304
    %v559 = vmul.f32 %v555, %v305
    %v560 = vmul.f32 %v556, %v306
    %v561 = vpack.c.bf16 %v558, %v557
    %v562 = vpack.c.bf16 %v560, %v559
    %v579 = vunpack.c.l.b16 %v315
    %v580 = vunpack.c.l.b16 %v316
    %v581 = vunpack.c.l.b16 %v317
    %v582 = vunpack.c.l.b16 %v318
    %v583 = vunpack.c.l.b16 %v319
    %v584 = vunpack.c.l.b16 %v320
    %v585 = vunpack.c.l.b16 %v321
    %v586 = vunpack.c.l.b16 %v322
    %v587 = vunpack.c.l.b16 %v323
    %v588 = vunpack.c.l.b16 %v324
    %v589 = vunpack.c.l.b16 %v325
    %v590 = vunpack.c.l.b16 %v326
    %v591 = vunpack.c.l.b16 %v327
    %v592 = vunpack.c.l.b16 %v328
    %v593 = vunpack.c.l.b16 %v329
    %v594 = vunpack.c.l.b16 %v330
    %v595 = vpack.c.b16 %v580, %v579
    %v596 = vpack.c.b16 %v582, %v581
    %v597 = vpack.c.b16 %v584, %v583
    %v598 = vpack.c.b16 %v586, %v585
    %v599 = vpack.c.b16 %v588, %v587
    %v600 = vpack.c.b16 %v590, %v589
    %v601 = vpack.c.b16 %v592, %v591
    %v602 = vpack.c.b16 %v594, %v593
    %611 = vmatprep.subr.bf16.mxu0 0
    %612 = vmatpush1.bf16.msra.mxu0 %v595
    %613 = vmatprep.subr.bf16.mxu0 0
    %614 = vmatpush1.bf16.msra.mxu0 %v596
    %615 = vmatprep.subr.bf16.mxu0 0
    %616 = vmatpush1.bf16.msra.mxu0 %v597
    %617 = vmatprep.subr.bf16.mxu0 0
    %618 = vmatpush1.bf16.msra.mxu0 %v598
    %619 = vmatprep.subr.bf16.mxu0 0
    %620 = vmatpush1.bf16.msra.mxu0 %v599
    %621 = vmatprep.subr.bf16.mxu0 0
    %622 = vmatpush1.bf16.msra.mxu0 %v600
    %623 = vmatprep.subr.bf16.mxu0 0
    %624 = vmatpush1.bf16.msra.mxu0 %v601
    %625 = vmatprep.subr.bf16.mxu0 0
    %626 = vmatpush1.bf16.msra.mxu0 %v602
    %627 = vmatprep.subr.bf16.mxu0 0
    %628 = vmatpush1.bf16.msra.mxu0 0
    %629 = vmatprep.subr.bf16.mxu0 0
    %630 = vmatpush1.bf16.msra.mxu0 0
    %631 = vmatprep.subr.bf16.mxu0 0
    %632 = vmatpush1.bf16.msra.mxu0 0
    %633 = vmatprep.subr.bf16.mxu0 0
    %634 = vmatpush1.bf16.msra.mxu0 0
    %635 = vmatprep.subr.bf16.mxu0 0
    %636 = vmatpush1.bf16.msra.mxu0 0
    %637 = vmatprep.subr.bf16.mxu0 0
    %638 = vmatpush1.bf16.msra.mxu0 0
    %639 = vmatprep.subr.bf16.mxu0 0
    %640 = vmatpush1.bf16.msra.mxu0 0
    %641 = vmatprep.subr.bf16.mxu0 0
    %642 = vmatpush1.bf16.msra.mxu0 0
    %643 = vmatprep.mubr.bf16.mxu0 0
    %644 = vmatmul.mubr.bf16.gmra.mrb[0].mxu0 %v561
    %v645 = vpop.f32.mrb[0].mxu0
    %v646 = vadd.f32 0.0, %v645
    %v647 = vpop.f32.mrb[0].mxu0
    %v648 = vpop.f32.mrb[0].mxu0
    %v649 = vadd.f32 0.0, %v648
    %v650 = vpop.f32.mrb[0].mxu0
    %651 = vmatprep.mubr.bf16.mxu0 0
    %652 = vmatmul.mubr.bf16.gmra.mrb[0].mxu0 %v562
    %v653 = vpop.f32.mrb[0].mxu0
    %v654 = vadd.f32 0.0, %v653
    %v655 = vpop.f32.mrb[0].mxu0
    %v656 = vpop.f32.mrb[0].mxu0
    %v657 = vadd.f32 0.0, %v656
    %v658 = vpop.f32.mrb[0].mxu0
    %659 = vdwg.mxu0
    %662 = vrot.lane.b32.xlu0 %v443, 96
    %v663 = vpop.permute.xlu0 %662
    %664 = vrot.lane.b32.xlu0 %v444, 96
    %v665 = vpop.permute.xlu0 %664
    %v667 = vsel %vm523, %v443, 0
    %v670 = vsel %vm523, %v444, 0
    %v673 = vsel %vm523, %v663, 0
    %v676 = vsel %vm523, %v665, 0
    %678 = vmatprep.subr.bf16.mxu0 0
    %679 = vmatpush1.bf16.xpose.msra.mxu0 %v673
    %680 = vmatprep.subr.bf16.mxu0 0
    %681 = vmatpush1.bf16.xpose.msra.mxu0 %v676
    %682 = vmatprep.subr.bf16.mxu0 0
    %683 = vmatpush1.bf16.xpose.msra.mxu0 0
    %684 = vmatprep.subr.bf16.mxu0 0
    %685 = vmatpush1.bf16.xpose.msra.mxu0 0
    %686 = vmatprep.subr.bf16.mxu0 0
    %687 = vmatpush1.bf16.xpose.msra.mxu0 0
    %688 = vmatprep.subr.bf16.mxu0 0
    %689 = vmatpush1.bf16.xpose.msra.mxu0 0
    %690 = vmatprep.subr.bf16.mxu0 0
    %691 = vmatpush1.bf16.xpose.msra.mxu0 0
    %692 = vmatprep.subr.bf16.mxu0 0
    %693 = vmatpush1.bf16.xpose.msra.mxu0 0
    %694 = vmatprep.subr.bf16.mxu0 0
    %695 = vmatpush1.bf16.xpose.msra.mxu0 0
    %696 = vmatprep.subr.bf16.mxu0 0
    %697 = vmatpush1.bf16.xpose.msra.mxu0 0
    %698 = vmatprep.subr.bf16.mxu0 0
    %699 = vmatpush1.bf16.xpose.msra.mxu0 0
    %700 = vmatprep.subr.bf16.mxu0 0
    %701 = vmatpush1.bf16.xpose.msra.mxu0 0
    %702 = vmatprep.subr.bf16.mxu0 0
    %703 = vmatpush1.bf16.xpose.msra.mxu0 0
    %704 = vmatprep.subr.bf16.mxu0 0
    %705 = vmatpush1.bf16.xpose.msra.mxu0 0
    %706 = vmatprep.subr.bf16.mxu0 0
    %707 = vmatpush1.bf16.xpose.msra.mxu0 0
    %708 = vmatprep.subr.bf16.mxu0 0
    %709 = vmatpush1.bf16.xpose.msra.mxu0 0
    %710 = vmatprep.mubr.bf16.mxu0 0
    %711 = vmatmul.mubr.bf16.gmra.mrb[0].mxu0 %v667
    %v712 = vpop.f32.mrb[0].mxu0
    %v713 = vadd.f32 %v646, %v712
    %v714 = vpop.f32.mrb[0].mxu0
    %v715 = vpop.f32.mrb[0].mxu0
    %v716 = vadd.f32 %v649, %v715
    %v717 = vpop.f32.mrb[0].mxu0
    %718 = vmatprep.mubr.bf16.mxu0 0
    %719 = vmatmul.mubr.bf16.gmra.mrb[0].mxu0 %v670
    %v720 = vpop.f32.mrb[0].mxu0
    %v721 = vadd.f32 %v654, %v720
    %v722 = vpop.f32.mrb[0].mxu0
    %v723 = vpop.f32.mrb[0].mxu0
    %v724 = vadd.f32 %v657, %v723
    %v725 = vpop.f32.mrb[0].mxu0
    %726 = vdwg.mxu0
    %v727 = vmul.f32 %v713, 0.25
    %v728 = vmul.f32 %v716, 0.25
    %v729 = vmul.f32 %v721, 0.25
    %v730 = vmul.f32 %v724, 0.25
    %v731 = vadd.f32 %v727, %v363
    %v732 = vadd.f32 %v728, %v364
    %v733 = vadd.f32 %v729, %v365
    %v734 = vadd.f32 %v730, %v366
    %v735 = vsel %vm253, %v731, -inf
    %736 = vmax.xlane.f32.xlu0 %v735
    %v737 = vpop.xlane.xlu0 %736
    %v738 = vsel %vm253, %v732, -inf
    %739 = vmax.xlane.f32.xlu0 %v738
    %v740 = vpop.xlane.xlu0 %739
    %v741 = vsel %vm253, %v733, -inf
    %742 = vmax.xlane.f32.xlu0 %v741
    %v743 = vpop.xlane.xlu0 %742
    %v744 = vsel %vm253, %v734, -inf
    %745 = vmax.xlane.f32.xlu0 %v744
    %v746 = vpop.xlane.xlu0 %745
    %v747 = vsub.f32 %v731, %v737
    %v748 = vsub.f32 %v732, %v740
    %v749 = vsub.f32 %v733, %v743
    %v750 = vsub.f32 %v734, %v746
    %v751 = vmul.f32 %v747, 1.442695
    %v752 = vpow.pop %v751
    %v753 = vmul.f32 %v748, 1.442695
    %v754 = vpow.pop %v753
    %v755 = vmul.f32 %v749, 1.442695
    %v756 = vpow.pop %v755
    %v757 = vmul.f32 %v750, 1.442695
    %v758 = vpow.pop %v757
    %v759 = vsel %vm253, %v752, 0.0
    %760 = vadd.xlane.f32.xlu0 %v759
    %v761 = vpop.xlane.xlu0 %760
    %v762 = vsel %vm253, %v754, 0.0
    %763 = vadd.xlane.f32.xlu0 %v762
    %v764 = vpop.xlane.xlu0 %763
    %v765 = vsel %vm253, %v756, 0.0
    %766 = vadd.xlane.f32.xlu0 %v765
    %v767 = vpop.xlane.xlu0 %766
    %v768 = vsel %vm253, %v758, 0.0
    %769 = vadd.xlane.f32.xlu0 %v768
    %v770 = vpop.xlane.xlu0 %769
    %v771 = vrcp.pop %v761
    %v772 = vrcp.pop %v764
    %v773 = vrcp.pop %v767
    %v774 = vrcp.pop %v770
    %v775 = vmul.f32 %v752, %v771
    %v776 = vmul.f32 %v754, %v772
    %v777 = vmul.f32 %v756, %v773
    %v778 = vmul.f32 %v758, %v774
    %v779 = vpack.c.bf16 %v776, %v775
    %v780 = vpack.c.bf16 %v778, %v777
    %785 = vrot.lane.b32.xlu0 %v775, 32
    %v786 = vpop.permute.xlu0 %785
    %787 = vrot.lane.b32.xlu0 %v776, 32
    %v788 = vpop.permute.xlu0 %787
    %789 = vrot.lane.b32.xlu0 %v777, 32
    %v790 = vpop.permute.xlu0 %789
    %791 = vrot.lane.b32.xlu0 %v778, 32
    %v792 = vpop.permute.xlu0 %791
    %797 = vrot.lane.b32.xlu0 %v775, 64
    %v798 = vpop.permute.xlu0 %797
    %799 = vrot.lane.b32.xlu0 %v776, 64
    %v800 = vpop.permute.xlu0 %799
    %801 = vrot.lane.b32.xlu0 %v777, 64
    %v802 = vpop.permute.xlu0 %801
    %803 = vrot.lane.b32.xlu0 %v778, 64
    %v804 = vpop.permute.xlu0 %803
    %809 = vrot.lane.b32.xlu0 %v775, 96
    %v810 = vpop.permute.xlu0 %809
    %811 = vrot.lane.b32.xlu0 %v776, 96
    %v812 = vpop.permute.xlu0 %811
    %813 = vrot.lane.b32.xlu0 %v777, 96
    %v814 = vpop.permute.xlu0 %813
    %815 = vrot.lane.b32.xlu0 %v778, 96
    %v816 = vpop.permute.xlu0 %815
    %v821 = vsel %vm253, %v775, %v786
    %v822 = vsel %vm253, %v776, %v788
    %v823 = vsel %vm253, %v777, %v790
    %v824 = vsel %vm253, %v778, %v792
    %v825 = vsel %vm537, %v821, %v798
    %v826 = vsel %vm537, %v822, %v800
    %v827 = vsel %vm537, %v823, %v802
    %v828 = vsel %vm537, %v824, %v804
    %v829 = vsel %vm547, %v825, %v810
    %v830 = vsel %vm547, %v826, %v812
    %v831 = vsel %vm547, %v827, %v814
    %v832 = vsel %vm547, %v828, %v816
    %v833 = vmul.f32 %v829, %v307
    %v834 = vmul.f32 %v829, %v308
    %v835 = vmul.f32 %v830, %v309
    %v836 = vmul.f32 %v830, %v310
    %v837 = vmul.f32 %v831, %v311
    %v838 = vmul.f32 %v831, %v312
    %v839 = vmul.f32 %v832, %v313
    %v840 = vmul.f32 %v832, %v314
    %v841 = vpack.c.bf16 %v835, %v833
    %v842 = vpack.c.bf16 %v836, %v834
    %v843 = vpack.c.bf16 %v839, %v837
    %v844 = vpack.c.bf16 %v840, %v838
    %v877 = vunpack.c.l.b16 %v331
    %v878 = vunpack.c.l.b16 %v332
    %v879 = vunpack.c.l.b16 %v333
    %v880 = vunpack.c.l.b16 %v334
    %v881 = vunpack.c.l.b16 %v335
    %v882 = vunpack.c.l.b16 %v336
    %v883 = vunpack.c.l.b16 %v337
    %v884 = vunpack.c.l.b16 %v338
    %v885 = vunpack.c.l.b16 %v339
    %v886 = vunpack.c.l.b16 %v340
    %v887 = vunpack.c.l.b16 %v341
    %v888 = vunpack.c.l.b16 %v342
    %v889 = vunpack.c.l.b16 %v343
    %v890 = vunpack.c.l.b16 %v344
    %v891 = vunpack.c.l.b16 %v345
    %v892 = vunpack.c.l.b16 %v346
    %v893 = vunpack.c.l.b16 %v347
    %v894 = vunpack.c.l.b16 %v348
    %v895 = vunpack.c.l.b16 %v349
    %v896 = vunpack.c.l.b16 %v350
    %v897 = vunpack.c.l.b16 %v351
    %v898 = vunpack.c.l.b16 %v352
    %v899 = vunpack.c.l.b16 %v353
    %v900 = vunpack.c.l.b16 %v354
    %v901 = vunpack.c.l.b16 %v355
    %v902 = vunpack.c.l.b16 %v356
    %v903 = vunpack.c.l.b16 %v357
    %v904 = vunpack.c.l.b16 %v358
    %v905 = vunpack.c.l.b16 %v359
    %v906 = vunpack.c.l.b16 %v360
    %v907 = vunpack.c.l.b16 %v361
    %v908 = vunpack.c.l.b16 %v362
    %v909 = vpack.c.b16 %v878, %v877
    %v910 = vpack.c.b16 %v880, %v879
    %v911 = vpack.c.b16 %v882, %v881
    %v912 = vpack.c.b16 %v884, %v883
    %v913 = vpack.c.b16 %v886, %v885
    %v914 = vpack.c.b16 %v888, %v887
    %v915 = vpack.c.b16 %v890, %v889
    %v916 = vpack.c.b16 %v892, %v891
    %v917 = vpack.c.b16 %v894, %v893
    %v918 = vpack.c.b16 %v896, %v895
    %v919 = vpack.c.b16 %v898, %v897
    %v920 = vpack.c.b16 %v900, %v899
    %v921 = vpack.c.b16 %v902, %v901
    %v922 = vpack.c.b16 %v904, %v903
    %v923 = vpack.c.b16 %v906, %v905
    %v924 = vpack.c.b16 %v908, %v907
    %941 = vmatprep.subr.bf16.mxu0 0
    %942 = vmatpush1.bf16.msra.mxu0 %v909
    %943 = vmatprep.subr.bf16.mxu0 0
    %944 = vmatpush1.bf16.msra.mxu0 %v910
    %945 = vmatprep.subr.bf16.mxu0 0
    %946 = vmatpush1.bf16.msra.mxu0 %v911
    %947 = vmatprep.subr.bf16.mxu0 0
    %948 = vmatpush1.bf16.msra.mxu0 %v912
    %949 = vmatprep.subr.bf16.mxu0 0
    %950 = vmatpush1.bf16.msra.mxu0 %v913
    %951 = vmatprep.subr.bf16.mxu0 0
    %952 = vmatpush1.bf16.msra.mxu0 %v914
    %953 = vmatprep.subr.bf16.mxu0 0
    %954 = vmatpush1.bf16.msra.mxu0 %v915
    %955 = vmatprep.subr.bf16.mxu0 0
    %956 = vmatpush1.bf16.msra.mxu0 %v916
    %957 = vmatprep.subr.bf16.mxu0 0
    %958 = vmatpush1.bf16.msra.mxu0 %v917
    %959 = vmatprep.subr.bf16.mxu0 0
    %960 = vmatpush1.bf16.msra.mxu0 %v918
    %961 = vmatprep.subr.bf16.mxu0 0
    %962 = vmatpush1.bf16.msra.mxu0 %v919
    %963 = vmatprep.subr.bf16.mxu0 0
    %964 = vmatpush1.bf16.msra.mxu0 %v920
    %965 = vmatprep.subr.bf16.mxu0 0
    %966 = vmatpush1.bf16.msra.mxu0 %v921
    %967 = vmatprep.subr.bf16.mxu0 0
    %968 = vmatpush1.bf16.msra.mxu0 %v922
    %969 = vmatprep.subr.bf16.mxu0 0
    %970 = vmatpush1.bf16.msra.mxu0 %v923
    %971 = vmatprep.subr.bf16.mxu0 0
    %972 = vmatpush1.bf16.msra.mxu0 %v924
    %973 = vmatprep.mubr.bf16.mxu0 %v842
    %974 = vmatmul.mubr.bf16.gmra.mrb[0].mxu0 %v841
    %v975 = vpop.f32.mrb[0].mxu0
    %v976 = vadd.f32 0.0, %v975
    %v977 = vpop.f32.mrb[0].mxu0
    %v978 = vpop.f32.mrb[0].mxu0
    %v979 = vadd.f32 0.0, %v978
    %v980 = vpop.f32.mrb[0].mxu0
    %981 = vmatprep.mubr.bf16.mxu0 %v844
    %982 = vmatmul.mubr.bf16.gmra.mrb[0].mxu0 %v843
    %v983 = vpop.f32.mrb[0].mxu0
    %v984 = vadd.f32 0.0, %v983
    %v985 = vpop.f32.mrb[0].mxu0
    %v986 = vpop.f32.mrb[0].mxu0
    %v987 = vadd.f32 0.0, %v986
    %v988 = vpop.f32.mrb[0].mxu0
    %989 = vdwg.mxu0
    %990 = vrot.lane.b32.xlu0 %v443, 64
    %v991 = vpop.permute.xlu0 %990
    %992 = vrot.lane.b32.xlu0 %v444, 64
    %v993 = vpop.permute.xlu0 %992
    %v997 = vsel %vm253, %v779, 0
    %v1000 = vsel %vm253, %v780, 0
    %1002 = vmatprep.subr.bf16.mxu0 0
    %1003 = vmatpush1.bf16.msra.mxu0 %v991
    %1004 = vmatprep.subr.bf16.mxu0 0
    %1005 = vmatpush1.bf16.msra.mxu0 %v993
    %1006 = vmatprep.subr.bf16.mxu0 0
    %1007 = vmatpush1.bf16.msra.mxu0 0
    %1008 = vmatprep.subr.bf16.mxu0 0
    %1009 = vmatpush1.bf16.msra.mxu0 0
    %1010 = vmatprep.subr.bf16.mxu0 0
    %1011 = vmatpush1.bf16.msra.mxu0 0
    %1012 = vmatprep.subr.bf16.mxu0 0
    %1013 = vmatpush1.bf16.msra.mxu0 0
    %1014 = vmatprep.subr.bf16.mxu0 0
    %1015 = vmatpush1.bf16.msra.mxu0 0
    %1016 = vmatprep.subr.bf16.mxu0 0
    %1017 = vmatpush1.bf16.msra.mxu0 0
    %1018 = vmatprep.subr.bf16.mxu0 0
    %1019 = vmatpush1.bf16.msra.mxu0 0
    %1020 = vmatprep.subr.bf16.mxu0 0
    %1021 = vmatpush1.bf16.msra.mxu0 0
    %1022 = vmatprep.subr.bf16.mxu0 0
    %1023 = vmatpush1.bf16.msra.mxu0 0
    %1024 = vmatprep.subr.bf16.mxu0 0
    %1025 = vmatpush1.bf16.msra.mxu0 0
    %1026 = vmatprep.subr.bf16.mxu0 0
    %1027 = vmatpush1.bf16.msra.mxu0 0
    %1028 = vmatprep.subr.bf16.mxu0 0
    %1029 = vmatpush1.bf16.msra.mxu0 0
    %1030 = vmatprep.subr.bf16.mxu0 0
    %1031 = vmatpush1.bf16.msra.mxu0 0
    %1032 = vmatprep.subr.bf16.mxu0 0
    %1033 = vmatpush1.bf16.msra.mxu0 0
    %1034 = vmatprep.mubr.bf16.mxu0 0
    %1035 = vmatmul.mubr.bf16.gmra.mrb[0].mxu0 %v997
    %v1036 = vpop.f32.mrb[0].mxu0
    %v1037 = vadd.f32 %v976, %v1036
    %v1038 = vpop.f32.mrb[0].mxu0
    %v1039 = vpop.f32.mrb[0].mxu0
    %v1040 = vadd.f32 %v979, %v1039
    %v1041 = vpop.f32.mrb[0].mxu0
    %1042 = vmatprep.mubr.bf16.mxu0 0
    %1043 = vmatmul.mubr.bf16.gmra.mrb[0].mxu0 %v1000
    %v1044 = vpop.f32.mrb[0].mxu0
    %v1045 = vadd.f32 %v984, %v1044
    %v1046 = vpop.f32.mrb[0].mxu0
    %v1047 = vpop.f32.mrb[0].mxu0
    %v1048 = vadd.f32 %v987, %v1047
    %v1049 = vpop.f32.mrb[0].mxu0
    %1050 = vdwg.mxu0
    %1053 = vrot.lane.b32.xlu0 %v1045, 16
    %v1054 = vpop.permute.xlu0 %1053
    %1055 = vrot.lane.b32.xlu0 %v1048, 16
    %v1056 = vpop.permute.xlu0 %1055
    %v1059 = vsel %vm523, %v1037, %v1054
    %v1060 = vsel %vm523, %v1040, %v1056
    %v1061 = vpack.c.bf16 %v1060, %v1059
    %v1062 = vld [vmem:[%s8] sm:$0xf]
    %v1063 = vld [vmem:[%s8 + $0x4] sm:$0xf]
    %v1064 = vld [vmem:[%s8 + $0x8] sm:$0xf]
    %v1065 = vld [vmem:[%s8 + $0xc] sm:$0xf]
    %v1066 = vld [vmem:[%s9] sm:$0x1]
    %v1068 = vlaneseq
    %v1069 = vshrl.u32 %v1068, 7
    %v1070 = vsub.s32 0, %v1069
    %v1071 = vrot.slane %v1066, %v1070
    %v1077 = vunpack.c.l.b16 %v1062
    %v1078 = vunpack.c.l.b16 %v1063
    %v1079 = vunpack.c.l.b16 %v1064
    %v1080 = vunpack.c.l.b16 %v1065
    %v1081 = vpack.c.b16 %v1078, %v1077
    %v1082 = vpack.c.b16 %v1080, %v1079
    %v1086 = vsel %vm253, %v1061, 0
    %1088 = vmatprep.subr.bf16.mxu0 0
    %1089 = vmatpush1.bf16.msra.mxu0 %v1081
    %1090 = vmatprep.subr.bf16.mxu0 0
    %1091 = vmatpush1.bf16.msra.mxu0 %v1082
    %1092 = vmatprep.subr.bf16.mxu0 0
    %1093 = vmatpush1.bf16.msra.mxu0 0
    %1094 = vmatprep.subr.bf16.mxu0 0
    %1095 = vmatpush1.bf16.msra.mxu0 0
    %1096 = vmatprep.subr.bf16.mxu0 0
    %1097 = vmatpush1.bf16.msra.mxu0 0
    %1098 = vmatprep.subr.bf16.mxu0 0
    %1099 = vmatpush1.bf16.msra.mxu0 0
    %1100 = vmatprep.subr.bf16.mxu0 0
    %1101 = vmatpush1.bf16.msra.mxu0 0
    %1102 = vmatprep.subr.bf16.mxu0 0
    %1103 = vmatpush1.bf16.msra.mxu0 0
    %1104 = vmatprep.subr.bf16.mxu0 0
    %1105 = vmatpush1.bf16.msra.mxu0 0
    %1106 = vmatprep.subr.bf16.mxu0 0
    %1107 = vmatpush1.bf16.msra.mxu0 0
    %1108 = vmatprep.subr.bf16.mxu0 0
    %1109 = vmatpush1.bf16.msra.mxu0 0
    %1110 = vmatprep.subr.bf16.mxu0 0
    %1111 = vmatpush1.bf16.msra.mxu0 0
    %1112 = vmatprep.subr.bf16.mxu0 0
    %1113 = vmatpush1.bf16.msra.mxu0 0
    %1114 = vmatprep.subr.bf16.mxu0 0
    %1115 = vmatpush1.bf16.msra.mxu0 0
    %1116 = vmatprep.subr.bf16.mxu0 0
    %1117 = vmatpush1.bf16.msra.mxu0 0
    %1118 = vmatprep.subr.bf16.mxu0 0
    %1119 = vmatpush1.bf16.msra.mxu0 0
    %1120 = vmatprep.mubr.bf16.mxu0 0
    %1121 = vmatmul.mubr.bf16.gmra.mrb[0].mxu0 %v1086
    %v1122 = vpop.f32.mrb[0].mxu0
    %v1123 = vadd.f32 %v1071, %v1122
    %v1124 = vpop.f32.mrb[0].mxu0
    %v1125 = vpop.f32.mrb[0].mxu0
    %v1126 = vadd.f32 %v1071, %v1125
    %v1127 = vpop.f32.mrb[0].mxu0
    %1128 = vdwg.mxu0
    %v1129 = vadd.f32 %v1123, %v301
    %v1130 = vadd.f32 %v1126, %v302
    %v1131 = vld [vmem:[%s10] sm:$0x1]
    %v1132 = vld [vmem:[%s11] sm:$0x1]
    %v1133 = vsel %vm253, %v1129, 0.0
    %1134 = vadd.xlane.f32.xlu0 %v1133
    %v1135 = vpop.xlane.xlu0 %1134
    %v1136 = vsel %vm253, %v1130, 0.0
    %1137 = vadd.xlane.f32.xlu0 %v1136
    %v1138 = vpop.xlane.xlu0 %1137
    %v1139 = vmul.f32 %v1135, %v260
    %v1140 = vmul.f32 %v1138, %v260
    %v1141 = vmul.f32 %v1129, %v1129
    %v1142 = vmul.f32 %v1130, %v1130
    %v1143 = vsel %vm253, %v1141, 0.0
    %1144 = vadd.xlane.f32.xlu0 %v1143
    %v1145 = vpop.xlane.xlu0 %1144
    %v1146 = vsel %vm253, %v1142, 0.0
    %1147 = vadd.xlane.f32.xlu0 %v1146
    %v1148 = vpop.xlane.xlu0 %1147
    %v1149 = vmul.f32 %v1145, %v260
    %v1150 = vmul.f32 %v1148, %v260
    %v1151 = vmul.f32 %v1139, %v1139
    %v1152 = vmul.f32 %v1140, %v1140
    %v1153 = vsub.f32 %v1149, %v1151
    %v1154 = vsub.f32 %v1150, %v1152
    %v1155 = vmax.f32 %v1153, 0.0
    %v1156 = vmax.f32 %v1154, 0.0
    %v1157 = vsub.f32 %v1129, %v1139
    %v1158 = vsub.f32 %v1130, %v1140
    %v1159 = vadd.f32 %v1155, 1e-12
    %v1160 = vadd.f32 %v1156, 1e-12
    %v1161 = vrsqrt.pop %v1159
    %v1162 = vrsqrt.pop %v1160
    %v1163 = vmul.f32 %v1157, %v1161
    %v1164 = vmul.f32 %v1158, %v1162
    %v1166 = vlaneseq
    %v1167 = vshrl.u32 %v1166, 7
    %v1168 = vsub.s32 0, %v1167
    %v1169 = vrot.slane %v1131, %v1168
    %v1171 = vmul.f32 %v1163, %v1169
    %v1172 = vmul.f32 %v1164, %v1169
    %v1174 = vlaneseq
    %v1175 = vshrl.u32 %v1174, 7
    %v1176 = vsub.s32 0, %v1175
    %v1177 = vrot.slane %v1132, %v1176
    %v1179 = vadd.f32 %v1171, %v1177
    %v1180 = vadd.f32 %v1172, %v1177
    %v1181 = vpack.c.bf16 %v1180, %v1179
    %v1182 = vld [vmem:[%s12] sm:$0xf]
    %v1183 = vld [vmem:[%s12 + $0x4] sm:$0xf]
    %v1184 = vld [vmem:[%s12 + $0x8] sm:$0xf]
    %v1185 = vld [vmem:[%s12 + $0xc] sm:$0xf]
    %v1186 = vld [vmem:[%s13] sm:$0x1]
    %v1188 = vlaneseq
    %v1189 = vshrl.u32 %v1188, 7
    %v1190 = vsub.s32 0, %v1189
    %v1191 = vrot.slane %v1186, %v1190
    %v1197 = vunpack.c.l.b16 %v1182
    %v1198 = vunpack.c.l.b16 %v1183
    %v1199 = vunpack.c.l.b16 %v1184
    %v1200 = vunpack.c.l.b16 %v1185
    %v1201 = vpack.c.b16 %v1198, %v1197
    %v1202 = vpack.c.b16 %v1200, %v1199
    %v1206 = vsel %vm253, %v1181, 0
    %1208 = vmatprep.subr.bf16.mxu0 0
    %1209 = vmatpush1.bf16.msra.mxu0 %v1201
    %1210 = vmatprep.subr.bf16.mxu0 0
    %1211 = vmatpush1.bf16.msra.mxu0 %v1202
    %1212 = vmatprep.subr.bf16.mxu0 0
    %1213 = vmatpush1.bf16.msra.mxu0 0
    %1214 = vmatprep.subr.bf16.mxu0 0
    %1215 = vmatpush1.bf16.msra.mxu0 0
    %1216 = vmatprep.subr.bf16.mxu0 0
    %1217 = vmatpush1.bf16.msra.mxu0 0
    %1218 = vmatprep.subr.bf16.mxu0 0
    %1219 = vmatpush1.bf16.msra.mxu0 0
    %1220 = vmatprep.subr.bf16.mxu0 0
    %1221 = vmatpush1.bf16.msra.mxu0 0
    %1222 = vmatprep.subr.bf16.mxu0 0
    %1223 = vmatpush1.bf16.msra.mxu0 0
    %1224 = vmatprep.subr.bf16.mxu0 0
    %1225 = vmatpush1.bf16.msra.mxu0 0
    %1226 = vmatprep.subr.bf16.mxu0 0
    %1227 = vmatpush1.bf16.msra.mxu0 0
    %1228 = vmatprep.subr.bf16.mxu0 0
    %1229 = vmatpush1.bf16.msra.mxu0 0
    %1230 = vmatprep.subr.bf16.mxu0 0
    %1231 = vmatpush1.bf16.msra.mxu0 0
    %1232 = vmatprep.subr.bf16.mxu0 0
    %1233 = vmatpush1.bf16.msra.mxu0 0
    %1234 = vmatprep.subr.bf16.mxu0 0
    %1235 = vmatpush1.bf16.msra.mxu0 0
    %1236 = vmatprep.subr.bf16.mxu0 0
    %1237 = vmatpush1.bf16.msra.mxu0 0
    %1238 = vmatprep.subr.bf16.mxu0 0
    %1239 = vmatpush1.bf16.msra.mxu0 0
    %1240 = vmatprep.mubr.bf16.mxu0 0
    %1241 = vmatmul.mubr.bf16.gmra.mrb[0].mxu0 %v1206
    %v1242 = vpop.f32.mrb[0].mxu0
    %v1243 = vadd.f32 %v1191, %v1242
    %v1244 = vpop.f32.mrb[0].mxu0
    %v1245 = vpop.f32.mrb[0].mxu0
    %v1246 = vadd.f32 %v1191, %v1245
    %v1247 = vpop.f32.mrb[0].mxu0
    %1248 = vdwg.mxu0
    %v1249 = vmul.f32 %v1243, %v1243
    %v1250 = vmul.f32 %v1246, %v1246
    %v1251 = vmul.f32 %v1243, %v1249
    %v1252 = vmul.f32 %v1246, %v1250
    %v1253 = vmul.f32 %v1251, 0.044715
    %v1254 = vmul.f32 %v1252, 0.044715
    %v1255 = vadd.f32 %v1243, %v1253
    %v1256 = vadd.f32 %v1246, %v1254
    %v1257 = vmul.f32 %v1255, 0.7978846
    %v1258 = vmul.f32 %v1256, 0.7978846
    %v1259 = vtanh.pop %v1257
    %v1260 = vtanh.pop %v1258
    %v1261 = vadd.f32 %v1259, 1.0
    %v1262 = vadd.f32 %v1260, 1.0
    %v1263 = vmul.f32 %v1261, 0.5
    %v1264 = vmul.f32 %v1262, 0.5
    %v1265 = vmul.f32 %v1243, %v1263
    %v1266 = vmul.f32 %v1246, %v1264
    %v1267 = vpack.c.bf16 %v1266, %v1265
    %v1268 = vld [vmem:[%s14] sm:$0xf]
    %v1269 = vld [vmem:[%s14 + $0x4] sm:$0xf]
    %v1270 = vld [vmem:[%s14 + $0x8] sm:$0xf]
    %v1271 = vld [vmem:[%s14 + $0xc] sm:$0xf]
    %v1272 = vld [vmem:[%s14 + $0x10] sm:$0xf]
    %v1273 = vld [vmem:[%s14 + $0x14] sm:$0xf]
    %v1274 = vld [vmem:[%s14 + $0x18] sm:$0xf]
    %v1275 = vld [vmem:[%s14 + $0x1c] sm:$0xf]
    %v1276 = vld [vmem:[%s15] sm:$0x1]
    %v1278 = vlaneseq
    %v1279 = vshrl.u32 %v1278, 7
    %v1280 = vsub.s32 0, %v1279
    %v1281 = vrot.slane %v1276, %v1280
    %v1291 = vunpack.c.l.b16 %v1268
    %v1292 = vunpack.c.l.b16 %v1269
    %v1293 = vunpack.c.l.b16 %v1270
    %v1294 = vunpack.c.l.b16 %v1271
    %v1295 = vunpack.c.l.b16 %v1272
    %v1296 = vunpack.c.l.b16 %v1273
    %v1297 = vunpack.c.l.b16 %v1274
    %v1298 = vunpack.c.l.b16 %v1275
    %v1299 = vpack.c.b16 %v1292, %v1291
    %v1300 = vpack.c.b16 %v1294, %v1293
    %v1301 = vpack.c.b16 %v1296, %v1295
    %v1302 = vpack.c.b16 %v1298, %v1297
    %v1308 = vsel %vm537, %v1267, 0
    %1310 = vmatprep.subr.bf16.mxu0 0
    %1311 = vmatpush1.bf16.msra.mxu0 %v1299
    %1312 = vmatprep.subr.bf16.mxu0 0
    %1313 = vmatpush1.bf16.msra.mxu0 %v1300
    %1314 = vmatprep.subr.bf16.mxu0 0
    %1315 = vmatpush1.bf16.msra.mxu0 %v1301
    %1316 = vmatprep.subr.bf16.mxu0 0
    %1317 = vmatpush1.bf16.msra.mxu0 %v1302
    %1318 = vmatprep.subr.bf16.mxu0 0
    %1319 = vmatpush1.bf16.msra.mxu0 0
    %1320 = vmatprep.subr.bf16.mxu0 0
    %1321 = vmatpush1.bf16.msra.mxu0 0
    %1322 = vmatprep.subr.bf16.mxu0 0
    %1323 = vmatpush1.bf16.msra.mxu0 0
    %1324 = vmatprep.subr.bf16.mxu0 0
    %1325 = vmatpush1.bf16.msra.mxu0 0
    %1326 = vmatprep.subr.bf16.mxu0 0
    %1327 = vmatpush1.bf16.msra.mxu0 0
    %1328 = vmatprep.subr.bf16.mxu0 0
    %1329 = vmatpush1.bf16.msra.mxu0 0
    %1330 = vmatprep.subr.bf16.mxu0 0
    %1331 = vmatpush1.bf16.msra.mxu0 0
    %1332 = vmatprep.subr.bf16.mxu0 0
    %1333 = vmatpush1.bf16.msra.mxu0 0
    %1334 = vmatprep.subr.bf16.mxu0 0
    %1335 = vmatpush1.bf16.msra.mxu0 0
    %1336 = vmatprep.subr.bf16.mxu0 0
    %1337 = vmatpush1.bf16.msra.mxu0 0
    %1338 = vmatprep.subr.bf16.mxu0 0
    %1339 = vmatpush1.bf16.msra.mxu0 0
    %1340 = vmatprep.subr.bf16.mxu0 0
    %1341 = vmatpush1.bf16.msra.mxu0 0
    %1342 = vmatprep.mubr.bf16.mxu0 0
    %1343 = vmatmul.mubr.bf16.gmra.mrb[0].mxu0 %v1308
    %v1344 = vpop.f32.mrb[0].mxu0
    %v1345 = vadd.f32 %v1281, %v1344
    %v1346 = vpop.f32.mrb[0].mxu0
    %v1347 = vpop.f32.mrb[0].mxu0
    %v1348 = vadd.f32 %v1281, %v1347
    %v1349 = vpop.f32.mrb[0].mxu0
    %1350 = vdwg.mxu0
    %v1351 = vadd.f32 %v1345, %v1179
    %v1352 = vadd.f32 %v1348, %v1180
    %v1353 = vld [vmem:[%s16] sm:$0x1]
    %v1354 = vld [vmem:[%s17] sm:$0x1]
    %v1355 = vsel %vm253, %v1351, 0.0
    %1356 = vadd.xlane.f32.xlu0 %v1355
    %v1357 = vpop.xlane.xlu0 %1356
    %v1358 = vsel %vm253, %v1352, 0.0
    %1359 = vadd.xlane.f32.xlu0 %v1358
    %v1360 = vpop.xlane.xlu0 %1359
    %v1361 = vmul.f32 %v1357, %v260
    %v1362 = vmul.f32 %v1360, %v260
    %v1363 = vmul.f32 %v1351, %v1351
    %v1364 = vmul.f32 %v1352, %v1352
    %v1365 = vsel %vm253, %v1363, 0.0
    %1366 = vadd.xlane.f32.xlu0 %v1365
    %v1367 = vpop.xlane.xlu0 %1366
    %v1368 = vsel %vm253, %v1364, 0.0
    %1369 = vadd.xlane.f32.xlu0 %v1368
    %v1370 = vpop.xlane.xlu0 %1369
    %v1371 = vmul.f32 %v1367, %v260
    %v1372 = vmul.f32 %v1370, %v260
    %v1373 = vmul.f32 %v1361, %v1361
    %v1374 = vmul.f32 %v1362, %v1362
    %v1375 = vsub.f32 %v1371, %v1373
    %v1376 = vsub.f32 %v1372, %v1374
    %v1377 = vmax.f32 %v1375, 0.0
    %v1378 = vmax.f32 %v1376, 0.0
    %v1379 = vsub.f32 %v1351, %v1361
    %v1380 = vsub.f32 %v1352, %v1362
    %v1381 = vadd.f32 %v1377, 1e-12
    %v1382 = vadd.f32 %v1378, 1e-12
    %v1383 = vrsqrt.pop %v1381
    %v1384 = vrsqrt.pop %v1382
    %v1385 = vmul.f32 %v1379, %v1383
    %v1386 = vmul.f32 %v1380, %v1384
    %v1388 = vlaneseq
    %v1389 = vshrl.u32 %v1388, 7
    %v1390 = vsub.s32 0, %v1389
    %v1391 = vrot.slane %v1353, %v1390
    %v1393 = vmul.f32 %v1385, %v1391
    %v1394 = vmul.f32 %v1386, %v1391
    %v1396 = vlaneseq
    %v1397 = vshrl.u32 %v1396, 7
    %v1398 = vsub.s32 0, %v1397
    %v1399 = vrot.slane %v1354, %v1398
    %v1401 = vadd.f32 %v1393, %v1399
    %v1402 = vadd.f32 %v1394, %v1399
    %v1403 = vpack.c.bf16 %v1402, %v1401
    %s1404 = scalar_lea.vmem %s6, 16
    %v1405 = vld [vmem:[%s1404] sm:$0xf]
    %v1406 = vld [vmem:[%s1404 + $0x4] sm:$0xf]
    %v1407 = vld [vmem:[%s1404 + $0x8] sm:$0xf]
    %v1408 = vld [vmem:[%s1404 + $0xc] sm:$0xf]
    %s1409 = scalar_lea.vmem %s7, 1
    %v1410 = vld [vmem:[%s1409] sm:$0x1]
    %v1412 = vlaneseq
    %v1413 = vshrl.u32 %v1412, 7
    %v1414 = vsub.s32 0, %v1413
    %v1415 = vrot.slane %v1410, %v1414
    %v1421 = vunpack.c.l.b16 %v1405
    %v1422 = vunpack.c.l.b16 %v1406
    %v1423 = vunpack.c.l.b16 %v1407
    %v1424 = vunpack.c.l.b16 %v1408
    %v1425 = vpack.c.b16 %v1422, %v1421
    %v1426 = vpack.c.b16 %v1424, %v1423
    %v1430 = vsel %vm253, %v1403, 0
    %1432 = vmatprep.subr.bf16.mxu0 0
    %1433 = vmatpush1.bf16.msra.mxu0 %v1425
    %1434 = vmatprep.subr.bf16.mxu0 0
    %1435 = vmatpush1.bf16.msra.mxu0 %v1426
    %1436 = vmatprep.subr.bf16.mxu0 0
    %1437 = vmatpush1.bf16.msra.mxu0 0
    %1438 = vmatprep.subr.bf16.mxu0 0
    %1439 = vmatpush1.bf16.msra.mxu0 0
    %1440 = vmatprep.subr.bf16.mxu0 0
    %1441 = vmatpush1.bf16.msra.mxu0 0
    %1442 = vmatprep.subr.bf16.mxu0 0
    %1443 = vmatpush1.bf16.msra.mxu0 0
    %1444 = vmatprep.subr.bf16.mxu0 0
    %1445 = vmatpush1.bf16.msra.mxu0 0
    %1446 = vmatprep.subr.bf16.mxu0 0
    %1447 = vmatpush1.bf16.msra.mxu0 0
    %1448 = vmatprep.subr.bf16.mxu0 0
    %1449 = vmatpush1.bf16.msra.mxu0 0
    %1450 = vmatprep.subr.bf16.mxu0 0
    %1451 = vmatpush1.bf16.msra.mxu0 0
    %1452 = vmatprep.subr.bf16.mxu0 0
    %1453 = vmatpush1.bf16.msra.mxu0 0
    %1454 = vmatprep.subr.bf16.mxu0 0
    %1455 = vmatpush1.bf16.msra.mxu0 0
    %1456 = vmatprep.subr.bf16.mxu0 0
    %1457 = vmatpush1.bf16.msra.mxu0 0
    %1458 = vmatprep.subr.bf16.mxu0 0
    %1459 = vmatpush1.bf16.msra.mxu0 0
    %1460 = vmatprep.subr.bf16.mxu0 0
    %1461 = vmatpush1.bf16.msra.mxu0 0
    %1462 = vmatprep.subr.bf16.mxu0 0
    %1463 = vmatpush1.bf16.msra.mxu0 0
    %1464 = vmatprep.mubr.bf16.mxu0 0
    %1465 = vmatmul.mubr.bf16.gmra.mrb[0].mxu0 %v1430
    %v1466 = vpop.f32.mrb[0].mxu0
    %v1467 = vadd.f32 %v1415, %v1466
    %v1468 = vpop.f32.mrb[0].mxu0
    %v1469 = vpop.f32.mrb[0].mxu0
    %v1470 = vadd.f32 %v1415, %v1469
    %v1471 = vpop.f32.mrb[0].mxu0
    %1472 = vdwg.mxu0
    %1475 = vrot.lane.b32.xlu0 %v1467, 112
    %v1476 = vpop.permute.xlu0 %1475
    %1477 = vrot.lane.b32.xlu0 %v1470, 112
    %v1478 = vpop.permute.xlu0 %1477
    %v1481 = vpack.c.bf16 %v1470, %v1467
    %v1482 = vpack.c.bf16 %v1478, %v1476
    %1483 = vrot.lane.b32.xlu0 %v1467, 16
    %v1484 = vpop.permute.xlu0 %1483
    %1485 = vrot.lane.b32.xlu0 %v1470, 16
    %v1486 = vpop.permute.xlu0 %1485
    %1487 = vrot.lane.b32.xlu0 %v1476, 16
    %v1488 = vpop.permute.xlu0 %1487
    %1489 = vrot.lane.b32.xlu0 %v1478, 16
    %v1490 = vpop.permute.xlu0 %1489
    %1495 = vrot.lane.b32.xlu0 %v1467, 32
    %v1496 = vpop.permute.xlu0 %1495
    %1497 = vrot.lane.b32.xlu0 %v1470, 32
    %v1498 = vpop.permute.xlu0 %1497
    %1499 = vrot.lane.b32.xlu0 %v1476, 32
    %v1500 = vpop.permute.xlu0 %1499
    %1501 = vrot.lane.b32.xlu0 %v1478, 32
    %v1502 = vpop.permute.xlu0 %1501
    %1507 = vrot.lane.b32.xlu0 %v1467, 48
    %v1508 = vpop.permute.xlu0 %1507
    %1509 = vrot.lane.b32.xlu0 %v1470, 48
    %v1510 = vpop.permute.xlu0 %1509
    %1511 = vrot.lane.b32.xlu0 %v1476, 48
    %v1512 = vpop.permute.xlu0 %1511
    %1513 = vrot.lane.b32.xlu0 %v1478, 48
    %v1514 = vpop.permute.xlu0 %1513
    %1519 = vrot.lane.b32.xlu0 %v1467, 64
    %v1520 = vpop.permute.xlu0 %1519
    %1521 = vrot.lane.b32.xlu0 %v1470, 64
    %v1522 = vpop.permute.xlu0 %1521
    %1523 = vrot.lane.b32.xlu0 %v1476, 64
    %v1524 = vpop.permute.xlu0 %1523
    %1525 = vrot.lane.b32.xlu0 %v1478, 64
    %v1526 = vpop.permute.xlu0 %1525
    %1531 = vrot.lane.b32.xlu0 %v1467, 80
    %v1532 = vpop.permute.xlu0 %1531
    %1533 = vrot.lane.b32.xlu0 %v1470, 80
    %v1534 = vpop.permute.xlu0 %1533
    %1535 = vrot.lane.b32.xlu0 %v1476, 80
    %v1536 = vpop.permute.xlu0 %1535
    %1537 = vrot.lane.b32.xlu0 %v1478, 80
    %v1538 = vpop.permute.xlu0 %1537
    %1543 = vrot.lane.b32.xlu0 %v1467, 96
    %v1544 = vpop.permute.xlu0 %1543
    %1545 = vrot.lane.b32.xlu0 %v1470, 96
    %v1546 = vpop.permute.xlu0 %1545
    %1547 = vrot.lane.b32.xlu0 %v1476, 96
    %v1548 = vpop.permute.xlu0 %1547
    %1549 = vrot.lane.b32.xlu0 %v1478, 96
    %v1550 = vpop.permute.xlu0 %1549
    %1555 = vrot.lane.b32.xlu0 %v1476, 112
    %v1556 = vpop.permute.xlu0 %1555
    %1557 = vrot.lane.b32.xlu0 %v1478, 112
    %v1558 = vpop.permute.xlu0 %1557
    %v1561 = vsel %vm523, %v1467, %v1484
    %v1562 = vsel %vm523, %v1470, %v1486
    %v1563 = vsel %vm523, %v1476, %v1488
    %v1564 = vsel %vm523, %v1478, %v1490
    %v1565 = vsel %vm253, %v1561, %v1496
    %v1566 = vsel %vm253, %v1562, %v1498
    %v1567 = vsel %vm253, %v1563, %v1500
    %v1568 = vsel %vm253, %v1564, %v1502
    %v1569 = vsel %vm532, %v1565, %v1508
    %v1570 = vsel %vm532, %v1566, %v1510
    %v1571 = vsel %vm532, %v1567, %v1512
    %v1572 = vsel %vm532, %v1568, %v1514
    %v1573 = vsel %vm537, %v1569, %v1520
    %v1574 = vsel %vm537, %v1570, %v1522
    %v1575 = vsel %vm537, %v1571, %v1524
    %v1576 = vsel %vm537, %v1572, %v1526
    %v1577 = vsel %vm542, %v1573, %v1532
    %v1578 = vsel %vm542, %v1574, %v1534
    %v1579 = vsel %vm542, %v1575, %v1536
    %v1580 = vsel %vm542, %v1576, %v1538
    %v1581 = vsel %vm547, %v1577, %v1544
    %v1582 = vsel %vm547, %v1578, %v1546
    %v1583 = vsel %vm547, %v1579, %v1548
    %v1584 = vsel %vm547, %v1580, %v1550
    %v1585 = vsel %vm552, %v1581, %v1476
    %v1586 = vsel %vm552, %v1582, %v1478
    %v1587 = vsel %vm552, %v1583, %v1556
    %v1588 = vsel %vm552, %v1584, %v1558
    %v1589 = vmul.f32 %v1585, %v303
    %v1590 = vmul.f32 %v1586, %v304
    %v1591 = vmul.f32 %v1587, %v305
    %v1592 = vmul.f32 %v1588, %v306
    %v1593 = vpack.c.bf16 %v1590, %v1589
    %v1594 = vpack.c.bf16 %v1592, %v1591
    %1595 = vmatprep.subr.bf16.mxu0 0
    %1596 = vmatpush1.bf16.msra.mxu0 %v595
    %1597 = vmatprep.subr.bf16.mxu0 0
    %1598 = vmatpush1.bf16.msra.mxu0 %v596
    %1599 = vmatprep.subr.bf16.mxu0 0
    %1600 = vmatpush1.bf16.msra.mxu0 %v597
    %1601 = vmatprep.subr.bf16.mxu0 0
    %1602 = vmatpush1.bf16.msra.mxu0 %v598
    %1603 = vmatprep.subr.bf16.mxu0 0
    %1604 = vmatpush1.bf16.msra.mxu0 %v599
    %1605 = vmatprep.subr.bf16.mxu0 0
    %1606 = vmatpush1.bf16.msra.mxu0 %v600
    %1607 = vmatprep.subr.bf16.mxu0 0
    %1608 = vmatpush1.bf16.msra.mxu0 %v601
    %1609 = vmatprep.subr.bf16.mxu0 0
    %1610 = vmatpush1.bf16.msra.mxu0 %v602
    %1611 = vmatprep.subr.bf16.mxu0 0
    %1612 = vmatpush1.bf16.msra.mxu0 0
    %1613 = vmatprep.subr.bf16.mxu0 0
    %1614 = vmatpush1.bf16.msra.mxu0 0
    %1615 = vmatprep.subr.bf16.mxu0 0
    %1616 = vmatpush1.bf16.msra.mxu0 0
    %1617 = vmatprep.subr.bf16.mxu0 0
    %1618 = vmatpush1.bf16.msra.mxu0 0
    %1619 = vmatprep.subr.bf16.mxu0 0
    %1620 = vmatpush1.bf16.msra.mxu0 0
    %1621 = vmatprep.subr.bf16.mxu0 0
    %1622 = vmatpush1.bf16.msra.mxu0 0
    %1623 = vmatprep.subr.bf16.mxu0 0
    %1624 = vmatpush1.bf16.msra.mxu0 0
    %1625 = vmatprep.subr.bf16.mxu0 0
    %1626 = vmatpush1.bf16.msra.mxu0 0
    %1627 = vmatprep.mubr.bf16.mxu0 0
    %1628 = vmatmul.mubr.bf16.gmra.mrb[0].mxu0 %v1593
    %v1629 = vpop.f32.mrb[0].mxu0
    %v1630 = vadd.f32 0.0, %v1629
    %v1631 = vpop.f32.mrb[0].mxu0
    %v1632 = vpop.f32.mrb[0].mxu0
    %v1633 = vadd.f32 0.0, %v1632
    %v1634 = vpop.f32.mrb[0].mxu0
    %1635 = vmatprep.mubr.bf16.mxu0 0
    %1636 = vmatmul.mubr.bf16.gmra.mrb[0].mxu0 %v1594
    %v1637 = vpop.f32.mrb[0].mxu0
    %v1638 = vadd.f32 0.0, %v1637
    %v1639 = vpop.f32.mrb[0].mxu0
    %v1640 = vpop.f32.mrb[0].mxu0
    %v1641 = vadd.f32 0.0, %v1640
    %v1642 = vpop.f32.mrb[0].mxu0
    %1643 = vdwg.mxu0
    %1646 = vrot.lane.b32.xlu0 %v1481, 96
    %v1647 = vpop.permute.xlu0 %1646
    %1648 = vrot.lane.b32.xlu0 %v1482, 96
    %v1649 = vpop.permute.xlu0 %1648
    %v1651 = vsel %vm523, %v1481, 0
    %v1654 = vsel %vm523, %v1482, 0
    %v1657 = vsel %vm523, %v1647, 0
    %v1660 = vsel %vm523, %v1649, 0
    %1662 = vmatprep.subr.bf16.mxu0 0
    %1663 = vmatpush1.bf16.xpose.msra.mxu0 %v1657
    %1664 = vmatprep.subr.bf16.mxu0 0
    %1665 = vmatpush1.bf16.xpose.msra.mxu0 %v1660
    %1666 = vmatprep.subr.bf16.mxu0 0
    %1667 = vmatpush1.bf16.xpose.msra.mxu0 0
    %1668 = vmatprep.subr.bf16.mxu0 0
    %1669 = vmatpush1.bf16.xpose.msra.mxu0 0
    %1670 = vmatprep.subr.bf16.mxu0 0
    %1671 = vmatpush1.bf16.xpose.msra.mxu0 0
    %1672 = vmatprep.subr.bf16.mxu0 0
    %1673 = vmatpush1.bf16.xpose.msra.mxu0 0
    %1674 = vmatprep.subr.bf16.mxu0 0
    %1675 = vmatpush1.bf16.xpose.msra.mxu0 0
    %1676 = vmatprep.subr.bf16.mxu0 0
    %1677 = vmatpush1.bf16.xpose.msra.mxu0 0
    %1678 = vmatprep.subr.bf16.mxu0 0
    %1679 = vmatpush1.bf16.xpose.msra.mxu0 0
    %1680 = vmatprep.subr.bf16.mxu0 0
    %1681 = vmatpush1.bf16.xpose.msra.mxu0 0
    %1682 = vmatprep.subr.bf16.mxu0 0
    %1683 = vmatpush1.bf16.xpose.msra.mxu0 0
    %1684 = vmatprep.subr.bf16.mxu0 0
    %1685 = vmatpush1.bf16.xpose.msra.mxu0 0
    %1686 = vmatprep.subr.bf16.mxu0 0
    %1687 = vmatpush1.bf16.xpose.msra.mxu0 0
    %1688 = vmatprep.subr.bf16.mxu0 0
    %1689 = vmatpush1.bf16.xpose.msra.mxu0 0
    %1690 = vmatprep.subr.bf16.mxu0 0
    %1691 = vmatpush1.bf16.xpose.msra.mxu0 0
    %1692 = vmatprep.subr.bf16.mxu0 0
    %1693 = vmatpush1.bf16.xpose.msra.mxu0 0
    %1694 = vmatprep.mubr.bf16.mxu0 0
    %1695 = vmatmul.mubr.bf16.gmra.mrb[0].mxu0 %v1651
    %v1696 = vpop.f32.mrb[0].mxu0
    %v1697 = vadd.f32 %v1630, %v1696
    %v1698 = vpop.f32.mrb[0].mxu0
    %v1699 = vpop.f32.mrb[0].mxu0
    %v1700 = vadd.f32 %v1633, %v1699
    %v1701 = vpop.f32.mrb[0].mxu0
    %1702 = vmatprep.mubr.bf16.mxu0 0
    %1703 = vmatmul.mubr.bf16.gmra.mrb[0].mxu0 %v1654
    %v1704 = vpop.f32.mrb[0].mxu0
    %v1705 = vadd.f32 %v1638, %v1704
    %v1706 = vpop.f32.mrb[0].mxu0
    %v1707 = vpop.f32.mrb[0].mxu0
    %v1708 = vadd.f32 %v1641, %v1707
    %v1709 = vpop.f32.mrb[0].mxu0
    %1710 = vdwg.mxu0
    %v1711 = vmul.f32 %v1697, 0.25
    %v1712 = vmul.f32 %v1700, 0.25
    %v1713 = vmul.f32 %v1705, 0.25
    %v1714 = vmul.f32 %v1708, 0.25
    %v1715 = vadd.f32 %v1711, %v363
    %v1716 = vadd.f32 %v1712, %v364
    %v1717 = vadd.f32 %v1713, %v365
    %v1718 = vadd.f32 %v1714, %v366
    %v1719 = vsel %vm253, %v1715, -inf
    %1720 = vmax.xlane.f32.xlu0 %v1719
    %v1721 = vpop.xlane.xlu0 %1720
    %v1722 = vsel %vm253, %v1716, -inf
    %1723 = vmax.xlane.f32.xlu0 %v1722
    %v1724 = vpop.xlane.xlu0 %1723
    %v1725 = vsel %vm253, %v1717, -inf
    %1726 = vmax.xlane.f32.xlu0 %v1725
    %v1727 = vpop.xlane.xlu0 %1726
    %v1728 = vsel %vm253, %v1718, -inf
    %1729 = vmax.xlane.f32.xlu0 %v1728
    %v1730 = vpop.xlane.xlu0 %1729
    %v1731 = vsub.f32 %v1715, %v1721
    %v1732 = vsub.f32 %v1716, %v1724
    %v1733 = vsub.f32 %v1717, %v1727
    %v1734 = vsub.f32 %v1718, %v1730
    %v1735 = vmul.f32 %v1731, 1.442695
    %v1736 = vpow.pop %v1735
    %v1737 = vmul.f32 %v1732, 1.442695
    %v1738 = vpow.pop %v1737
    %v1739 = vmul.f32 %v1733, 1.442695
    %v1740 = vpow.pop %v1739
    %v1741 = vmul.f32 %v1734, 1.442695
    %v1742 = vpow.pop %v1741
    %v1743 = vsel %vm253, %v1736, 0.0
    %1744 = vadd.xlane.f32.xlu0 %v1743
    %v1745 = vpop.xlane.xlu0 %1744
    %v1746 = vsel %vm253, %v1738, 0.0
    %1747 = vadd.xlane.f32.xlu0 %v1746
    %v1748 = vpop.xlane.xlu0 %1747
    %v1749 = vsel %vm253, %v1740, 0.0
    %1750 = vadd.xlane.f32.xlu0 %v1749
    %v1751 = vpop.xlane.xlu0 %1750
    %v1752 = vsel %vm253, %v1742, 0.0
    %1753 = vadd.xlane.f32.xlu0 %v1752
    %v1754 = vpop.xlane.xlu0 %1753
    %v1755 = vrcp.pop %v1745
    %v1756 = vrcp.pop %v1748
    %v1757 = vrcp.pop %v1751
    %v1758 = vrcp.pop %v1754
    %v1759 = vmul.f32 %v1736, %v1755
    %v1760 = vmul.f32 %v1738, %v1756
    %v1761 = vmul.f32 %v1740, %v1757
    %v1762 = vmul.f32 %v1742, %v1758
    %v1763 = vpack.c.bf16 %v1760, %v1759
    %v1764 = vpack.c.bf16 %v1762, %v1761
    %1769 = vrot.lane.b32.xlu0 %v1759, 32
    %v1770 = vpop.permute.xlu0 %1769
    %1771 = vrot.lane.b32.xlu0 %v1760, 32
    %v1772 = vpop.permute.xlu0 %1771
    %1773 = vrot.lane.b32.xlu0 %v1761, 32
    %v1774 = vpop.permute.xlu0 %1773
    %1775 = vrot.lane.b32.xlu0 %v1762, 32
    %v1776 = vpop.permute.xlu0 %1775
    %1781 = vrot.lane.b32.xlu0 %v1759, 64
    %v1782 = vpop.permute.xlu0 %1781
    %1783 = vrot.lane.b32.xlu0 %v1760, 64
    %v1784 = vpop.permute.xlu0 %1783
    %1785 = vrot.lane.b32.xlu0 %v1761, 64
    %v1786 = vpop.permute.xlu0 %1785
    %1787 = vrot.lane.b32.xlu0 %v1762, 64
    %v1788 = vpop.permute.xlu0 %1787
    %1793 = vrot.lane.b32.xlu0 %v1759, 96
    %v1794 = vpop.permute.xlu0 %1793
    %1795 = vrot.lane.b32.xlu0 %v1760, 96
    %v1796 = vpop.permute.xlu0 %1795
    %1797 = vrot.lane.b32.xlu0 %v1761, 96
    %v1798 = vpop.permute.xlu0 %1797
    %1799 = vrot.lane.b32.xlu0 %v1762, 96
    %v1800 = vpop.permute.xlu0 %1799
    %v1805 = vsel %vm253, %v1759, %v1770
    %v1806 = vsel %vm253, %v1760, %v1772
    %v1807 = vsel %vm253, %v1761, %v1774
    %v1808 = vsel %vm253, %v1762, %v1776
    %v1809 = vsel %vm537, %v1805, %v1782
    %v1810 = vsel %vm537, %v1806, %v1784
    %v1811 = vsel %vm537, %v1807, %v1786
    %v1812 = vsel %vm537, %v1808, %v1788
    %v1813 = vsel %vm547, %v1809, %v1794
    %v1814 = vsel %vm547, %v1810, %v1796
    %v1815 = vsel %vm547, %v1811, %v1798
    %v1816 = vsel %vm547, %v1812, %v1800
    %v1817 = vmul.f32 %v1813, %v307
    %v1818 = vmul.f32 %v1813, %v308
    %v1819 = vmul.f32 %v1814, %v309
    %v1820 = vmul.f32 %v1814, %v310
    %v1821 = vmul.f32 %v1815, %v311
    %v1822 = vmul.f32 %v1815, %v312
    %v1823 = vmul.f32 %v1816, %v313
    %v1824 = vmul.f32 %v1816, %v314
    %v1825 = vpack.c.bf16 %v1819, %v1817
    %v1826 = vpack.c.bf16 %v1820, %v1818
    %v1827 = vpack.c.bf16 %v1823, %v1821
    %v1828 = vpack.c.bf16 %v1824, %v1822
    %1829 = vmatprep.subr.bf16.mxu0 0
    %1830 = vmatpush1.bf16.msra.mxu0 %v909
    %1831 = vmatprep.subr.bf16.mxu0 0
    %1832 = vmatpush1.bf16.msra.mxu0 %v910
    %1833 = vmatprep.subr.bf16.mxu0 0
    %1834 = vmatpush1.bf16.msra.mxu0 %v911
    %1835 = vmatprep.subr.bf16.mxu0 0
    %1836 = vmatpush1.bf16.msra.mxu0 %v912
    %1837 = vmatprep.subr.bf16.mxu0 0
    %1838 = vmatpush1.bf16.msra.mxu0 %v913
    %1839 = vmatprep.subr.bf16.mxu0 0
    %1840 = vmatpush1.bf16.msra.mxu0 %v914
    %1841 = vmatprep.subr.bf16.mxu0 0
    %1842 = vmatpush1.bf16.msra.mxu0 %v915
    %1843 = vmatprep.subr.bf16.mxu0 0
    %1844 = vmatpush1.bf16.msra.mxu0 %v916
    %1845 = vmatprep.subr.bf16.mxu0 0
    %1846 = vmatpush1.bf16.msra.mxu0 %v917
    %1847 = vmatprep.subr.bf16.mxu0 0
    %1848 = vmatpush1.bf16.msra.mxu0 %v918
    %1849 = vmatprep.subr.bf16.mxu0 0
    %1850 = vmatpush1.bf16.msra.mxu0 %v919
    %1851 = vmatprep.subr.bf16.mxu0 0
    %1852 = vmatpush1.bf16.msra.mxu0 %v920
    %1853 = vmatprep.subr.bf16.mxu0 0
    %1854 = vmatpush1.bf16.msra.mxu0 %v921
    %1855 = vmatprep.subr.bf16.mxu0 0
    %1856 = vmatpush1.bf16.msra.mxu0 %v922
    %1857 = vmatprep.subr.bf16.mxu0 0
    %1858 = vmatpush1.bf16.msra.mxu0 %v923
    %1859 = vmatprep.subr.bf16.mxu0 0
    %1860 = vmatpush1.bf16.msra.mxu0 %v924
    %1861 = vmatprep.mubr.bf16.mxu0 %v1826
    %1862 = vmatmul.mubr.bf16.gmra.mrb[0].mxu0 %v1825
    %v1863 = vpop.f32.mrb[0].mxu0
    %v1864 = vadd.f32 0.0, %v1863
    %v1865 = vpop.f32.mrb[0].mxu0
    %v1866 = vpop.f32.mrb[0].mxu0
    %v1867 = vadd.f32 0.0, %v1866
    %v1868 = vpop.f32.mrb[0].mxu0
    %1869 = vmatprep.mubr.bf16.mxu0 %v1828
    %1870 = vmatmul.mubr.bf16.gmra.mrb[0].mxu0 %v1827
    %v1871 = vpop.f32.mrb[0].mxu0
    %v1872 = vadd.f32 0.0, %v1871
    %v1873 = vpop.f32.mrb[0].mxu0
    %v1874 = vpop.f32.mrb[0].mxu0
    %v1875 = vadd.f32 0.0, %v1874
    %v1876 = vpop.f32.mrb[0].mxu0
    %1877 = vdwg.mxu0
    %1878 = vrot.lane.b32.xlu0 %v1481, 64
    %v1879 = vpop.permute.xlu0 %1878
    %1880 = vrot.lane.b32.xlu0 %v1482, 64
    %v1881 = vpop.permute.xlu0 %1880
    %v1885 = vsel %vm253, %v1763, 0
    %v1888 = vsel %vm253, %v1764, 0
    %1890 = vmatprep.subr.bf16.mxu0 0
    %1891 = vmatpush1.bf16.msra.mxu0 %v1879
    %1892 = vmatprep.subr.bf16.mxu0 0
    %1893 = vmatpush1.bf16.msra.mxu0 %v1881
    %1894 = vmatprep.subr.bf16.mxu0 0
    %1895 = vmatpush1.bf16.msra.mxu0 0
    %1896 = vmatprep.subr.bf16.mxu0 0
    %1897 = vmatpush1.bf16.msra.mxu0 0
    %1898 = vmatprep.subr.bf16.mxu0 0
    %1899 = vmatpush1.bf16.msra.mxu0 0
    %1900 = vmatprep.subr.bf16.mxu0 0
    %1901 = vmatpush1.bf16.msra.mxu0 0
    %1902 = vmatprep.subr.bf16.mxu0 0
    %1903 = vmatpush1.bf16.msra.mxu0 0
    %1904 = vmatprep.subr.bf16.mxu0 0
    %1905 = vmatpush1.bf16.msra.mxu0 0
    %1906 = vmatprep.subr.bf16.mxu0 0
    %1907 = vmatpush1.bf16.msra.mxu0 0
    %1908 = vmatprep.subr.bf16.mxu0 0
    %1909 = vmatpush1.bf16.msra.mxu0 0
    %1910 = vmatprep.subr.bf16.mxu0 0
    %1911 = vmatpush1.bf16.msra.mxu0 0
    %1912 = vmatprep.subr.bf16.mxu0 0
    %1913 = vmatpush1.bf16.msra.mxu0 0
    %1914 = vmatprep.subr.bf16.mxu0 0
    %1915 = vmatpush1.bf16.msra.mxu0 0
    %1916 = vmatprep.subr.bf16.mxu0 0
    %1917 = vmatpush1.bf16.msra.mxu0 0
    %1918 = vmatprep.subr.bf16.mxu0 0
    %1919 = vmatpush1.bf16.msra.mxu0 0
    %1920 = vmatprep.subr.bf16.mxu0 0
    %1921 = vmatpush1.bf16.msra.mxu0 0
    %1922 = vmatprep.mubr.bf16.mxu0 0
    %1923 = vmatmul.mubr.bf16.gmra.mrb[0].mxu0 %v1885
    %v1924 = vpop.f32.mrb[0].mxu0
    %v1925 = vadd.f32 %v1864, %v1924
    %v1926 = vpop.f32.mrb[0].mxu0
    %v1927 = vpop.f32.mrb[0].mxu0
    %v1928 = vadd.f32 %v1867, %v1927
    %v1929 = vpop.f32.mrb[0].mxu0
    %1930 = vmatprep.mubr.bf16.mxu0 0
    %1931 = vmatmul.mubr.bf16.gmra.mrb[0].mxu0 %v1888
    %v1932 = vpop.f32.mrb[0].mxu0
    %v1933 = vadd.f32 %v1872, %v1932
    %v1934 = vpop.f32.mrb[0].mxu0
    %v1935 = vpop.f32.mrb[0].mxu0
    %v1936 = vadd.f32 %v1875, %v1935
    %v1937 = vpop.f32.mrb[0].mxu0
    %1938 = vdwg.mxu0
    %1941 = vrot.lane.b32.xlu0 %v1933, 16
    %v1942 = vpop.permute.xlu0 %1941
    %1943 = vrot.lane.b32.xlu0 %v1936, 16
    %v1944 = vpop.permute.xlu0 %1943
    %v1947 = vsel %vm523, %v1925, %v1942
    %v1948 = vsel %vm523, %v1928, %v1944
    %v1949 = vpack.c.bf16 %v1948, %v1947
    %s1950 = scalar_lea.vmem %s8, 16
    %v1951 = vld [vmem:[%s1950] sm:$0xf]
    %v1952 = vld [vmem:[%s1950 + $0x4] sm:$0xf]
    %v1953 = vld [vmem:[%s1950 + $0x8] sm:$0xf]
    %v1954 = vld [vmem:[%s1950 + $0xc] sm:$0xf]
    %s1955 = scalar_lea.vmem %s9, 1
    %v1956 = vld [vmem:[%s1955] sm:$0x1]
    %v1958 = vlaneseq
    %v1959 = vshrl.u32 %v1958, 7
    %v1960 = vsub.s32 0, %v1959
    %v1961 = vrot.slane %v1956, %v1960
    %v1967 = vunpack.c.l.b16 %v1951
    %v1968 = vunpack.c.l.b16 %v1952
    %v1969 = vunpack.c.l.b16 %v1953
    %v1970 = vunpack.c.l.b16 %v1954
    %v1971 = vpack.c.b16 %v1968, %v1967
    %v1972 = vpack.c.b16 %v1970, %v1969
    %v1976 = vsel %vm253, %v1949, 0
    %1978 = vmatprep.subr.bf16.mxu0 0
    %1979 = vmatpush1.bf16.msra.mxu0 %v1971
    %1980 = vmatprep.subr.bf16.mxu0 0
    %1981 = vmatpush1.bf16.msra.mxu0 %v1972
    %1982 = vmatprep.subr.bf16.mxu0 0
    %1983 = vmatpush1.bf16.msra.mxu0 0
    %1984 = vmatprep.subr.bf16.mxu0 0
    %1985 = vmatpush1.bf16.msra.mxu0 0
    %1986 = vmatprep.subr.bf16.mxu0 0
    %1987 = vmatpush1.bf16.msra.mxu0 0
    %1988 = vmatprep.subr.bf16.mxu0 0
    %1989 = vmatpush1.bf16.msra.mxu0 0
    %1990 = vmatprep.subr.bf16.mxu0 0
    %1991 = vmatpush1.bf16.msra.mxu0 0
    %1992 = vmatprep.subr.bf16.mxu0 0
    %1993 = vmatpush1.bf16.msra.mxu0 0
    %1994 = vmatprep.subr.bf16.mxu0 0
    %1995 = vmatpush1.bf16.msra.mxu0 0
    %1996 = vmatprep.subr.bf16.mxu0 0
    %1997 = vmatpush1.bf16.msra.mxu0 0
    %1998 = vmatprep.subr.bf16.mxu0 0
    %1999 = vmatpush1.bf16.msra.mxu0 0
    %2000 = vmatprep.subr.bf16.mxu0 0
    %2001 = vmatpush1.bf16.msra.mxu0 0
    %2002 = vmatprep.subr.bf16.mxu0 0
    %2003 = vmatpush1.bf16.msra.mxu0 0
    %2004 = vmatprep.subr.bf16.mxu0 0
    %2005 = vmatpush1.bf16.msra.mxu0 0
    %2006 = vmatprep.subr.bf16.mxu0 0
    %2007 = vmatpush1.bf16.msra.mxu0 0
    %2008 = vmatprep.subr.bf16.mxu0 0
    %2009 = vmatpush1.bf16.msra.mxu0 0
    %2010 = vmatprep.mubr.bf16.mxu0 0
    %2011 = vmatmul.mubr.bf16.gmra.mrb[0].mxu0 %v1976
    %v2012 = vpop.f32.mrb[0].mxu0
    %v2013 = vadd.f32 %v1961, %v2012
    %v2014 = vpop.f32.mrb[0].mxu0
    %v2015 = vpop.f32.mrb[0].mxu0
    %v2016 = vadd.f32 %v1961, %v2015
    %v2017 = vpop.f32.mrb[0].mxu0
    %2018 = vdwg.mxu0
    %v2019 = vadd.f32 %v2013, %v1401
    %v2020 = vadd.f32 %v2016, %v1402
    %s2021 = scalar_lea.vmem %s10, 1
    %v2022 = vld [vmem:[%s2021] sm:$0x1]
    %s2023 = scalar_lea.vmem %s11, 1
    %v2024 = vld [vmem:[%s2023] sm:$0x1]
    %v2025 = vsel %vm253, %v2019, 0.0
    %2026 = vadd.xlane.f32.xlu0 %v2025
    %v2027 = vpop.xlane.xlu0 %2026
    %v2028 = vsel %vm253, %v2020, 0.0
    %2029 = vadd.xlane.f32.xlu0 %v2028
    %v2030 = vpop.xlane.xlu0 %2029
    %v2031 = vmul.f32 %v2027, %v260
    %v2032 = vmul.f32 %v2030, %v260
    %v2033 = vmul.f32 %v2019, %v2019
    %v2034 = vmul.f32 %v2020, %v2020
    %v2035 = vsel %vm253, %v2033, 0.0
    %2036 = vadd.xlane.f32.xlu0 %v2035
    %v2037 = vpop.xlane.xlu0 %2036
    %v2038 = vsel %vm253, %v2034, 0.0
    %2039 = vadd.xlane.f32.xlu0 %v2038
    %v2040 = vpop.xlane.xlu0 %2039
    %v2041 = vmul.f32 %v2037, %v260
    %v2042 = vmul.f32 %v2040, %v260
    %v2043 = vmul.f32 %v2031, %v2031
    %v2044 = vmul.f32 %v2032, %v2032
    %v2045 = vsub.f32 %v2041, %v2043
    %v2046 = vsub.f32 %v2042, %v2044
    %v2047 = vmax.f32 %v2045, 0.0
    %v2048 = vmax.f32 %v2046, 0.0
    %v2049 = vsub.f32 %v2019, %v2031
    %v2050 = vsub.f32 %v2020, %v2032
    %v2051 = vadd.f32 %v2047, 1e-12
    %v2052 = vadd.f32 %v2048, 1e-12
    %v2053 = vrsqrt.pop %v2051
    %v2054 = vrsqrt.pop %v2052
    %v2055 = vmul.f32 %v2049, %v2053
    %v2056 = vmul.f32 %v2050, %v2054
    %v2058 = vlaneseq
    %v2059 = vshrl.u32 %v2058, 7
    %v2060 = vsub.s32 0, %v2059
    %v2061 = vrot.slane %v2022, %v2060
    %v2063 = vmul.f32 %v2055, %v2061
    %v2064 = vmul.f32 %v2056, %v2061
    %v2066 = vlaneseq
    %v2067 = vshrl.u32 %v2066, 7
    %v2068 = vsub.s32 0, %v2067
    %v2069 = vrot.slane %v2024, %v2068
    %v2071 = vadd.f32 %v2063, %v2069
    %v2072 = vadd.f32 %v2064, %v2069
    %v2073 = vpack.c.bf16 %v2072, %v2071
    %s2074 = scalar_lea.vmem %s12, 16
    %v2075 = vld [vmem:[%s2074] sm:$0xf]
    %v2076 = vld [vmem:[%s2074 + $0x4] sm:$0xf]
    %v2077 = vld [vmem:[%s2074 + $0x8] sm:$0xf]
    %v2078 = vld [vmem:[%s2074 + $0xc] sm:$0xf]
    %s2079 = scalar_lea.vmem %s13, 1
    %v2080 = vld [vmem:[%s2079] sm:$0x1]
    %v2082 = vlaneseq
    %v2083 = vshrl.u32 %v2082, 7
    %v2084 = vsub.s32 0, %v2083
    %v2085 = vrot.slane %v2080, %v2084
    %v2091 = vunpack.c.l.b16 %v2075
    %v2092 = vunpack.c.l.b16 %v2076
    %v2093 = vunpack.c.l.b16 %v2077
    %v2094 = vunpack.c.l.b16 %v2078
    %v2095 = vpack.c.b16 %v2092, %v2091
    %v2096 = vpack.c.b16 %v2094, %v2093
    %v2100 = vsel %vm253, %v2073, 0
    %2102 = vmatprep.subr.bf16.mxu0 0
    %2103 = vmatpush1.bf16.msra.mxu0 %v2095
    %2104 = vmatprep.subr.bf16.mxu0 0
    %2105 = vmatpush1.bf16.msra.mxu0 %v2096
    %2106 = vmatprep.subr.bf16.mxu0 0
    %2107 = vmatpush1.bf16.msra.mxu0 0
    %2108 = vmatprep.subr.bf16.mxu0 0
    %2109 = vmatpush1.bf16.msra.mxu0 0
    %2110 = vmatprep.subr.bf16.mxu0 0
    %2111 = vmatpush1.bf16.msra.mxu0 0
    %2112 = vmatprep.subr.bf16.mxu0 0
    %2113 = vmatpush1.bf16.msra.mxu0 0
    %2114 = vmatprep.subr.bf16.mxu0 0
    %2115 = vmatpush1.bf16.msra.mxu0 0
    %2116 = vmatprep.subr.bf16.mxu0 0
    %2117 = vmatpush1.bf16.msra.mxu0 0
    %2118 = vmatprep.subr.bf16.mxu0 0
    %2119 = vmatpush1.bf16.msra.mxu0 0
    %2120 = vmatprep.subr.bf16.mxu0 0
    %2121 = vmatpush1.bf16.msra.mxu0 0
    %2122 = vmatprep.subr.bf16.mxu0 0
    %2123 = vmatpush1.bf16.msra.mxu0 0
    %2124 = vmatprep.subr.bf16.mxu0 0
    %2125 = vmatpush1.bf16.msra.mxu0 0
    %2126 = vmatprep.subr.bf16.mxu0 0
    %2127 = vmatpush1.bf16.msra.mxu0 0
    %2128 = vmatprep.subr.bf16.mxu0 0
    %2129 = vmatpush1.bf16.msra.mxu0 0
    %2130 = vmatprep.subr.bf16.mxu0 0
    %2131 = vmatpush1.bf16.msra.mxu0 0
    %2132 = vmatprep.subr.bf16.mxu0 0
    %2133 = vmatpush1.bf16.msra.mxu0 0
    %2134 = vmatprep.mubr.bf16.mxu0 0
    %2135 = vmatmul.mubr.bf16.gmra.mrb[0].mxu0 %v2100
    %v2136 = vpop.f32.mrb[0].mxu0
    %v2137 = vadd.f32 %v2085, %v2136
    %v2138 = vpop.f32.mrb[0].mxu0
    %v2139 = vpop.f32.mrb[0].mxu0
    %v2140 = vadd.f32 %v2085, %v2139
    %v2141 = vpop.f32.mrb[0].mxu0
    %2142 = vdwg.mxu0
    %v2143 = vmul.f32 %v2137, %v2137
    %v2144 = vmul.f32 %v2140, %v2140
    %v2145 = vmul.f32 %v2137, %v2143
    %v2146 = vmul.f32 %v2140, %v2144
    %v2147 = vmul.f32 %v2145, 0.044715
    %v2148 = vmul.f32 %v2146, 0.044715
    %v2149 = vadd.f32 %v2137, %v2147
    %v2150 = vadd.f32 %v2140, %v2148
    %v2151 = vmul.f32 %v2149, 0.7978846
    %v2152 = vmul.f32 %v2150, 0.7978846
    %v2153 = vtanh.pop %v2151
    %v2154 = vtanh.pop %v2152
    %v2155 = vadd.f32 %v2153, 1.0
    %v2156 = vadd.f32 %v2154, 1.0
    %v2157 = vmul.f32 %v2155, 0.5
    %v2158 = vmul.f32 %v2156, 0.5
    %v2159 = vmul.f32 %v2137, %v2157
    %v2160 = vmul.f32 %v2140, %v2158
    %v2161 = vpack.c.bf16 %v2160, %v2159
    %s2162 = scalar_lea.vmem %s14, 32
    %v2163 = vld [vmem:[%s2162] sm:$0xf]
    %v2164 = vld [vmem:[%s2162 + $0x4] sm:$0xf]
    %v2165 = vld [vmem:[%s2162 + $0x8] sm:$0xf]
    %v2166 = vld [vmem:[%s2162 + $0xc] sm:$0xf]
    %v2167 = vld [vmem:[%s2162 + $0x10] sm:$0xf]
    %v2168 = vld [vmem:[%s2162 + $0x14] sm:$0xf]
    %v2169 = vld [vmem:[%s2162 + $0x18] sm:$0xf]
    %v2170 = vld [vmem:[%s2162 + $0x1c] sm:$0xf]
    %s2171 = scalar_lea.vmem %s15, 1
    %v2172 = vld [vmem:[%s2171] sm:$0x1]
    %v2174 = vlaneseq
    %v2175 = vshrl.u32 %v2174, 7
    %v2176 = vsub.s32 0, %v2175
    %v2177 = vrot.slane %v2172, %v2176
    %v2187 = vunpack.c.l.b16 %v2163
    %v2188 = vunpack.c.l.b16 %v2164
    %v2189 = vunpack.c.l.b16 %v2165
    %v2190 = vunpack.c.l.b16 %v2166
    %v2191 = vunpack.c.l.b16 %v2167
    %v2192 = vunpack.c.l.b16 %v2168
    %v2193 = vunpack.c.l.b16 %v2169
    %v2194 = vunpack.c.l.b16 %v2170
    %v2195 = vpack.c.b16 %v2188, %v2187
    %v2196 = vpack.c.b16 %v2190, %v2189
    %v2197 = vpack.c.b16 %v2192, %v2191
    %v2198 = vpack.c.b16 %v2194, %v2193
    %v2204 = vsel %vm537, %v2161, 0
    %2206 = vmatprep.subr.bf16.mxu0 0
    %2207 = vmatpush1.bf16.msra.mxu0 %v2195
    %2208 = vmatprep.subr.bf16.mxu0 0
    %2209 = vmatpush1.bf16.msra.mxu0 %v2196
    %2210 = vmatprep.subr.bf16.mxu0 0
    %2211 = vmatpush1.bf16.msra.mxu0 %v2197
    %2212 = vmatprep.subr.bf16.mxu0 0
    %2213 = vmatpush1.bf16.msra.mxu0 %v2198
    %2214 = vmatprep.subr.bf16.mxu0 0
    %2215 = vmatpush1.bf16.msra.mxu0 0
    %2216 = vmatprep.subr.bf16.mxu0 0
    %2217 = vmatpush1.bf16.msra.mxu0 0
    %2218 = vmatprep.subr.bf16.mxu0 0
    %2219 = vmatpush1.bf16.msra.mxu0 0
    %2220 = vmatprep.subr.bf16.mxu0 0
    %2221 = vmatpush1.bf16.msra.mxu0 0
    %2222 = vmatprep.subr.bf16.mxu0 0
    %2223 = vmatpush1.bf16.msra.mxu0 0
    %2224 = vmatprep.subr.bf16.mxu0 0
    %2225 = vmatpush1.bf16.msra.mxu0 0
    %2226 = vmatprep.subr.bf16.mxu0 0
    %2227 = vmatpush1.bf16.msra.mxu0 0
    %2228 = vmatprep.subr.bf16.mxu0 0
    %2229 = vmatpush1.bf16.msra.mxu0 0
    %2230 = vmatprep.subr.bf16.mxu0 0
    %2231 = vmatpush1.bf16.msra.mxu0 0
    %2232 = vmatprep.subr.bf16.mxu0 0
    %2233 = vmatpush1.bf16.msra.mxu0 0
    %2234 = vmatprep.subr.bf16.mxu0 0
    %2235 = vmatpush1.bf16.msra.mxu0 0
    %2236 = vmatprep.subr.bf16.mxu0 0
    %2237 = vmatpush1.bf16.msra.mxu0 0
    %2238 = vmatprep.mubr.bf16.mxu0 0
    %2239 = vmatmul.mubr.bf16.gmra.mrb[0].mxu0 %v2204
    %v2240 = vpop.f32.mrb[0].mxu0
    %v2241 = vadd.f32 %v2177, %v2240
    %v2242 = vpop.f32.mrb[0].mxu0
    %v2243 = vpop.f32.mrb[0].mxu0
    %v2244 = vadd.f32 %v2177, %v2243
    %v2245 = vpop.f32.mrb[0].mxu0
    %2246 = vdwg.mxu0
    %v2247 = vadd.f32 %v2241, %v2071
    %v2248 = vadd.f32 %v2244, %v2072
    %s2249 = scalar_lea.vmem %s16, 1
    %v2250 = vld [vmem:[%s2249] sm:$0x1]
    %s2251 = scalar_lea.vmem %s17, 1
    %v2252 = vld [vmem:[%s2251] sm:$0x1]
    %v2253 = vsel %vm253, %v2247, 0.0
    %2254 = vadd.xlane.f32.xlu0 %v2253
    %v2255 = vpop.xlane.xlu0 %2254
    %v2256 = vsel %vm253, %v2248, 0.0
    %2257 = vadd.xlane.f32.xlu0 %v2256
    %v2258 = vpop.xlane.xlu0 %2257
    %v2259 = vmul.f32 %v2255, %v260
    %v2260 = vmul.f32 %v2258, %v260
    %v2261 = vmul.f32 %v2247, %v2247
    %v2262 = vmul.f32 %v2248, %v2248
    %v2263 = vsel %vm253, %v2261, 0.0
    %2264 = vadd.xlane.f32.xlu0 %v2263
    %v2265 = vpop.xlane.xlu0 %2264
    %v2266 = vsel %vm253, %v2262, 0.0
    %2267 = vadd.xlane.f32.xlu0 %v2266
    %v2268 = vpop.xlane.xlu0 %2267
    %v2269 = vmul.f32 %v2265, %v260
    %v2270 = vmul.f32 %v2268, %v260
    %v2271 = vmul.f32 %v2259, %v2259
    %v2272 = vmul.f32 %v2260, %v2260
    %v2273 = vsub.f32 %v2269, %v2271
    %v2274 = vsub.f32 %v2270, %v2272
    %v2275 = vmax.f32 %v2273, 0.0
    %v2276 = vmax.f32 %v2274, 0.0
    %v2277 = vsub.f32 %v2247, %v2259
    %v2278 = vsub.f32 %v2248, %v2260
    %v2279 = vadd.f32 %v2275, 1e-12
    %v2280 = vadd.f32 %v2276, 1e-12
    %v2281 = vrsqrt.pop %v2279
    %v2282 = vrsqrt.pop %v2280
    %v2283 = vmul.f32 %v2277, %v2281
    %v2284 = vmul.f32 %v2278, %v2282
    %v2286 = vlaneseq
    %v2287 = vshrl.u32 %v2286, 7
    %v2288 = vsub.s32 0, %v2287
    %v2289 = vrot.slane %v2250, %v2288
    %v2291 = vmul.f32 %v2283, %v2289
    %v2292 = vmul.f32 %v2284, %v2289
    %v2294 = vlaneseq
    %v2295 = vshrl.u32 %v2294, 7
    %v2296 = vsub.s32 0, %v2295
    %v2297 = vrot.slane %v2252, %v2296
    %v2299 = vadd.f32 %v2291, %v2297
    %v2300 = vadd.f32 %v2292, %v2297
    %v2301 = vlaneseq
    %v2302 = vshrl.u32 %v2301, 7
    %v2303 = vmul.u32 %v2302, 8
    %vm2304 = vcmp.eq.s32.totalorder %v91, %v2303
    %v2305 = vsel %vm2304, 1, 0
    %v2306 = vcvt.s32.f32 %v2305
    %v2307 = vpack.c.bf16 %v2306, %v2306
    %v2308 = vpack.c.bf16 %v2300, %v2299
    %v2310 = vsel %vm523, %v2307, 0
    %2312 = vmatprep.subr.bf16.mxu0 0
    %2313 = vmatpush1.bf16.msra.mxu0 %v2308
    %2314 = vmatprep.subr.bf16.mxu0 0
    %2315 = vmatpush1.bf16.msra.mxu0 0
    %2316 = vmatprep.subr.bf16.mxu0 0
    %2317 = vmatpush1.bf16.msra.mxu0 0
    %2318 = vmatprep.subr.bf16.mxu0 0
    %2319 = vmatpush1.bf16.msra.mxu0 0
    %2320 = vmatprep.subr.bf16.mxu0 0
    %2321 = vmatpush1.bf16.msra.mxu0 0
    %2322 = vmatprep.subr.bf16.mxu0 0
    %2323 = vmatpush1.bf16.msra.mxu0 0
    %2324 = vmatprep.subr.bf16.mxu0 0
    %2325 = vmatpush1.bf16.msra.mxu0 0
    %2326 = vmatprep.subr.bf16.mxu0 0
    %2327 = vmatpush1.bf16.msra.mxu0 0
    %2328 = vmatprep.subr.bf16.mxu0 0
    %2329 = vmatpush1.bf16.msra.mxu0 0
    %2330 = vmatprep.subr.bf16.mxu0 0
    %2331 = vmatpush1.bf16.msra.mxu0 0
    %2332 = vmatprep.subr.bf16.mxu0 0
    %2333 = vmatpush1.bf16.msra.mxu0 0
    %2334 = vmatprep.subr.bf16.mxu0 0
    %2335 = vmatpush1.bf16.msra.mxu0 0
    %2336 = vmatprep.subr.bf16.mxu0 0
    %2337 = vmatpush1.bf16.msra.mxu0 0
    %2338 = vmatprep.subr.bf16.mxu0 0
    %2339 = vmatpush1.bf16.msra.mxu0 0
    %2340 = vmatprep.subr.bf16.mxu0 0
    %2341 = vmatpush1.bf16.msra.mxu0 0
    %2342 = vmatprep.subr.bf16.mxu0 0
    %2343 = vmatpush1.bf16.msra.mxu0 0
    %2344 = vmatprep.mubr.bf16.mxu0 0
    %2345 = vmatmul.mubr.bf16.gmra.mrb[0].mxu0 %v2310
    %v2346 = vpop.f32.mrb[0].mxu0
    %v2347 = vadd.f32 0.0, %v2346
    %v2348 = vpop.f32.mrb[0].mxu0
    %v2349 = vpop.f32.mrb[0].mxu0
    %v2350 = vpop.f32.mrb[0].mxu0
    %2351 = vdwg.mxu0
    %v2352 = vpack.c.bf16 %v2347, %v2347
    %v2353 = vld [vmem:[%s18] sm:$0xf]
    %v2354 = vld [vmem:[%s18 + $0x4] sm:$0xf]
    %v2355 = vld [vmem:[%s18 + $0x8] sm:$0xf]
    %v2356 = vld [vmem:[%s18 + $0xc] sm:$0xf]
    %v2357 = vld [vmem:[%s19] sm:$0x1]
    %v2359 = vlaneseq
    %v2360 = vshrl.u32 %v2359, 7
    %v2361 = vsub.s32 0, %v2360
    %v2362 = vrot.slane %v2357, %v2361
    %v2368 = vunpack.c.l.b16 %v2353
    %v2369 = vunpack.c.l.b16 %v2354
    %v2370 = vunpack.c.l.b16 %v2355
    %v2371 = vunpack.c.l.b16 %v2356
    %v2372 = vpack.c.b16 %v2369, %v2368
    %v2373 = vpack.c.b16 %v2371, %v2370
    %v2377 = vsel %vm253, %v2352, 0
    %2379 = vmatprep.subr.bf16.mxu0 0
    %2380 = vmatpush1.bf16.msra.mxu0 %v2372
    %2381 = vmatprep.subr.bf16.mxu0 0
    %2382 = vmatpush1.bf16.msra.mxu0 %v2373
    %2383 = vmatprep.subr.bf16.mxu0 0
    %2384 = vmatpush1.bf16.msra.mxu0 0
    %2385 = vmatprep.subr.bf16.mxu0 0
    %2386 = vmatpush1.bf16.msra.mxu0 0
    %2387 = vmatprep.subr.bf16.mxu0 0
    %2388 = vmatpush1.bf16.msra.mxu0 0
    %2389 = vmatprep.subr.bf16.mxu0 0
    %2390 = vmatpush1.bf16.msra.mxu0 0
    %2391 = vmatprep.subr.bf16.mxu0 0
    %2392 = vmatpush1.bf16.msra.mxu0 0
    %2393 = vmatprep.subr.bf16.mxu0 0
    %2394 = vmatpush1.bf16.msra.mxu0 0
    %2395 = vmatprep.subr.bf16.mxu0 0
    %2396 = vmatpush1.bf16.msra.mxu0 0
    %2397 = vmatprep.subr.bf16.mxu0 0
    %2398 = vmatpush1.bf16.msra.mxu0 0
    %2399 = vmatprep.subr.bf16.mxu0 0
    %2400 = vmatpush1.bf16.msra.mxu0 0
    %2401 = vmatprep.subr.bf16.mxu0 0
    %2402 = vmatpush1.bf16.msra.mxu0 0
    %2403 = vmatprep.subr.bf16.mxu0 0
    %2404 = vmatpush1.bf16.msra.mxu0 0
    %2405 = vmatprep.subr.bf16.mxu0 0
    %2406 = vmatpush1.bf16.msra.mxu0 0
    %2407 = vmatprep.subr.bf16.mxu0 0
    %2408 = vmatpush1.bf16.msra.mxu0 0
    %2409 = vmatprep.subr.bf16.mxu0 0
    %2410 = vmatpush1.bf16.msra.mxu0 0
    %2411 = vmatprep.mubr.bf16.mxu0 0
    %2412 = vmatmul.mubr.bf16.gmra.mrb[0].mxu0 %v2377
    %v2413 = vpop.f32.mrb[0].mxu0
    %v2414 = vadd.f32 %v2362, %v2413
    %v2415 = vpop.f32.mrb[0].mxu0
    %v2416 = vpop.f32.mrb[0].mxu0
    %v2417 = vpop.f32.mrb[0].mxu0
    %2418 = vdwg.mxu0
    %v2419 = vtanh.pop %v2414
    %v2420 = vpack.c.bf16 %v2419, %v2419
    %v2421 = vld [vmem:[%s20] sm:$0xf]
    %v2422 = vld [vmem:[%s20 + $0x4] sm:$0xf]
    %v2423 = vld [vmem:[%s20 + $0x8] sm:$0xf]
    %v2424 = vld [vmem:[%s20 + $0xc] sm:$0xf]
    %v2425 = vld [vmem:[%s21] sm:$0x1]
    %v2427 = vlaneseq
    %v2428 = vshrl.u32 %v2427, 7
    %v2429 = vsub.s32 0, %v2428
    %v2430 = vrot.slane %v2425, %v2429
    %v2436 = vunpack.c.l.b16 %v2421
    %v2437 = vunpack.c.l.b16 %v2422
    %v2438 = vunpack.c.l.b16 %v2423
    %v2439 = vunpack.c.l.b16 %v2424
    %v2440 = vpack.c.b16 %v2437, %v2436
    %v2441 = vpack.c.b16 %v2439, %v2438
    %v2445 = vsel %vm253, %v2420, 0
    %2447 = vmatprep.subr.bf16.mxu0 0
    %2448 = vmatpush1.bf16.msra.mxu0 %v2440
    %2449 = vmatprep.subr.bf16.mxu0 0
    %2450 = vmatpush1.bf16.msra.mxu0 %v2441
    %2451 = vmatprep.subr.bf16.mxu0 0
    %2452 = vmatpush1.bf16.msra.mxu0 0
    %2453 = vmatprep.subr.bf16.mxu0 0
    %2454 = vmatpush1.bf16.msra.mxu0 0
    %2455 = vmatprep.subr.bf16.mxu0 0
    %2456 = vmatpush1.bf16.msra.mxu0 0
    %2457 = vmatprep.subr.bf16.mxu0 0
    %2458 = vmatpush1.bf16.msra.mxu0 0
    %2459 = vmatprep.subr.bf16.mxu0 0
    %2460 = vmatpush1.bf16.msra.mxu0 0
    %2461 = vmatprep.subr.bf16.mxu0 0
    %2462 = vmatpush1.bf16.msra.mxu0 0
    %2463 = vmatprep.subr.bf16.mxu0 0
    %2464 = vmatpush1.bf16.msra.mxu0 0
    %2465 = vmatprep.subr.bf16.mxu0 0
    %2466 = vmatpush1.bf16.msra.mxu0 0
    %2467 = vmatprep.subr.bf16.mxu0 0
    %2468 = vmatpush1.bf16.msra.mxu0 0
    %2469 = vmatprep.subr.bf16.mxu0 0
    %2470 = vmatpush1.bf16.msra.mxu0 0
    %2471 = vmatprep.subr.bf16.mxu0 0
    %2472 = vmatpush1.bf16.msra.mxu0 0
    %2473 = vmatprep.subr.bf16.mxu0 0
    %2474 = vmatpush1.bf16.msra.mxu0 0
    %2475 = vmatprep.subr.bf16.mxu0 0
    %2476 = vmatpush1.bf16.msra.mxu0 0
    %2477 = vmatprep.subr.bf16.mxu0 0
    %2478 = vmatpush1.bf16.msra.mxu0 0
    %2479 = vmatprep.mubr.bf16.mxu0 0
    %2480 = vmatmul.mubr.bf16.gmra.mrb[0].mxu0 %v2445
    %v2481 = vpop.f32.mrb[0].mxu0
    %v2482 = vadd.f32 %v2430, %v2481
    %v2483 = vpop.f32.mrb[0].mxu0
    %v2484 = vpop.f32.mrb[0].mxu0
    %v2485 = vpop.f32.mrb[0].mxu0
    %2486 = vdwg.mxu0
    %vm2487 = vcmask 9216
    %2488 = vst.msk [vmem:[#allocation2] sm:$0x3] %vm2487, %v2482
    // Predicated region
    $region110: #{model_forward.1} parent=1 // pred_check
      _
    $region111: #{model_forward.1} parent=1 // pred_check_branch
      %2490 = sbr.rel (0) target = $region113
    $region112: #{model_forward.1} parent=1 // pred_region
      %s2492 = ssub.s32 32, 32
      %2493 = vsyncadd [#allocation3], %s2492
      %s2495 = sshll.u32 [#allocation2], 4
      %s2496 = int_to_ptr.vmem [resolvable:$true] %s2495
      %2498 = dma.vmem_to_hbm [thread:$0]  %s2496, 32, %s27, [#allocation3]
    $region113: #{model_forward.1} parent=1 // pred_fallthru
      _
    // Predicated region
    $region114: #{model_forward.1} parent=1 // pred_check
      _
    $region115: #{model_forward.1} parent=1 // pred_check_branch
      %2500 = sbr.rel (0) target = $region117
    $region116: #{model_forward.1} parent=1 // pred_region
      %2501 = dma.done [#allocation3], 32
    $region117: #{model_forward.1} parent=1 // pred_fallthru
      _
    %2502 = vsyncpa [#allocation3], 1

</llo_original>
